<compile_context>
chip_gen: v6e
topology: v6e:2x2x1
jax: 0.10.0
libtpu: 0.0.40
codegen_flags: <defaults>
</compile_context>

<pallas_src>
import jax
import jax.numpy as jnp
from jax.experimental import pallas as pl
from jax.experimental.pallas import tpu as pltpu


# ------------------- conv (+ per-sample feature Gram) kernel -------------------

def _conv_gram_kernel(cols_ref, w_ref, o_ref, g_ref):
    # Single folded-K matmul: (Cout, K) @ (K, HW).  The trailing ones-row of the
    # im2col slab carries the bias column of w, so no epilogue VPU add is needed.
    acc = jnp.dot(w_ref[...], cols_ref[...], preferred_element_type=jnp.float32)
    o_ref[...] = acc
    # Feature Gram of this sample: C = F F^T, F = (Cout, HW) lane-dense block.
    g_ref[...] = jax.lax.dot_general(
        acc, acc, dimension_numbers=(((1,), (1,)), ((), ())),
        preferred_element_type=jnp.float32)


def conv2d_3x3_same_with_gram(x, weight, bias):
    """3x3 'same' conv (PyTorch Conv2d semantics) + per-sample feature Gram.

    Returns:
      feat_slab: (Cout, B*H*W) lane-dense activations, pixel n = b*H*W + i*W + j.
      gram:      (B, Cout, Cout), gram[b] = feat[b] @ feat[b]^T (contraction over pixels).
    """
    B, Cin, H, W = x.shape
    Cout = weight.shape[0]
    HW = H * W
    N = B * HW
    K = 9 * Cin + 1  # 9 taps x Cin channels + ones-row carrying the bias

    # Wrapper-side im2col (zero 'same' padding): K on sublanes, pixels on lanes.
    xp = jnp.pad(x, ((0, 0), (0, 0), (1, 1), (1, 1)))
    taps = [xp[:, :, di:di + H, dj:dj + W] for di in range(3) for dj in range(3)]
    cols = jnp.stack(taps, 0).transpose(0, 2, 1, 3, 4).reshape(9 * Cin, N)
    cols = jnp.concatenate([cols, jnp.ones((1, N), jnp.float32)], axis=0)      # (K, N)

    # Weight slab (Cout, K): w2d[o, (di*3+dj)*Cin + c] = weight[o, c, di, dj]; bias last.
    w2d = weight.transpose(0, 2, 3, 1).reshape(Cout, 9 * Cin)
    w2d = jnp.concatenate([w2d, bias.reshape(Cout, 1)], axis=1)                # (Cout, K)

    feat_slab, gram_flat = pl.pallas_call(
        _conv_gram_kernel,
        out_shape=(jax.ShapeDtypeStruct((Cout, N), jnp.float32),
                   jax.ShapeDtypeStruct((B * Cout, Cout), jnp.float32)),
        grid=(B,),                                           # one sample per grid step
        in_specs=[
            pl.BlockSpec((K, HW), lambda b: (0, b)),
            pl.BlockSpec((Cout, K), lambda b: (0, 0)),
        ],
        out_specs=(
            pl.BlockSpec((Cout, HW), lambda b: (0, b)),
            pl.BlockSpec((Cout, Cout), lambda b: (b, 0)),
        ),
        compiler_params=pltpu.CompilerParams(dimension_semantics=("parallel",)),
    )(cols, w2d)
    return feat_slab, gram_flat.reshape(B, Cout, Cout)


# ----------------------------- cross-Gram kernel -------------------------------

def _cross_gram_kernel(xl_ref, wl_ref, o_ref):
    # (B*d, D) @ (D, Pd_pad): standard MXU form (no in-kernel transpose),
    # lane-dense (multiple-of-128) output -> unmasked full-width stores.
    o_ref[...] = jnp.dot(xl_ref[...], wl_ref[...], preferred_element_type=jnp.float32)


def cross_gram(subspaces, xprotos):
    """G[b, p] = subspaces[b]^T @ xprotos[p]  (d x d), as one lane-dense matmul."""
    B, D, d = subspaces.shape
    P = xprotos.shape[0]
    Pd = P * d
    Pd_pad = max(128, ((Pd + 127) // 128) * 128)             # pad output lanes to 128k
    xl = subspaces.transpose(0, 2, 1).reshape(B * d, D)      # (B*d, D)
    wl = xprotos.transpose(1, 0, 2).reshape(D, Pd)           # (D, P*d)  pre-transposed
    wl = jnp.pad(wl, ((0, 0), (0, Pd_pad - Pd)))
    g = pl.pallas_call(
        _cross_gram_kernel,
        out_shape=jax.ShapeDtypeStruct((B * d, Pd_pad), jnp.float32),
        grid=(1,),
        in_specs=[
            pl.BlockSpec((B * d, D), lambda i: (0, 0)),
            pl.BlockSpec((D, Pd_pad), lambda i: (0, 0)),
        ],
        out_specs=pl.BlockSpec((B * d, Pd_pad), lambda i: (0, 0)),
        compiler_params=pltpu.CompilerParams(dimension_semantics=("arbitrary",)),
    )(xl, wl)
    g = g[:, :Pd]
    # g[b*d+i, p*d+j] = sum_D subspaces[b, D, i] * xprotos[p, D, j]
    return g.reshape(B, d, P, d).transpose(0, 2, 1, 3)       # (B, P, d, d)


# ----------------------------- model forward (glue) ----------------------------

def grassmann_repr_from_gram(feat_slab, gram, B, H, W, subspace_dim, eps=1e-12):
    """Top-d orthonormal basis of each sample's feature-map span via Gram/eigh.

    Equivalent (up to column sign) to the top-d left singular vectors of the
    (H*W, C) feature matrix: U_d = mat @ V_d * rsqrt(lambda_d).
    """
    Cout = feat_slab.shape[0]
    mat = feat_slab.reshape(Cout, B, H * W).transpose(1, 2, 0)     # (B, D=H*W, C)
    lam, V = jnp.linalg.eigh(gram)                                 # ascending
    lam_d = lam[:, ::-1][:, :subspace_dim]                         # top-d, descending
    V_d = V[:, :, ::-1][:, :, :subspace_dim]                       # (B, C, d)
    inv_s = jax.lax.rsqrt(jnp.maximum(lam_d, eps))
    U_d = jnp.einsum('bnc,bcd->bnd', mat, V_d) * inv_s[:, None, :]
    return U_d                                                     # (B, D, d)


def prototype_layer_forward(subspaces, xprotos, relevances):
    G = cross_gram(subspaces, xprotos)                             # (B, P, d, d) [Pallas]
    # Principal angles via eigh of the symmetric d x d G^T G (much cheaper than SVD):
    # eigenvalues = cos^2(theta) (= S^2), eigenvectors = right singular vectors V.
    GtG = jnp.einsum('bpij,bpik->bpjk', G, G)
    s2, V = jnp.linalg.eigh(GtG)                                   # ascending
    s2 = s2[..., ::-1]                                             # descending (SVD order)
    V = V[..., ::-1]
    rel = relevances.reshape(1, 1, -1)
    # chordal distance with adaptive relevances: 1 - sum_j rel_j * cos^2(theta_j)
    distance = 1.0 - jnp.sum(s2 * rel, axis=-1)                    # (B, P)
    # TODO(synk): Qw convention (Vh vs V) depends on the reference PrototypeLayer;
    # we return Vh (rows = right singular vectors, descending), matching torch.linalg.svd.
    Qw = jnp.swapaxes(V, -1, -2)                                   # (B, P, d, d)
    return distance, Qw


def model_forward(x, params, subspace_dim):
    B, _, H, W = x.shape
    feat_slab, gram = conv2d_3x3_same_with_gram(x, params["conv_w"], params["conv_b"])
    # add_on = Identity
    subspaces = grassmann_repr_from_gram(feat_slab, gram, B, H, W, subspace_dim)
    return prototype_layer_forward(subspaces, params["xprotos"], params["relevances"])


# ----------------------------------- main --------------------------------------

if __name__ == "__main__":
    key = jax.random.PRNGKey(0)
    k_x, k_w, k_b, k_p = jax.random.split(key, 4)

    # small shapes consistent with the module
    B, Cin, H, W = 2, 4, 16, 16
    Cout = 8
    num_classes = 3
    protos_per_class = 2
    P = num_classes * protos_per_class
    d = 4                      # subspace dimension
    D = H * W

    x = jax.random.normal(k_x, (B, Cin, H, W), dtype=jnp.float32)

    # deterministic parameter init (synthetic; no checkpoint load)
    conv_w = 0.1 * jax.random.normal(k_w, (Cout, Cin, 3, 3), dtype=jnp.float32)
    conv_b = 0.05 * jax.random.normal(k_b, (Cout,), dtype=jnp.float32)
    proto_raw = jax.random.normal(k_p, (P, D, d), dtype=jnp.float32)
    xprotos, _ = jnp.linalg.qr(proto_raw)                  # orthonormal prototype bases
    relevances = jnp.full((1, d), 1.0 / d, dtype=jnp.float32)

    params = dict(conv_w=conv_w, conv_b=conv_b, xprotos=xprotos, relevances=relevances)

    distance, Qw = jax.jit(lambda xx: model_forward(xx, params, d))(x)
    jax.block_until_ready((distance, Qw))

    assert distance.shape == (B, P), distance.shape
    assert Qw.shape == (B, P, d, d), Qw.shape
    assert bool(jnp.all(jnp.isfinite(distance)))
    assert bool(jnp.all(jnp.isfinite(Qw)))
    print("KERNEL_OK")
</pallas_src>

<mosaic_0001>
module attributes {stable_mosaic.version = 11 : i64} {
  func.func @_conv_gram_kernel(%arg0: i32, %arg1: memref<37x256xf32, #tpu.memory_space<vmem>>, %arg2: memref<8x37xf32, #tpu.memory_space<vmem>>, %arg3: memref<8x256xf32, #tpu.memory_space<vmem>>, %arg4: memref<8x8xf32, #tpu.memory_space<vmem>>) attributes {dimension_semantics = [#tpu.dimension_semantics<parallel>], iteration_bounds = array<i64: 2>, scalar_prefetch = 0 : i64, scratch_operands = 0 : i64, tpu.core_type = #tpu.core_type<tc>, window_params = [{transform_indices = @transform_0, window_bounds = array<i64: 37, 256>}, {pipeline_mode = #tpu.pipeline_mode<synchronous>, transform_indices = @transform_1, window_bounds = array<i64: 8, 37>}, {transform_indices = @transform_2, window_bounds = array<i64: 8, 256>}, {transform_indices = @transform_3, window_bounds = array<i64: 8, 8>}]} {
    %c0 = arith.constant 0 : index
    %c0_0 = arith.constant 0 : index
    %0 = vector.load %arg2[%c0, %c0_0] : memref<8x37xf32, #tpu.memory_space<vmem>>, vector<8x37xf32>
    %c0_1 = arith.constant 0 : index
    %c0_2 = arith.constant 0 : index
    %1 = vector.load %arg1[%c0_1, %c0_2] : memref<37x256xf32, #tpu.memory_space<vmem>>, vector<37x256xf32>
    %cst = arith.constant dense<0.000000e+00> : vector<8x256xf32>
    %2 = tpu.matmul %0, %1, %cst {dimension_numbers = #tpu.dot_dimension_numbers<[1], [0], [0], [1], [0, 0, 1, 1], [], []>} : vector<8x37xf32>, vector<37x256xf32>, vector<8x256xf32> -> vector<8x256xf32>
    %c0_3 = arith.constant 0 : index
    %c0_4 = arith.constant 0 : index
    %3 = vector.load %arg3[%c0_3, %c0_4] : memref<8x256xf32, #tpu.memory_space<vmem>>, vector<8x256xf32>
    tpu.vector_store %arg3[%c0_3, %c0_4], %2 {strides = array<i32>} : memref<8x256xf32, #tpu.memory_space<vmem>>, vector<8x256xf32>,
    %cst_5 = arith.constant dense<0.000000e+00> : vector<8x8xf32>
    %4 = tpu.matmul %2, %2, %cst_5 {dimension_numbers = #tpu.dot_dimension_numbers<[1], [1], [0], [0], [0, 0, 1, 0], [], []>} : vector<8x256xf32>, vector<8x256xf32>, vector<8x8xf32> -> vector<8x8xf32>
    %c0_6 = arith.constant 0 : index
    %c0_7 = arith.constant 0 : index
    %5 = vector.load %arg4[%c0_6, %c0_7] : memref<8x8xf32, #tpu.memory_space<vmem>>, vector<8x8xf32>
    tpu.vector_store %arg4[%c0_6, %c0_7], %4 {strides = array<i32>} : memref<8x8xf32, #tpu.memory_space<vmem>>, vector<8x8xf32>,
    return
  }
  func.func @transform_0(%arg0: i32) -> (i32, i32) {
    %c0_i32 = arith.constant 0 : i32
    %c0_i32_0 = arith.constant 0 : i32
    return %c0_i32, %arg0 : i32, i32
  }
  func.func @transform_1(%arg0: i32) -> (i32, i32) {
    %c0_i32 = arith.constant 0 : i32
    %c0_i32_0 = arith.constant 0 : i32
    %c0_i32_1 = arith.constant 0 : i32
    return %c0_i32, %c0_i32_0 : i32, i32
  }
  func.func @transform_2(%arg0: i32) -> (i32, i32) {
    %c0_i32 = arith.constant 0 : i32
    %c0_i32_0 = arith.constant 0 : i32
    return %c0_i32, %arg0 : i32, i32
  }
  func.func @transform_3(%arg0: i32) -> (i32, i32) {
    %c0_i32 = arith.constant 0 : i32
    %c0_i32_0 = arith.constant 0 : i32
    return %arg0, %c0_i32 : i32, i32
  }
}

module attributes {stable_mosaic.version = 11 : i64} {
  func.func @_cross_gram_kernel(%arg0: i32, %arg1: memref<8x256xf32, #tpu.memory_space<vmem>>, %arg2: memref<256x128xf32, #tpu.memory_space<vmem>>, %arg3: memref<8x128xf32, #tpu.memory_space<vmem>>) attributes {dimension_semantics = [#tpu.dimension_semantics<arbitrary>], iteration_bounds = array<i64: 1>, scalar_prefetch = 0 : i64, scratch_operands = 0 : i64, tpu.core_type = #tpu.core_type<tc>, window_params = [{pipeline_mode = #tpu.pipeline_mode<synchronous>, transform_indices = @transform_0, window_bounds = array<i64: 8, 256>}, {pipeline_mode = #tpu.pipeline_mode<synchronous>, transform_indices = @transform_1, window_bounds = array<i64: 256, 128>}, {pipeline_mode = #tpu.pipeline_mode<synchronous>, transform_indices = @transform_2, window_bounds = array<i64: 8, 128>}]} {
    %c0 = arith.constant 0 : index
    %c0_0 = arith.constant 0 : index
    %0 = vector.load %arg1[%c0, %c0_0] : memref<8x256xf32, #tpu.memory_space<vmem>>, vector<8x256xf32>
    %c0_1 = arith.constant 0 : index
    %c0_2 = arith.constant 0 : index
    %1 = vector.load %arg2[%c0_1, %c0_2] : memref<256x128xf32, #tpu.memory_space<vmem>>, vector<256x128xf32>
    %cst = arith.constant dense<0.000000e+00> : vector<8x128xf32>
    %2 = tpu.matmul %0, %1, %cst {dimension_numbers = #tpu.dot_dimension_numbers<[1], [0], [0], [1], [0, 0, 1, 1], [], []>} : vector<8x256xf32>, vector<256x128xf32>, vector<8x128xf32> -> vector<8x128xf32>
    %c0_3 = arith.constant 0 : index
    %c0_4 = arith.constant 0 : index
    %3 = vector.load %arg3[%c0_3, %c0_4] : memref<8x128xf32, #tpu.memory_space<vmem>>, vector<8x128xf32>
    tpu.vector_store %arg3[%c0_3, %c0_4], %2 {strides = array<i32>} : memref<8x128xf32, #tpu.memory_space<vmem>>, vector<8x128xf32>,
    return
  }
  func.func @transform_0(%arg0: i32) -> (i32, i32) {
    %c0_i32 = arith.constant 0 : i32
    %c0_i32_0 = arith.constant 0 : i32
    %c0_i32_1 = arith.constant 0 : i32
    return %c0_i32, %c0_i32_0 : i32, i32
  }
  func.func @transform_1(%arg0: i32) -> (i32, i32) {
    %c0_i32 = arith.constant 0 : i32
    %c0_i32_0 = arith.constant 0 : i32
    %c0_i32_1 = arith.constant 0 : i32
    return %c0_i32, %c0_i32_0 : i32, i32
  }
  func.func @transform_2(%arg0: i32) -> (i32, i32) {
    %c0_i32 = arith.constant 0 : i32
    %c0_i32_0 = arith.constant 0 : i32
    %c0_i32_1 = arith.constant 0 : i32
    return %c0_i32, %c0_i32_0 : i32, i32
  }
}

</mosaic_0001>

<llo_original>
// kernel: custom-call.4
$region0: #{custom-call.4}
  %s0 = inlined_call_operand.vmem [shape: f32[2,4,4], index: 0, kind: input, shape index: {}]
  %s1 = inlined_call_operand.vmem [shape: f32[2,4,4], index: 1, kind: input, shape index: {}]
  %s2 = inlined_call_operand.vmem [shape: f32[2,4,4], index: 2, kind: input, shape index: {}]
  %s3 = inlined_call_operand.vmem [shape: f32[2,4,4], index: 3, kind: input, shape index: {}]
  %s4 = inlined_call_operand.vmem [shape: f32[2,4], index: 4, kind: output, shape index: {0}]
  %s5 = inlined_call_operand.vmem [shape: f32[2,4], index: 5, kind: output, shape index: {1}]
  %s6 = inlined_call_operand.vmem [shape: f32[2,4,4], index: 6, kind: output, shape index: {2}]
  %s7 = inlined_call_operand.vmem [shape: f32[2,4,4], index: 7, kind: output, shape index: {3}]
  %s8 = inlined_call_operand.vmem [shape: f32[2,4,4], index: 8, kind: output, shape index: {4}]
  %s9 = inlined_call_operand.vmem [shape: f32[2,4,4], index: 9, kind: output, shape index: {5}]
  %10 = xla_tuple %s4, %s5, %s6, %s7, %s8, %s9
  $region1: #{custom-call.4} parent=0
    #allocation0 [shape = 'u8[4096]{0}', space=vmem, size = 0x1000, scoped, tag = 'operand span for operand 0']
    #allocation1 [shape = 'u8[4096]{0}', space=vmem, size = 0x1000, scoped, tag = 'packed  for operand 0']
    #allocation2 [shape = 'u8[4096]{0}', space=vmem, size = 0x1000, scoped, tag = 'operand span for operand 1']
    #allocation3 [shape = 'u8[4096]{0}', space=vmem, size = 0x1000, scoped, tag = 'packed  for operand 1']
    #allocation4 [shape = 'u8[4096]{0}', space=vmem, size = 0x1000, scoped, tag = 'operand span for operand 2']
    #allocation5 [shape = 'u8[4096]{0}', space=vmem, size = 0x1000, scoped, tag = 'packed  for operand 2']
    #allocation6 [shape = 'u8[4096]{0}', space=vmem, size = 0x1000, scoped, tag = 'operand span for operand 3']
    #allocation7 [shape = 'u8[4096]{0}', space=vmem, size = 0x1000, scoped, tag = 'packed  for operand 3']
    #allocation8 [shape = 'u8[4096]{0}', space=vmem, size = 0x1000, scoped, tag = 'operand span for operand 4']
    #allocation9 [shape = 'u8[2048]{0}', space=vmem, size = 0x800, scoped, tag = 'packed  for operand 4']
    #allocation10 [shape = 'u8[4096]{0}', space=vmem, size = 0x1000, scoped, tag = 'operand span for operand 5']
    #allocation11 [shape = 'u8[2048]{0}', space=vmem, size = 0x800, scoped, tag = 'packed  for operand 5']
    #allocation12 [shape = 'u8[4096]{0}', space=vmem, size = 0x1000, scoped, tag = 'operand span for operand 6']
    #allocation13 [shape = 'u8[4096]{0}', space=vmem, size = 0x1000, scoped, tag = 'packed  for operand 6']
    #allocation14 [shape = 'u8[4096]{0}', space=vmem, size = 0x1000, scoped, tag = 'operand span for operand 7']
    #allocation15 [shape = 'u8[4096]{0}', space=vmem, size = 0x1000, scoped, tag = 'packed  for operand 7']
    #allocation16 [shape = 'u8[4096]{0}', space=vmem, size = 0x1000, scoped, tag = 'operand span for operand 8']
    #allocation17 [shape = 'u8[4096]{0}', space=vmem, size = 0x1000, scoped, tag = 'packed  for operand 8']
    #allocation18 [shape = 'u8[4096]{0}', space=vmem, size = 0x1000, scoped, tag = 'operand span for operand 9']
    #allocation19 [shape = 'u8[4096]{0}', space=vmem, size = 0x1000, scoped, tag = 'packed  for operand 9']
    loop: start=0, step=1, limit=4
    $region2: #{custom-call.4} parent=1 // loop_pre_header
      _
    $region3: #{custom-call.4} parent=1 // loop_header
      %s12 = sphi 0, %s16
      %p13 = scmp.ge.s32.totalorder %s12, 4
      %s24 = sphi 0, %s26
      %s27 = sphi 0, %s24
      %s28 = sphi 0, %s27
      %s44 = sphi 0, %s28
      %s52 = sphi 0, %s54
      %s55 = sphi 0, %s52
      %s56 = sphi 0, %s55
      %s72 = sphi 0, %s56
    $region4: #{custom-call.4} parent=1 // loop_header_branch
      %15 = sbr.rel (%p13) target = $region8
    $region5: #{custom-call.4} parent=1 // loop_body
      %s17 = ssub.s32 %s12, 1
      %s18 = ssub.s32 %s12, 2
      %s19 = sadd.s32 %s12, 1
      %s20 = sshrl.u32 %s12, 3
      %s21 = sshrl.u32 %s19, 3
      %s22 = ssub.s32 %s20, %s21
      %p23 = scmp.eq.s32.totalorder %s22, 0
      %s25 = sadd.s32 %s24, 1
      %s26 = scalar_select %p23, %s24, %s25
      %p29 = pneg %p23
      %p30 = scmp.eq.s32.totalorder %s12, 1
      %p31 = por %p29, %p30
      %p32 = scmp.ne.s32.totalorder %s24, %s27
      %p33 = scmp.eq.s32.totalorder %s12, 0
      %p34 = por %p32, %p33
      %p35 = scmp.ne.s32.totalorder %s24, %s27
      %p36 = scmp.eq.s32.totalorder %s17, 1
      %p37 = por %p35, %p36
      %p38 = scmp.ne.s32.totalorder %s27, %s28
      %p39 = scmp.eq.s32.totalorder %s17, 0
      %p40 = por %p38, %p39
      %p41 = scmp.ne.s32.totalorder %s27, %s28
      %p42 = scmp.eq.s32.totalorder %s18, 1
      %p43 = por %p41, %p42
      %p45 = scmp.ne.s32.totalorder %s28, %s44
      %p46 = scmp.eq.s32.totalorder %s18, 0
      %p47 = por %p45, %p46
      %s48 = sshrl.u32 %s12, 3
      %s49 = sshrl.u32 %s19, 3
      %s50 = ssub.s32 %s48, %s49
      %p51 = scmp.eq.s32.totalorder %s50, 0
      %s53 = sadd.s32 %s52, 1
      %s54 = scalar_select %p51, %s52, %s53
      %p57 = pneg %p51
      %p58 = scmp.eq.s32.totalorder %s12, 1
      %p59 = por %p57, %p58
      %p60 = scmp.ne.s32.totalorder %s52, %s55
      %p61 = scmp.eq.s32.totalorder %s12, 0
      %p62 = por %p60, %p61
      %p63 = scmp.ne.s32.totalorder %s52, %s55
      %p64 = scmp.eq.s32.totalorder %s17, 1
      %p65 = por %p63, %p64
      %p66 = scmp.ne.s32.totalorder %s55, %s56
      %p67 = scmp.eq.s32.totalorder %s17, 0
      %p68 = por %p66, %p67
      %p69 = scmp.ne.s32.totalorder %s55, %s56
      %p70 = scmp.eq.s32.totalorder %s18, 1
      %p71 = por %p69, %p70
      %p73 = scmp.ne.s32.totalorder %s56, %s72
      %p74 = scmp.eq.s32.totalorder %s18, 0
      %p75 = por %p73, %p74
      %p76 = scmp.le.s32.totalorder 1, %s12
      %p77 = scmp.lt.s32.totalorder %s12, 3
      %p78 = pnand %p76, %p77
      %p79 = pneg %p78
      // Predicated region
      $region9: #{custom-call.4} parent=5 // pred_check
        _
      $region10: #{custom-call.4} parent=5 // pred_check_branch
        %81 = sbr.rel (%p78) target = $region12
      $region11: #{custom-call.4} parent=5 // pred_region
        %s82 = ssub.s32 %s12, 1
      $region12: #{custom-call.4} parent=5 // pred_fallthru
        _
      %p83 = scmp.lt.s32.totalorder %s12, 2
      // Predicated region
      $region13: #{custom-call.4} parent=5 // pred_check
        %p84 = pneg %p83
      $region14: #{custom-call.4} parent=5 // pred_check_branch
        %86 = sbr.rel (%p84) target = $region16
      $region15: #{custom-call.4} parent=5 // pred_region
        %s87 = sand.u32 %s12, 1
        %s88 = sand.u32 %s12, 1
        %s89 = smul.addr %s88, 4
        %s90 = scalar_lea.vmem [#allocation1], %s89
        %s91 = smul.addr %s12, 4
        %s92 = scalar_lea.vmem %s0, %s91
        // Predicated region
        $region17: #{custom-call.4} parent=15 // pred_check
          _
        $region18: #{custom-call.4} parent=15 // pred_check_branch
          %94 = sbr.rel (0) target = $region20
        $region19: #{custom-call.4} parent=15 // pred_region
          // Predicated region
          $region21: #{custom-call.4} parent=19 // pred_check
            _
          $region22: #{custom-call.4} parent=19 // pred_check_branch
            %96 = sbr.rel target = $region24
          $region23: #{custom-call.4} parent=19 // pred_region
            // Predicated region
            $region36: #{custom-call.4} parent=23 // pred_check
              _
            $region37: #{custom-call.4} parent=23 // pred_check_branch
              %112 = sbr.rel (0) target = $region39
            $region38: #{custom-call.4} parent=23 // pred_region
              %s114 = ssub.s32 16, 1
              loop: start=0, step=1, limit=1
              $region40: #{custom-call.4} parent=38 // loop_pre_header
                _
              $region41: #{custom-call.4} parent=38 // loop_header
                %s116 = sphi 0, %s120
                %p117 = scmp.ge.s32.totalorder %s116, 1
                %s121 = sphi %s92, %s92
                %s122 = sphi %s90, %s90
              $region42: #{custom-call.4} parent=38 // loop_header_branch
                %119 = sbr.rel (%p117) target = $region46
              $region43: #{custom-call.4} parent=38 // loop_body
                %v123 = vld [vmem:[%s121] sm:%s114]
                %124 = vst [vmem:[%s122] sm:%s114] %v123
              $region44: #{custom-call.4} parent=38 // loop_footer
                %s120 = sadd.s32 1, %s116
              $region45: #{custom-call.4} parent=38 // loop_footer_branch
                %115 = sbr.rel target = $region41
              $region46: #{custom-call.4} parent=38 // loop_exit
                _
            $region39: #{custom-call.4} parent=23 // pred_fallthru
              _
          $region24: #{custom-call.4} parent=19 // pred_fallthru
            _
          // Predicated region
          $region25: #{custom-call.4} parent=19 // pred_check
            _
          $region26: #{custom-call.4} parent=19 // pred_check_branch
            %98 = sbr.rel (0) target = $region28
          $region27: #{custom-call.4} parent=19 // pred_region
            %s100 = ssub.s32 16, 1
            loop: start=0, step=1, limit=1
            $region29: #{custom-call.4} parent=27 // loop_pre_header
              _
            $region30: #{custom-call.4} parent=27 // loop_header
              %s102 = sphi 0, %s106
              %p103 = scmp.ge.s32.totalorder %s102, 1
              %s107 = sphi %s92, %s92
              %s108 = sphi %s90, %s90
            $region31: #{custom-call.4} parent=27 // loop_header_branch
              %105 = sbr.rel (%p103) target = $region35
            $region32: #{custom-call.4} parent=27 // loop_body
              %v109 = vld [vmem:[%s107] sm:%s100]
              %110 = vst [vmem:[%s108] sm:%s100] %v109
            $region33: #{custom-call.4} parent=27 // loop_footer
              %s106 = sadd.s32 1, %s102
            $region34: #{custom-call.4} parent=27 // loop_footer_branch
              %101 = sbr.rel target = $region30
            $region35: #{custom-call.4} parent=27 // loop_exit
              _
          $region28: #{custom-call.4} parent=19 // pred_fallthru
            _
        $region20: #{custom-call.4} parent=15 // pred_fallthru
          _
        %125 = vnop
        %s126 = sand.u32 %s12, 1
        %s127 = sand.u32 %s12, 1
        %s128 = smul.addr %s127, 4
        %s129 = scalar_lea.vmem [#allocation3], %s128
        %s130 = smul.addr %s12, 4
        %s131 = scalar_lea.vmem %s1, %s130
        // Predicated region
        $region47: #{custom-call.4} parent=15 // pred_check
          _
        $region48: #{custom-call.4} parent=15 // pred_check_branch
          %133 = sbr.rel (0) target = $region50
        $region49: #{custom-call.4} parent=15 // pred_region
          // Predicated region
          $region51: #{custom-call.4} parent=49 // pred_check
            _
          $region52: #{custom-call.4} parent=49 // pred_check_branch
            %135 = sbr.rel target = $region54
          $region53: #{custom-call.4} parent=49 // pred_region
            // Predicated region
            $region66: #{custom-call.4} parent=53 // pred_check
              _
            $region67: #{custom-call.4} parent=53 // pred_check_branch
              %151 = sbr.rel (0) target = $region69
            $region68: #{custom-call.4} parent=53 // pred_region
              %s153 = ssub.s32 16, 1
              loop: start=0, step=1, limit=1
              $region70: #{custom-call.4} parent=68 // loop_pre_header
                _
              $region71: #{custom-call.4} parent=68 // loop_header
                %s155 = sphi 0, %s159
                %p156 = scmp.ge.s32.totalorder %s155, 1
                %s160 = sphi %s131, %s131
                %s161 = sphi %s129, %s129
              $region72: #{custom-call.4} parent=68 // loop_header_branch
                %158 = sbr.rel (%p156) target = $region76
              $region73: #{custom-call.4} parent=68 // loop_body
                %v162 = vld [vmem:[%s160] sm:%s153]
                %163 = vst [vmem:[%s161] sm:%s153] %v162
              $region74: #{custom-call.4} parent=68 // loop_footer
                %s159 = sadd.s32 1, %s155
              $region75: #{custom-call.4} parent=68 // loop_footer_branch
                %154 = sbr.rel target = $region71
              $region76: #{custom-call.4} parent=68 // loop_exit
                _
            $region69: #{custom-call.4} parent=53 // pred_fallthru
              _
          $region54: #{custom-call.4} parent=49 // pred_fallthru
            _
          // Predicated region
          $region55: #{custom-call.4} parent=49 // pred_check
            _
          $region56: #{custom-call.4} parent=49 // pred_check_branch
            %137 = sbr.rel (0) target = $region58
          $region57: #{custom-call.4} parent=49 // pred_region
            %s139 = ssub.s32 16, 1
            loop: start=0, step=1, limit=1
            $region59: #{custom-call.4} parent=57 // loop_pre_header
              _
            $region60: #{custom-call.4} parent=57 // loop_header
              %s141 = sphi 0, %s145
              %p142 = scmp.ge.s32.totalorder %s141, 1
              %s146 = sphi %s131, %s131
              %s147 = sphi %s129, %s129
            $region61: #{custom-call.4} parent=57 // loop_header_branch
              %144 = sbr.rel (%p142) target = $region65
            $region62: #{custom-call.4} parent=57 // loop_body
              %v148 = vld [vmem:[%s146] sm:%s139]
              %149 = vst [vmem:[%s147] sm:%s139] %v148
            $region63: #{custom-call.4} parent=57 // loop_footer
              %s145 = sadd.s32 1, %s141
            $region64: #{custom-call.4} parent=57 // loop_footer_branch
              %140 = sbr.rel target = $region60
            $region65: #{custom-call.4} parent=57 // loop_exit
              _
          $region58: #{custom-call.4} parent=49 // pred_fallthru
            _
        $region50: #{custom-call.4} parent=15 // pred_fallthru
          _
        %164 = vnop
        %s165 = sand.u32 %s12, 1
        %s166 = sand.u32 %s12, 1
        %s167 = smul.addr %s166, 4
        %s168 = scalar_lea.vmem [#allocation5], %s167
        %s169 = smul.addr %s12, 4
        %s170 = scalar_lea.vmem %s2, %s169
        // Predicated region
        $region77: #{custom-call.4} parent=15 // pred_check
          _
        $region78: #{custom-call.4} parent=15 // pred_check_branch
          %172 = sbr.rel (0) target = $region80
        $region79: #{custom-call.4} parent=15 // pred_region
          // Predicated region
          $region81: #{custom-call.4} parent=79 // pred_check
            _
          $region82: #{custom-call.4} parent=79 // pred_check_branch
            %174 = sbr.rel target = $region84
          $region83: #{custom-call.4} parent=79 // pred_region
            // Predicated region
            $region96: #{custom-call.4} parent=83 // pred_check
              _
            $region97: #{custom-call.4} parent=83 // pred_check_branch
              %190 = sbr.rel (0) target = $region99
            $region98: #{custom-call.4} parent=83 // pred_region
              %s192 = ssub.s32 16, 1
              loop: start=0, step=1, limit=1
              $region100: #{custom-call.4} parent=98 // loop_pre_header
                _
              $region101: #{custom-call.4} parent=98 // loop_header
                %s194 = sphi 0, %s198
                %p195 = scmp.ge.s32.totalorder %s194, 1
                %s199 = sphi %s170, %s170
                %s200 = sphi %s168, %s168
              $region102: #{custom-call.4} parent=98 // loop_header_branch
                %197 = sbr.rel (%p195) target = $region106
              $region103: #{custom-call.4} parent=98 // loop_body
                %v201 = vld [vmem:[%s199] sm:%s192]
                %202 = vst [vmem:[%s200] sm:%s192] %v201
              $region104: #{custom-call.4} parent=98 // loop_footer
                %s198 = sadd.s32 1, %s194
              $region105: #{custom-call.4} parent=98 // loop_footer_branch
                %193 = sbr.rel target = $region101
              $region106: #{custom-call.4} parent=98 // loop_exit
                _
            $region99: #{custom-call.4} parent=83 // pred_fallthru
              _
          $region84: #{custom-call.4} parent=79 // pred_fallthru
            _
          // Predicated region
          $region85: #{custom-call.4} parent=79 // pred_check
            _
          $region86: #{custom-call.4} parent=79 // pred_check_branch
            %176 = sbr.rel (0) target = $region88
          $region87: #{custom-call.4} parent=79 // pred_region
            %s178 = ssub.s32 16, 1
            loop: start=0, step=1, limit=1
            $region89: #{custom-call.4} parent=87 // loop_pre_header
              _
            $region90: #{custom-call.4} parent=87 // loop_header
              %s180 = sphi 0, %s184
              %p181 = scmp.ge.s32.totalorder %s180, 1
              %s185 = sphi %s170, %s170
              %s186 = sphi %s168, %s168
            $region91: #{custom-call.4} parent=87 // loop_header_branch
              %183 = sbr.rel (%p181) target = $region95
            $region92: #{custom-call.4} parent=87 // loop_body
              %v187 = vld [vmem:[%s185] sm:%s178]
              %188 = vst [vmem:[%s186] sm:%s178] %v187
            $region93: #{custom-call.4} parent=87 // loop_footer
              %s184 = sadd.s32 1, %s180
            $region94: #{custom-call.4} parent=87 // loop_footer_branch
              %179 = sbr.rel target = $region90
            $region95: #{custom-call.4} parent=87 // loop_exit
              _
          $region88: #{custom-call.4} parent=79 // pred_fallthru
            _
        $region80: #{custom-call.4} parent=15 // pred_fallthru
          _
        %203 = vnop
        %s204 = sand.u32 %s12, 1
        %s205 = sand.u32 %s12, 1
        %s206 = smul.addr %s205, 4
        %s207 = scalar_lea.vmem [#allocation7], %s206
        %s208 = smul.addr %s12, 4
        %s209 = scalar_lea.vmem %s3, %s208
        // Predicated region
        $region107: #{custom-call.4} parent=15 // pred_check
          _
        $region108: #{custom-call.4} parent=15 // pred_check_branch
          %211 = sbr.rel (0) target = $region110
        $region109: #{custom-call.4} parent=15 // pred_region
          // Predicated region
          $region111: #{custom-call.4} parent=109 // pred_check
            _
          $region112: #{custom-call.4} parent=109 // pred_check_branch
            %213 = sbr.rel target = $region114
          $region113: #{custom-call.4} parent=109 // pred_region
            // Predicated region
            $region126: #{custom-call.4} parent=113 // pred_check
              _
            $region127: #{custom-call.4} parent=113 // pred_check_branch
              %229 = sbr.rel (0) target = $region129
            $region128: #{custom-call.4} parent=113 // pred_region
              %s231 = ssub.s32 16, 1
              loop: start=0, step=1, limit=1
              $region130: #{custom-call.4} parent=128 // loop_pre_header
                _
              $region131: #{custom-call.4} parent=128 // loop_header
                %s233 = sphi 0, %s237
                %p234 = scmp.ge.s32.totalorder %s233, 1
                %s238 = sphi %s209, %s209
                %s239 = sphi %s207, %s207
              $region132: #{custom-call.4} parent=128 // loop_header_branch
                %236 = sbr.rel (%p234) target = $region136
              $region133: #{custom-call.4} parent=128 // loop_body
                %v240 = vld [vmem:[%s238] sm:%s231]
                %241 = vst [vmem:[%s239] sm:%s231] %v240
              $region134: #{custom-call.4} parent=128 // loop_footer
                %s237 = sadd.s32 1, %s233
              $region135: #{custom-call.4} parent=128 // loop_footer_branch
                %232 = sbr.rel target = $region131
              $region136: #{custom-call.4} parent=128 // loop_exit
                _
            $region129: #{custom-call.4} parent=113 // pred_fallthru
              _
          $region114: #{custom-call.4} parent=109 // pred_fallthru
            _
          // Predicated region
          $region115: #{custom-call.4} parent=109 // pred_check
            _
          $region116: #{custom-call.4} parent=109 // pred_check_branch
            %215 = sbr.rel (0) target = $region118
          $region117: #{custom-call.4} parent=109 // pred_region
            %s217 = ssub.s32 16, 1
            loop: start=0, step=1, limit=1
            $region119: #{custom-call.4} parent=117 // loop_pre_header
              _
            $region120: #{custom-call.4} parent=117 // loop_header
              %s219 = sphi 0, %s223
              %p220 = scmp.ge.s32.totalorder %s219, 1
              %s224 = sphi %s209, %s209
              %s225 = sphi %s207, %s207
            $region121: #{custom-call.4} parent=117 // loop_header_branch
              %222 = sbr.rel (%p220) target = $region125
            $region122: #{custom-call.4} parent=117 // loop_body
              %v226 = vld [vmem:[%s224] sm:%s217]
              %227 = vst [vmem:[%s225] sm:%s217] %v226
            $region123: #{custom-call.4} parent=117 // loop_footer
              %s223 = sadd.s32 1, %s219
            $region124: #{custom-call.4} parent=117 // loop_footer_branch
              %218 = sbr.rel target = $region120
            $region125: #{custom-call.4} parent=117 // loop_exit
              _
          $region118: #{custom-call.4} parent=109 // pred_fallthru
            _
        $region110: #{custom-call.4} parent=15 // pred_fallthru
          _
        %242 = vnop
      $region16: #{custom-call.4} parent=5 // pred_fallthru
        _
      %p243 = scmp.le.s32.totalorder 1, %s12
      %p244 = scmp.lt.s32.totalorder %s12, 3
      %p245 = pnand %p243, %p244
      %p246 = pneg %p245
      // Predicated region
      $region137: #{custom-call.4} parent=5 // pred_check
        _
      $region138: #{custom-call.4} parent=5 // pred_check_branch
        %248 = sbr.rel (%p245) target = $region140
      $region139: #{custom-call.4} parent=5 // pred_region
        #allocation20 [shape = 'f32[4,4]{1,0}', space=vmem, size = 0x1000, scoped, tag = 'a top-left matrix']
        #allocation21 [shape = 'f32[4,4]{1,0}', space=vmem, size = 0x1000, scoped, tag = 'a top-right matrix']
        #allocation22 [shape = 'f32[4,4]{1,0}', space=vmem, size = 0x1000, scoped, tag = 'a bottom-left matrix']
        #allocation23 [shape = 'f32[4,4]{1,0}', space=vmem, size = 0x1000, scoped, tag = 'a bottom-right matrix']
        %s249 = ssub.s32 %s12, 1
        %s250 = sand.u32 %s17, 1
        %s251 = sand.u32 %s17, 1
        %s252 = smul.addr %s251, 4
        %s253 = scalar_lea.vmem [#allocation1], %s252
        %s254 = sand.u32 %s17, 1
        %s255 = sand.u32 %s17, 1
        %s256 = smul.addr %s255, 4
        %s257 = scalar_lea.vmem [#allocation3], %s256
        %s258 = sand.u32 %s17, 1
        %s259 = sand.u32 %s17, 1
        %s260 = smul.addr %s259, 4
        %s261 = scalar_lea.vmem [#allocation5], %s260
        %s262 = sand.u32 %s17, 1
        %s263 = sand.u32 %s17, 1
        %s264 = smul.addr %s263, 4
        %s265 = scalar_lea.vmem [#allocation7], %s264
        %s266 = sand.u32 %s17, 1
        %s267 = sand.u32 %s17, 1
        %s268 = smul.addr %s267, 4
        %s269 = scalar_lea.vmem [#allocation1], %s268
        %s270 = sand.u32 %s17, 1
        %s271 = sand.u32 %s17, 1
        %s272 = smul.addr %s271, 4
        %s273 = scalar_lea.vmem [#allocation3], %s272
        %s274 = sand.u32 %s17, 1
        %s275 = sand.u32 %s17, 1
        %s276 = smul.addr %s275, 4
        %s277 = scalar_lea.vmem [#allocation5], %s276
        %s278 = sand.u32 %s17, 1
        %s279 = sand.u32 %s17, 1
        %s280 = smul.addr %s279, 4
        %s281 = scalar_lea.vmem [#allocation7], %s280
        %p282 = pneg %p40
        %p283 = pneg %p37
        %s284 = sand.u32 %s27, 1
        %s285 = sand.u32 %s27, 1
        %s286 = smul.addr %s285, 2
        %s287 = scalar_lea.vmem [#allocation9], %s286
        %p288 = pneg %p68
        %p289 = pneg %p65
        %s290 = sand.u32 %s55, 1
        %s291 = sand.u32 %s55, 1
        %s292 = smul.addr %s291, 2
        %s293 = scalar_lea.vmem [#allocation11], %s292
        %s294 = sand.u32 %s17, 1
        %s295 = sand.u32 %s17, 1
        %s296 = smul.addr %s295, 4
        %s297 = scalar_lea.vmem [#allocation13], %s296
        %s298 = sand.u32 %s17, 1
        %s299 = sand.u32 %s17, 1
        %s300 = smul.addr %s299, 4
        %s301 = scalar_lea.vmem [#allocation15], %s300
        %s302 = sand.u32 %s17, 1
        %s303 = sand.u32 %s17, 1
        %s304 = smul.addr %s303, 4
        %s305 = scalar_lea.vmem [#allocation17], %s304
        %s306 = sand.u32 %s17, 1
        %s307 = sand.u32 %s17, 1
        %s308 = smul.addr %s307, 4
        %s309 = scalar_lea.vmem [#allocation19], %s308
        %s311 = sshll.u32 1, 4
        %s312 = ssub.s32 %s311, 1
        %v313 = vld [vmem:[%s269] sm:%s312]
        %314 = vst [vmem:[#allocation0] sm:%s312] %v313
        %s316 = sshll.u32 1, 4
        %s317 = ssub.s32 %s316, 1
        %v318 = vld [vmem:[%s273] sm:%s317]
        %319 = vst [vmem:[#allocation2] sm:%s317] %v318
        %s321 = sshll.u32 1, 4
        %s322 = ssub.s32 %s321, 1
        %v323 = vld [vmem:[%s277] sm:%s322]
        %324 = vst [vmem:[#allocation4] sm:%s322] %v323
        %s326 = sshll.u32 1, 4
        %s327 = ssub.s32 %s326, 1
        %v328 = vld [vmem:[%s281] sm:%s327]
        %329 = vst [vmem:[#allocation6] sm:%s327] %v328
        %s330 = sshrl.u32 %s17, 3
        %s331 = sshrl.u32 %s17, 3
        %s332 = smov [#allocation20]
        %v333 = vld [vmem:[#allocation0] sm:$0xff]
        %334 = vst [vmem:[%s332] sm:$0xff] %v333
        %s335 = smov [#allocation21]
        %v336 = vld [vmem:[#allocation2] sm:$0xff]
        %337 = vst [vmem:[%s335] sm:$0xff] %v336
        %s338 = smov [#allocation22]
        %v339 = vld [vmem:[#allocation4] sm:$0xff]
        %340 = vst [vmem:[%s338] sm:$0xff] %v339
        %s341 = smov [#allocation23]
        %v342 = vld [vmem:[#allocation6] sm:$0xff]
        %343 = vst [vmem:[%s341] sm:$0xff] %v342
        %344 = vst [vmem:[#allocation12] sm:$0xff] 0.0
        %345 = vst [vmem:[#allocation14] sm:$0xff] 0.0
        %346 = vst [vmem:[#allocation16] sm:$0xff] 0.0
        %347 = vst [vmem:[#allocation18] sm:$0xff] 0.0
        %s348 = smov [#allocation12]
        %v349 = vlaneseq
        %v350 = vand.u32 %v349, 127
        %v351 = vmov %v350
        %v352 = vlaneseq
        %v353 = vshrl.u32 %v352, 7
        %v354 = vmov %v353
        %v355 = vld [vmem:[%s348] sm:$0xf]
        %vm358 = vcmp.eq.s32.totalorder %v354, %v351
        %v359 = vsel %vm358, 1.0, %v355
        %360 = vst [vmem:[%s348] sm:$0xf] %v359
        %s361 = smov [#allocation18]
        %v362 = vlaneseq
        %v363 = vand.u32 %v362, 127
        %v364 = vmov %v363
        %v365 = vlaneseq
        %v366 = vshrl.u32 %v365, 7
        %v367 = vmov %v366
        %v368 = vld [vmem:[%s361] sm:$0xf]
        %vm371 = vcmp.eq.s32.totalorder %v367, %v364
        %v372 = vsel %vm371, 1.0, %v368
        %373 = vst [vmem:[%s361] sm:$0xf] %v372
        // While loop
        $region141: #{custom-call.4} parent=139 // loop_pre_header
          _
        $region142: #{custom-call.4} parent=139 // loop_header
          %s375 = sphi 0, %s917
          %v376 = vlaneseq
          %v377 = vand.u32 %v376, 127
          %v378 = vmov %v377
          %v379 = vlaneseq
          %v380 = vshrl.u32 %v379, 7
          %v381 = vmov %v380
          %s382 = smov [#allocation20]
          %v383 = vlaneseq
          %v384 = vand.u32 %v383, 127
          %vm385 = vcmp.ge.s32.totalorder %v384, 0
          %vm386 = vcmp.lt.s32.totalorder %v384, 4
          %vm387 = vmand %vm385, %vm386
          %v388 = vld [vmem:[%s382] sm:$0xf]
          %v389 = vsel %vm387, %v388, 0.0
          %v390 = vmul.f32 %v389, %v389
          %vm393 = vcmp.eq.s32.totalorder %v381, %v378
          %v394 = vsel %vm393, 0.0, %v390
          %v395 = vlaneseq
          %v396 = vand.u32 %v395, 127
          %v397 = vmov %v396
          %v398 = vlaneseq
          %v399 = vshrl.u32 %v398, 7
          %v400 = vmov %v399
          %s401 = smov [#allocation21]
          %v402 = vlaneseq
          %v403 = vand.u32 %v402, 127
          %vm404 = vcmp.ge.s32.totalorder %v403, 0
          %vm405 = vcmp.lt.s32.totalorder %v403, 4
          %vm406 = vmand %vm404, %vm405
          %v407 = vld [vmem:[%s401] sm:$0xf]
          %v408 = vsel %vm406, %v407, 0.0
          %v409 = vmul.f32 %v408, %v408
          %v410 = vadd.f32 %v394, %v409
          %v411 = vadd.f32 %v390, %v409
          %v412 = vlaneseq
          %v413 = vand.u32 %v412, 127
          %v414 = vmov %v413
          %v415 = vlaneseq
          %v416 = vshrl.u32 %v415, 7
          %v417 = vmov %v416
          %s418 = smov [#allocation22]
          %v419 = vlaneseq
          %v420 = vand.u32 %v419, 127
          %vm421 = vcmp.ge.s32.totalorder %v420, 0
          %vm422 = vcmp.lt.s32.totalorder %v420, 4
          %vm423 = vmand %vm421, %vm422
          %v424 = vld [vmem:[%s418] sm:$0xf]
          %v425 = vsel %vm423, %v424, 0.0
          %v426 = vmul.f32 %v425, %v425
          %v427 = vadd.f32 %v410, %v426
          %v428 = vadd.f32 %v411, %v426
          %v429 = vlaneseq
          %v430 = vand.u32 %v429, 127
          %v431 = vmov %v430
          %v432 = vlaneseq
          %v433 = vshrl.u32 %v432, 7
          %v434 = vmov %v433
          %s435 = smov [#allocation23]
          %v436 = vlaneseq
          %v437 = vand.u32 %v436, 127
          %vm438 = vcmp.ge.s32.totalorder %v437, 0
          %vm439 = vcmp.lt.s32.totalorder %v437, 4
          %vm440 = vmand %vm438, %vm439
          %v441 = vld [vmem:[%s435] sm:$0xf]
          %v442 = vsel %vm440, %v441, 0.0
          %v443 = vmul.f32 %v442, %v442
          %vm446 = vcmp.eq.s32.totalorder %v434, %v431
          %v447 = vsel %vm446, 0.0, %v443
          %v448 = vadd.f32 %v427, %v447
          %v449 = vadd.f32 %v428, %v443
          %450 = vadd.xlane.f32.xlu0 %v449
          %v451 = vpop.xlane.xlu0 %450
          %v452 = vrot.slane %v451, 4
          %v453 = vadd.f32 %v451, %v452
          %v454 = vrot.slane %v453, 2
          %v455 = vadd.f32 %v453, %v454
          %v456 = vrot.slane %v455, 1
          %v457 = vadd.f32 %v455, %v456
          %458 = vadd.xlane.f32.xlu0 %v448
          %v459 = vpop.xlane.xlu0 %458
          %v460 = vrot.slane %v459, 4
          %v461 = vadd.f32 %v459, %v460
          %v462 = vrot.slane %v461, 2
          %v463 = vadd.f32 %v461, %v462
          %v464 = vrot.slane %v463, 1
          %v465 = vadd.f32 %v463, %v464
          %s466 = vtos %v465
          %s467 = vtos %v457
          %s468 = smul.f32 1e-10, %s467
          %p469 = scmp.le.f32.partialorder %s466, %s468
          %p470 = scmp.ge.s32.totalorder %s375, 15
          %p471 = por %p469, %p470
        $region143: #{custom-call.4} parent=139 // loop_header_branch
          %919 = sbr.rel (%p471) target = $region147
        $region144: #{custom-call.4} parent=139 // loop_body
          loop: start=0, step=1, limit=7
          $region148: #{custom-call.4} parent=144 // loop_pre_header
            _
          $region149: #{custom-call.4} parent=144 // loop_header
            %s473 = sphi 0, %s477
            %p474 = scmp.ge.s32.totalorder %s473, 7
          $region150: #{custom-call.4} parent=144 // loop_header_branch
            %476 = sbr.rel (%p474) target = $region154
          $region151: #{custom-call.4} parent=144 // loop_body
            #allocation24 [shape = 'f32[1024]{0}', space=vmem, size = 0x1000, scoped, tag = 'a_tl_diag vmem']
            #allocation25 [shape = 'f32[1024]{0}', space=vmem, size = 0x1000, scoped, tag = 'a_tr_diag vmem']
            #allocation26 [shape = 'f32[1024]{0}', space=vmem, size = 0x1000, scoped, tag = 'a_br_diag vmem']
            #allocation27 [shape = 'f32[1024]{0}', space=vmem, size = 0x1000, scoped, tag = 'rt1 vmem']
            #allocation28 [shape = 'f32[1024]{0}', space=vmem, size = 0x1000, scoped, tag = 'rt2 vmem']
            #allocation29 [shape = 'f32[1024]{0}', space=vmem, size = 0x1000, scoped, tag = 'c vmem']
            #allocation30 [shape = 'f32[1024]{0}', space=vmem, size = 0x1000, scoped, tag = 's vmem']
            #allocation31 [shape = 'f32[4096]{0}', space=vmem, size = 0x4000, scoped, tag = 'c broadcast']
            #allocation32 [shape = 'f32[4096]{0}', space=vmem, size = 0x4000, scoped, tag = 's broadcast']
            %s478 = smov [#allocation20]
            %s479 = smov [#allocation24]
            %v480 = vlaneseq
            %v481 = vand.u32 %v480, 127
            %v482 = vmov %v481
            %v483 = vlaneseq
            %v484 = vshrl.u32 %v483, 7
            %v485 = vmov %v484
            %v486 = vld [vmem:[%s478] sm:$0xf]
            %vm489 = vcmp.eq.s32.totalorder %v485, %v482
            %v490 = vsel %vm489, %v486, 0.0
            %v491 = vrot.slane %v490, 4
            %v492 = vadd.f32 %v490, %v491
            %v493 = vrot.slane %v492, 2
            %v494 = vadd.f32 %v492, %v493
            %v495 = vrot.slane %v494, 1
            %v496 = vadd.f32 %v494, %v495
            %497 = vst [vmem:[%s479] sm:$0x1] %v496
            %s498 = smov [#allocation21]
            %s499 = smov [#allocation25]
            %v500 = vlaneseq
            %v501 = vand.u32 %v500, 127
            %v502 = vmov %v501
            %v503 = vlaneseq
            %v504 = vshrl.u32 %v503, 7
            %v505 = vmov %v504
            %v506 = vld [vmem:[%s498] sm:$0xf]
            %vm509 = vcmp.eq.s32.totalorder %v505, %v502
            %v510 = vsel %vm509, %v506, 0.0
            %v511 = vrot.slane %v510, 4
            %v512 = vadd.f32 %v510, %v511
            %v513 = vrot.slane %v512, 2
            %v514 = vadd.f32 %v512, %v513
            %v515 = vrot.slane %v514, 1
            %v516 = vadd.f32 %v514, %v515
            %517 = vst [vmem:[%s499] sm:$0x1] %v516
            %s518 = smov [#allocation23]
            %s519 = smov [#allocation26]
            %v520 = vlaneseq
            %v521 = vand.u32 %v520, 127
            %v522 = vmov %v521
            %v523 = vlaneseq
            %v524 = vshrl.u32 %v523, 7
            %v525 = vmov %v524
            %v526 = vld [vmem:[%s518] sm:$0xf]
            %vm529 = vcmp.eq.s32.totalorder %v525, %v522
            %v530 = vsel %vm529, %v526, 0.0
            %v531 = vrot.slane %v530, 4
            %v532 = vadd.f32 %v530, %v531
            %v533 = vrot.slane %v532, 2
            %v534 = vadd.f32 %v532, %v533
            %v535 = vrot.slane %v534, 1
            %v536 = vadd.f32 %v534, %v535
            %537 = vst [vmem:[%s519] sm:$0x1] %v536
            %s538 = smov [#allocation29]
            %s539 = smov [#allocation30]
            %s540 = smov [#allocation24]
            %v541 = vld [vmem:[%s540] sm:$0xff]
            %s542 = smov [#allocation25]
            %v543 = vld [vmem:[%s542] sm:$0xff]
            %s544 = smov [#allocation26]
            %v545 = vld [vmem:[%s544] sm:$0xff]
            %v546 = vsub.f32 %v545, %v541
            %v547 = vmul.f32 2.0, %v543
            %v548 = vrcp.pop %v547
            %v549 = vmul.f32 %v546, %v548
            %vm550 = vcmp.ge.f32.partialorder %v549, 0.0
            %v551 = vmul.f32 %v549, %v549
            %v552 = vadd.f32 1.0, %v551
            %v553 = vrsqrt.pop %v552
            %v554 = vmul.f32 %v552, %v553
            %vm555 = vcmp.eq.f32.partialorder %v552, inf
            %v556 = vsel %vm555, %v552, %v554
            %vm557 = vcmp.eq.f32.partialorder %v552, 0.0
            %v558 = vand.u32 %v552, 2147483648
            %v559 = vsel %vm557, %v558, %v556
            %v560 = vxor.u32 %v559, 2147483648
            %v561 = vsel %vm550, %v559, %v560
            %v562 = vadd.f32 %v549, %v561
            %v563 = vrcp.pop %v562
            %v564 = vand.u32 2147483647, %v541
            %v565 = vand.u32 2147483647, %v543
            %v566 = vand.u32 2147483647, %v545
            %v567 = vmin.f32 %v564, %v566
            %v568 = vmul.f32 1.1920929e-08, %v567
            %vm569 = vcmp.le.f32.partialorder %v565, %v568
            %v570 = vsel %vm569, 0.0, %v563
            %v571 = vmul.f32 %v570, %v570
            %v572 = vadd.f32 1.0, %v571
            %v573 = vrsqrt.pop %v572
            %v574 = vmul.f32 %v570, %v573
            %v575 = vmul.f32 %v570, %v543
            %v576 = vsub.f32 %v541, %v575
            %v577 = vmul.f32 %v570, %v543
            %v578 = vadd.f32 %v545, %v577
            %s579 = smov [#allocation27]
            %580 = vst [vmem:[%s579] sm:$0xff] %v576
            %s581 = smov [#allocation28]
            %582 = vst [vmem:[%s581] sm:$0xff] %v578
            %s583 = smov %s538
            %584 = vst [vmem:[%s583] sm:$0xff] %v573
            %s585 = smov %s539
            %586 = vst [vmem:[%s585] sm:$0xff] %v574
            %s587 = smov [#allocation29]
            %v588 = vld [vmem:[%s587] ss:$0 sm:$0xff]
            %v589 = vlaneseq
            %v590 = vand.u32 %v589, 127
            %v591 = vmov %v590
            %v592 = vlaneseq
            %v593 = vshrl.u32 %v592, 7
            %v594 = vmov %v593
            %vm596 = vcmp.eq.s32.totalorder %v594, %v591
            %v597 = vsel %vm596, %v588, 0.0
            %598 = vadd.xlane.f32.xlu0 %v597
            %v599 = vpop.xlane.xlu0 %598
            %s600 = smov [#allocation31]
            %601 = vst [vmem:[%s600] sm:$0xff] %v599
            %s602 = smov [#allocation30]
            %v603 = vld [vmem:[%s602] ss:$0 sm:$0xff]
            %v604 = vlaneseq
            %v605 = vand.u32 %v604, 127
            %v606 = vmov %v605
            %v607 = vlaneseq
            %v608 = vshrl.u32 %v607, 7
            %v609 = vmov %v608
            %vm611 = vcmp.eq.s32.totalorder %v609, %v606
            %v612 = vsel %vm611, %v603, 0.0
            %613 = vadd.xlane.f32.xlu0 %v612
            %v614 = vpop.xlane.xlu0 %613
            %s615 = smov [#allocation32]
            %616 = vst [vmem:[%s615] sm:$0xff] %v614
            %s617 = smov [#allocation31]
            %v618 = vld [vmem:[%s617] sm:$0xff]
            %s619 = smov [#allocation32]
            %v620 = vld [vmem:[%s619] sm:$0xff]
            %s621 = smov [#allocation20]
            %s622 = smov [#allocation21]
            %s623 = smov [#allocation22]
            %s624 = smov [#allocation23]
            %v625 = vld [vmem:[%s621] sm:$0xf]
            %v626 = vld [vmem:[%s622] sm:$0xf]
            %v627 = vld [vmem:[%s623] sm:$0xf]
            %v628 = vld [vmem:[%s624] sm:$0xf]
            %v629 = vmul.f32 %v618, %v625
            %v630 = vmul.f32 %v620, %v627
            %v631 = vsub.f32 %v629, %v630
            %v632 = vmul.f32 %v618, %v626
            %v633 = vmul.f32 %v620, %v628
            %v634 = vsub.f32 %v632, %v633
            %v635 = vmul.f32 %v620, %v625
            %v636 = vmul.f32 %v618, %v627
            %v637 = vadd.f32 %v635, %v636
            %v638 = vmul.f32 %v620, %v626
            %v639 = vmul.f32 %v618, %v628
            %v640 = vadd.f32 %v638, %v639
            %641 = vst [vmem:[%s621] sm:$0xf] %v631
            %642 = vst [vmem:[%s622] sm:$0xf] %v634
            %643 = vst [vmem:[%s623] sm:$0xf] %v637
            %644 = vst [vmem:[%s624] sm:$0xf] %v640
            %s645 = smov [#allocation29]
            %v646 = vld [vmem:[%s645] ss:$0 sm:$0xff]
            %s647 = smov [#allocation30]
            %v648 = vld [vmem:[%s647] ss:$0 sm:$0xff]
            %s649 = smov [#allocation20]
            %s650 = smov [#allocation21]
            %s651 = smov [#allocation22]
            %s652 = smov [#allocation23]
            %v653 = vld [vmem:[%s649] sm:$0xf]
            %v654 = vld [vmem:[%s650] sm:$0xf]
            %v655 = vld [vmem:[%s651] sm:$0xf]
            %v656 = vld [vmem:[%s652] sm:$0xf]
            %v657 = vmul.f32 %v646, %v653
            %v658 = vmul.f32 %v648, %v654
            %v659 = vsub.f32 %v657, %v658
            %v660 = vmul.f32 %v648, %v653
            %v661 = vmul.f32 %v646, %v654
            %v662 = vadd.f32 %v660, %v661
            %v663 = vmul.f32 %v646, %v655
            %v664 = vmul.f32 %v648, %v656
            %v665 = vsub.f32 %v663, %v664
            %v666 = vmul.f32 %v648, %v655
            %v667 = vmul.f32 %v646, %v656
            %v668 = vadd.f32 %v666, %v667
            %669 = vst [vmem:[%s649] sm:$0xf] %v659
            %670 = vst [vmem:[%s650] sm:$0xf] %v662
            %671 = vst [vmem:[%s651] sm:$0xf] %v665
            %672 = vst [vmem:[%s652] sm:$0xf] %v668
            %s673 = smov [#allocation20]
            %s674 = smov [#allocation27]
            %v675 = vlaneseq
            %v676 = vand.u32 %v675, 127
            %v677 = vmov %v676
            %v678 = vlaneseq
            %v679 = vshrl.u32 %v678, 7
            %v680 = vmov %v679
            %v681 = vld [vmem:[%s674] ss:$0 sm:$0xff]
            %v682 = vld [vmem:[%s673] sm:$0xf]
            %vm685 = vcmp.eq.s32.totalorder %v680, %v677
            %v686 = vsel %vm685, %v681, %v682
            %687 = vst [vmem:[%s673] sm:$0xf] %v686
            %s688 = smov [#allocation21]
            %v689 = vlaneseq
            %v690 = vand.u32 %v689, 127
            %v691 = vmov %v690
            %v692 = vlaneseq
            %v693 = vshrl.u32 %v692, 7
            %v694 = vmov %v693
            %v695 = vld [vmem:[%s688] sm:$0xf]
            %vm698 = vcmp.eq.s32.totalorder %v694, %v691
            %v699 = vsel %vm698, 0.0, %v695
            %700 = vst [vmem:[%s688] sm:$0xf] %v699
            %s701 = smov [#allocation22]
            %v702 = vlaneseq
            %v703 = vand.u32 %v702, 127
            %v704 = vmov %v703
            %v705 = vlaneseq
            %v706 = vshrl.u32 %v705, 7
            %v707 = vmov %v706
            %v708 = vld [vmem:[%s701] sm:$0xf]
            %vm711 = vcmp.eq.s32.totalorder %v707, %v704
            %v712 = vsel %vm711, 0.0, %v708
            %713 = vst [vmem:[%s701] sm:$0xf] %v712
            %s714 = smov [#allocation23]
            %s715 = smov [#allocation28]
            %v716 = vlaneseq
            %v717 = vand.u32 %v716, 127
            %v718 = vmov %v717
            %v719 = vlaneseq
            %v720 = vshrl.u32 %v719, 7
            %v721 = vmov %v720
            %v722 = vld [vmem:[%s715] ss:$0 sm:$0xff]
            %v723 = vld [vmem:[%s714] sm:$0xf]
            %vm726 = vcmp.eq.s32.totalorder %v721, %v718
            %v727 = vsel %vm726, %v722, %v723
            %728 = vst [vmem:[%s714] sm:$0xf] %v727
            %s729 = smov [#allocation20]
            %s730 = smov [#allocation21]
            %v731 = vld [vmem:[%s730] sm:$0xf]
            %732 = vrot.lane.b32.xlu0 %v731, 1
            %v733 = vpop.permute.xlu0 %732
            %v734 = vld [vmem:[%s729] sm:$0xf]
            %v735 = vld [vmem:[%s729] sm:$0xf]
            %736 = vrot.lane.b32.xlu0 %v735, 1
            %v737 = vpop.permute.xlu0 %736
            %v738 = vlaneseq
            %v739 = vand.u32 %v738, 127
            %vm740 = vcmp.eq.s32.totalorder %v739, 0
            %v741 = vsel %vm740, %v735, %v737
            %v742 = vlaneseq
            %v743 = vand.u32 %v742, 127
            %vm744 = vcmp.eq.s32.totalorder %v743, 1
            %v745 = vsel %vm744, %v733, %v741
            %v746 = vlaneseq
            %v747 = vand.u32 %v746, 127
            %vm748 = vcmp.ge.s32.totalorder %v747, 0
            %vm749 = vcmp.lt.s32.totalorder %v747, 4
            %vm750 = vmand %vm748, %vm749
            %v751 = vsel %vm750, %v745, 0.0
            %v752 = vld [vmem:[%s730] sm:$0xf]
            %753 = vrot.lane.b32.xlu0 %v752, 127
            %v754 = vpop.permute.xlu0 %753
            %v755 = vlaneseq
            %v756 = vand.u32 %v755, 127
            %vm757 = vcmp.eq.s32.totalorder %v756, 3
            %v758 = vsel %vm757, %v734, %v754
            %759 = vst [vmem:[%s729] sm:$0xf] %v751
            %760 = vst [vmem:[%s730] sm:$0xf] %v758
            %s761 = smov [#allocation22]
            %s762 = smov [#allocation23]
            %v763 = vld [vmem:[%s762] sm:$0xf]
            %764 = vrot.lane.b32.xlu0 %v763, 1
            %v765 = vpop.permute.xlu0 %764
            %v766 = vld [vmem:[%s761] sm:$0xf]
            %v767 = vld [vmem:[%s761] sm:$0xf]
            %768 = vrot.lane.b32.xlu0 %v767, 1
            %v769 = vpop.permute.xlu0 %768
            %v770 = vlaneseq
            %v771 = vand.u32 %v770, 127
            %vm772 = vcmp.eq.s32.totalorder %v771, 0
            %v773 = vsel %vm772, %v767, %v769
            %v774 = vlaneseq
            %v775 = vand.u32 %v774, 127
            %vm776 = vcmp.eq.s32.totalorder %v775, 1
            %v777 = vsel %vm776, %v765, %v773
            %v778 = vlaneseq
            %v779 = vand.u32 %v778, 127
            %vm780 = vcmp.ge.s32.totalorder %v779, 0
            %vm781 = vcmp.lt.s32.totalorder %v779, 4
            %vm782 = vmand %vm780, %vm781
            %v783 = vsel %vm782, %v777, 0.0
            %v784 = vld [vmem:[%s762] sm:$0xf]
            %785 = vrot.lane.b32.xlu0 %v784, 127
            %v786 = vpop.permute.xlu0 %785
            %v787 = vlaneseq
            %v788 = vand.u32 %v787, 127
            %vm789 = vcmp.eq.s32.totalorder %v788, 3
            %v790 = vsel %vm789, %v766, %v786
            %791 = vst [vmem:[%s761] sm:$0xf] %v783
            %792 = vst [vmem:[%s762] sm:$0xf] %v790
            %s793 = smov [#allocation20]
            %s794 = smov [#allocation22]
            %v795 = vld [vmem:[%s793] ss:$0 sm:$0xff]
            %s797 = scalar_lea.vmem %s793, 4294967295
            %v798 = vld [vmem:[%s797] sm:$0xe]
            %v799 = vlaneseq
            %v800 = vshrl.u32 %v799, 7
            %vm801 = vcmp.eq.s32.totalorder %v800, 0
            %v802 = vsel %vm801, %v795, %v798
            %s803 = scalar_lea.vmem %s793, 3
            %v804 = vld [vmem:[%s803] ss:$0 sm:$0xff]
            %805 = vst [vmem:[%s793] sm:$0xf] %v802
            %v806 = vld [vmem:[%s794] ss:$0 sm:$0xff]
            %s807 = scalar_lea.vmem %s793, 1
            %808 = vst [vmem:[%s807] sm:$0x1] %v806
            %s809 = scalar_lea.vmem %s794, 1
            %v810 = vld [vmem:[%s809] sm:$0x7]
            %v811 = vlaneseq
            %v812 = vshrl.u32 %v811, 7
            %vm813 = vcmp.eq.s32.totalorder %v812, 3
            %v814 = vsel %vm813, %v804, %v810
            %v815 = vld [vmem:[%s794] ss:$0 sm:$0xff]
            %816 = vst [vmem:[%s794] sm:$0xf] %v814
            %s817 = smov [#allocation21]
            %s818 = smov [#allocation23]
            %v819 = vld [vmem:[%s817] ss:$0 sm:$0xff]
            %s821 = scalar_lea.vmem %s817, 4294967295
            %v822 = vld [vmem:[%s821] sm:$0xe]
            %v823 = vlaneseq
            %v824 = vshrl.u32 %v823, 7
            %vm825 = vcmp.eq.s32.totalorder %v824, 0
            %v826 = vsel %vm825, %v819, %v822
            %s827 = scalar_lea.vmem %s817, 3
            %v828 = vld [vmem:[%s827] ss:$0 sm:$0xff]
            %829 = vst [vmem:[%s817] sm:$0xf] %v826
            %v830 = vld [vmem:[%s818] ss:$0 sm:$0xff]
            %s831 = scalar_lea.vmem %s817, 1
            %832 = vst [vmem:[%s831] sm:$0x1] %v830
            %s833 = scalar_lea.vmem %s818, 1
            %v834 = vld [vmem:[%s833] sm:$0x7]
            %v835 = vlaneseq
            %v836 = vshrl.u32 %v835, 7
            %vm837 = vcmp.eq.s32.totalorder %v836, 3
            %v838 = vsel %vm837, %v828, %v834
            %v839 = vld [vmem:[%s818] ss:$0 sm:$0xff]
            %840 = vst [vmem:[%s818] sm:$0xf] %v838
            %s841 = smov [#allocation31]
            %v842 = vld [vmem:[%s841] sm:$0xff]
            %s843 = smov [#allocation32]
            %v844 = vld [vmem:[%s843] sm:$0xff]
            %s845 = smov [#allocation12]
            %s846 = smov [#allocation14]
            %s847 = smov [#allocation16]
            %s848 = smov [#allocation18]
            %v849 = vld [vmem:[%s845] sm:$0xf]
            %v850 = vld [vmem:[%s846] sm:$0xf]
            %v851 = vld [vmem:[%s847] sm:$0xf]
            %v852 = vld [vmem:[%s848] sm:$0xf]
            %v853 = vmul.f32 %v842, %v849
            %v854 = vmul.f32 %v844, %v851
            %v855 = vsub.f32 %v853, %v854
            %v856 = vmul.f32 %v842, %v850
            %v857 = vmul.f32 %v844, %v852
            %v858 = vsub.f32 %v856, %v857
            %v859 = vmul.f32 %v844, %v849
            %v860 = vmul.f32 %v842, %v851
            %v861 = vadd.f32 %v859, %v860
            %v862 = vmul.f32 %v844, %v850
            %v863 = vmul.f32 %v842, %v852
            %v864 = vadd.f32 %v862, %v863
            %865 = vst [vmem:[%s845] sm:$0xf] %v855
            %866 = vst [vmem:[%s846] sm:$0xf] %v858
            %867 = vst [vmem:[%s847] sm:$0xf] %v861
            %868 = vst [vmem:[%s848] sm:$0xf] %v864
            %s869 = smov [#allocation12]
            %s870 = smov [#allocation16]
            %v871 = vld [vmem:[%s869] ss:$0 sm:$0xff]
            %s873 = scalar_lea.vmem %s869, 4294967295
            %v874 = vld [vmem:[%s873] sm:$0xe]
            %v875 = vlaneseq
            %v876 = vshrl.u32 %v875, 7
            %vm877 = vcmp.eq.s32.totalorder %v876, 0
            %v878 = vsel %vm877, %v871, %v874
            %s879 = scalar_lea.vmem %s869, 3
            %v880 = vld [vmem:[%s879] ss:$0 sm:$0xff]
            %881 = vst [vmem:[%s869] sm:$0xf] %v878
            %v882 = vld [vmem:[%s870] ss:$0 sm:$0xff]
            %s883 = scalar_lea.vmem %s869, 1
            %884 = vst [vmem:[%s883] sm:$0x1] %v882
            %s885 = scalar_lea.vmem %s870, 1
            %v886 = vld [vmem:[%s885] sm:$0x7]
            %v887 = vlaneseq
            %v888 = vshrl.u32 %v887, 7
            %vm889 = vcmp.eq.s32.totalorder %v888, 3
            %v890 = vsel %vm889, %v880, %v886
            %v891 = vld [vmem:[%s870] ss:$0 sm:$0xff]
            %892 = vst [vmem:[%s870] sm:$0xf] %v890
            %s893 = smov [#allocation14]
            %s894 = smov [#allocation18]
            %v895 = vld [vmem:[%s893] ss:$0 sm:$0xff]
            %s897 = scalar_lea.vmem %s893, 4294967295
            %v898 = vld [vmem:[%s897] sm:$0xe]
            %v899 = vlaneseq
            %v900 = vshrl.u32 %v899, 7
            %vm901 = vcmp.eq.s32.totalorder %v900, 0
            %v902 = vsel %vm901, %v895, %v898
            %s903 = scalar_lea.vmem %s893, 3
            %v904 = vld [vmem:[%s903] ss:$0 sm:$0xff]
            %905 = vst [vmem:[%s893] sm:$0xf] %v902
            %v906 = vld [vmem:[%s894] ss:$0 sm:$0xff]
            %s907 = scalar_lea.vmem %s893, 1
            %908 = vst [vmem:[%s907] sm:$0x1] %v906
            %s909 = scalar_lea.vmem %s894, 1
            %v910 = vld [vmem:[%s909] sm:$0x7]
            %v911 = vlaneseq
            %v912 = vshrl.u32 %v911, 7
            %vm913 = vcmp.eq.s32.totalorder %v912, 3
            %v914 = vsel %vm913, %v904, %v910
            %v915 = vld [vmem:[%s894] ss:$0 sm:$0xff]
            %916 = vst [vmem:[%s894] sm:$0xf] %v914
          $region152: #{custom-call.4} parent=144 // loop_footer
            %s477 = sadd.s32 1, %s473
          $region153: #{custom-call.4} parent=144 // loop_footer_branch
            %472 = sbr.rel target = $region149
          $region154: #{custom-call.4} parent=144 // loop_exit
            _
          %s917 = sadd.s32 %s375, 1
        $region145: #{custom-call.4} parent=139 // loop_footer
          _
        $region146: #{custom-call.4} parent=139 // loop_footer_branch
          %374 = sbr.rel target = $region142
        $region147: #{custom-call.4} parent=139 // loop_exit
          _
        %s920 = sand.u32 %s17, 7
        %s921 = scalar_lea.vmem [#allocation8], %s920
        %s922 = sand.u32 %s17, 7
        %s923 = scalar_lea.vmem [#allocation10], %s922
        %s924 = smov [#allocation20]
        %s925 = smov %s921
        %v926 = vlaneseq
        %v927 = vand.u32 %v926, 127
        %v928 = vmov %v927
        %v929 = vlaneseq
        %v930 = vshrl.u32 %v929, 7
        %v931 = vmov %v930
        %v932 = vld [vmem:[%s924] sm:$0xf]
        %vm935 = vcmp.eq.s32.totalorder %v931, %v928
        %v936 = vsel %vm935, %v932, 0.0
        %v937 = vrot.slane %v936, 4
        %v938 = vadd.f32 %v936, %v937
        %v939 = vrot.slane %v938, 2
        %v940 = vadd.f32 %v938, %v939
        %v941 = vrot.slane %v940, 1
        %v942 = vadd.f32 %v940, %v941
        %943 = vst [vmem:[%s925] sm:$0x1] %v942
        %s944 = smov [#allocation23]
        %s945 = smov %s923
        %v946 = vlaneseq
        %v947 = vand.u32 %v946, 127
        %v948 = vmov %v947
        %v949 = vlaneseq
        %v950 = vshrl.u32 %v949, 7
        %v951 = vmov %v950
        %v952 = vld [vmem:[%s944] sm:$0xf]
        %vm955 = vcmp.eq.s32.totalorder %v951, %v948
        %v956 = vsel %vm955, %v952, 0.0
        %v957 = vrot.slane %v956, 4
        %v958 = vadd.f32 %v956, %v957
        %v959 = vrot.slane %v958, 2
        %v960 = vadd.f32 %v958, %v959
        %v961 = vrot.slane %v960, 1
        %v962 = vadd.f32 %v960, %v961
        %963 = vst [vmem:[%s945] sm:$0x1] %v962
        %s965 = sshll.u32 1, 2
        %s966 = ssub.s32 %s965, 1
        %v968 = vld [vmem:[#allocation8] sm:%s966]
        %s969 = sshll.u32 1, 2
        %s970 = ssub.s32 %s969, 1
        %971 = vst [vmem:[%s287] sm:%s970] %v968
        %s973 = sshll.u32 1, 2
        %s974 = ssub.s32 %s973, 1
        %v976 = vld [vmem:[#allocation10] sm:%s974]
        %s977 = sshll.u32 1, 2
        %s978 = ssub.s32 %s977, 1
        %979 = vst [vmem:[%s293] sm:%s978] %v976
        %s981 = sshll.u32 1, 4
        %s982 = ssub.s32 %s981, 1
        %v984 = vld [vmem:[#allocation12] sm:%s982]
        %s985 = sshll.u32 1, 4
        %s986 = ssub.s32 %s985, 1
        %987 = vst [vmem:[%s297] sm:%s986] %v984
        %s989 = sshll.u32 1, 4
        %s990 = ssub.s32 %s989, 1
        %v992 = vld [vmem:[#allocation14] sm:%s990]
        %s993 = sshll.u32 1, 4
        %s994 = ssub.s32 %s993, 1
        %995 = vst [vmem:[%s301] sm:%s994] %v992
        %s997 = sshll.u32 1, 4
        %s998 = ssub.s32 %s997, 1
        %v1000 = vld [vmem:[#allocation16] sm:%s998]
        %s1001 = sshll.u32 1, 4
        %s1002 = ssub.s32 %s1001, 1
        %1003 = vst [vmem:[%s305] sm:%s1002] %v1000
        %s1005 = sshll.u32 1, 4
        %s1006 = ssub.s32 %s1005, 1
        %v1008 = vld [vmem:[#allocation18] sm:%s1006]
        %s1009 = sshll.u32 1, 4
        %s1010 = ssub.s32 %s1009, 1
        %1011 = vst [vmem:[%s309] sm:%s1010] %v1008
        %s1012 = sand.u32 %s27, 1
        %s1013 = sand.u32 %s27, 1
        %s1014 = smul.addr %s1013, 2
        %s1015 = scalar_lea.vmem [#allocation9], %s1014
        %s1016 = sand.u32 %s55, 1
        %s1017 = sand.u32 %s55, 1
        %s1018 = smul.addr %s1017, 2
        %s1019 = scalar_lea.vmem [#allocation11], %s1018
        %s1020 = sand.u32 %s17, 1
        %s1021 = sand.u32 %s17, 1
        %s1022 = smul.addr %s1021, 4
        %s1023 = scalar_lea.vmem [#allocation13], %s1022
        %s1024 = sand.u32 %s17, 1
        %s1025 = sand.u32 %s17, 1
        %s1026 = smul.addr %s1025, 4
        %s1027 = scalar_lea.vmem [#allocation15], %s1026
        %s1028 = sand.u32 %s17, 1
        %s1029 = sand.u32 %s17, 1
        %s1030 = smul.addr %s1029, 4
        %s1031 = scalar_lea.vmem [#allocation17], %s1030
        %s1032 = sand.u32 %s17, 1
        %s1033 = sand.u32 %s17, 1
        %s1034 = smul.addr %s1033, 4
        %s1035 = scalar_lea.vmem [#allocation19], %s1034
        // Predicated region
        $region155: #{custom-call.4} parent=139 // pred_check
          %p1036 = pneg %p37
        $region156: #{custom-call.4} parent=139 // pred_check_branch
          %1038 = sbr.rel (%p1036) target = $region158
        $region157: #{custom-call.4} parent=139 // pred_region
          %s1039 = sshrl.u32 %s17, 3
          %s1040 = smul.addr %s1039, 2
          %s1041 = scalar_lea.vmem %s4, %s1040
          // Predicated region
          $region159: #{custom-call.4} parent=157 // pred_check
            _
          $region160: #{custom-call.4} parent=157 // pred_check_branch
            %1043 = sbr.rel (0) target = $region162
          $region161: #{custom-call.4} parent=157 // pred_region
            // Predicated region
            $region163: #{custom-call.4} parent=161 // pred_check
              _
            $region164: #{custom-call.4} parent=161 // pred_check_branch
              %1045 = sbr.rel target = $region166
            $region165: #{custom-call.4} parent=161 // pred_region
              // Predicated region
              $region178: #{custom-call.4} parent=165 // pred_check
                _
              $region179: #{custom-call.4} parent=165 // pred_check_branch
                %1061 = sbr.rel (0) target = $region181
              $region180: #{custom-call.4} parent=165 // pred_region
                %s1063 = ssub.s32 4, 1
                loop: start=0, step=1, limit=1
                $region182: #{custom-call.4} parent=180 // loop_pre_header
                  _
                $region183: #{custom-call.4} parent=180 // loop_header
                  %s1065 = sphi 0, %s1069
                  %p1066 = scmp.ge.s32.totalorder %s1065, 1
                  %s1070 = sphi %s1015, %s1015
                  %s1071 = sphi %s1041, %s1041
                $region184: #{custom-call.4} parent=180 // loop_header_branch
                  %1068 = sbr.rel (%p1066) target = $region188
                $region185: #{custom-call.4} parent=180 // loop_body
                  %v1072 = vld [vmem:[%s1070] sm:%s1063]
                  %1073 = vst [vmem:[%s1071] sm:%s1063] %v1072
                $region186: #{custom-call.4} parent=180 // loop_footer
                  %s1069 = sadd.s32 1, %s1065
                $region187: #{custom-call.4} parent=180 // loop_footer_branch
                  %1064 = sbr.rel target = $region183
                $region188: #{custom-call.4} parent=180 // loop_exit
                  _
              $region181: #{custom-call.4} parent=165 // pred_fallthru
                _
            $region166: #{custom-call.4} parent=161 // pred_fallthru
              _
            // Predicated region
            $region167: #{custom-call.4} parent=161 // pred_check
              _
            $region168: #{custom-call.4} parent=161 // pred_check_branch
              %1047 = sbr.rel (0) target = $region170
            $region169: #{custom-call.4} parent=161 // pred_region
              %s1049 = ssub.s32 4, 1
              loop: start=0, step=1, limit=1
              $region171: #{custom-call.4} parent=169 // loop_pre_header
                _
              $region172: #{custom-call.4} parent=169 // loop_header
                %s1051 = sphi 0, %s1055
                %p1052 = scmp.ge.s32.totalorder %s1051, 1
                %s1056 = sphi %s1015, %s1015
                %s1057 = sphi %s1041, %s1041
              $region173: #{custom-call.4} parent=169 // loop_header_branch
                %1054 = sbr.rel (%p1052) target = $region177
              $region174: #{custom-call.4} parent=169 // loop_body
                %v1058 = vld [vmem:[%s1056] sm:%s1049]
                %1059 = vst [vmem:[%s1057] sm:%s1049] %v1058
              $region175: #{custom-call.4} parent=169 // loop_footer
                %s1055 = sadd.s32 1, %s1051
              $region176: #{custom-call.4} parent=169 // loop_footer_branch
                %1050 = sbr.rel target = $region172
              $region177: #{custom-call.4} parent=169 // loop_exit
                _
            $region170: #{custom-call.4} parent=161 // pred_fallthru
              _
          $region162: #{custom-call.4} parent=157 // pred_fallthru
            _
          %1074 = vnop
        $region158: #{custom-call.4} parent=139 // pred_fallthru
          _
        // Predicated region
        $region189: #{custom-call.4} parent=139 // pred_check
          %p1075 = pneg %p65
        $region190: #{custom-call.4} parent=139 // pred_check_branch
          %1077 = sbr.rel (%p1075) target = $region192
        $region191: #{custom-call.4} parent=139 // pred_region
          %s1078 = sshrl.u32 %s17, 3
          %s1079 = smul.addr %s1078, 2
          %s1080 = scalar_lea.vmem %s5, %s1079
          // Predicated region
          $region193: #{custom-call.4} parent=191 // pred_check
            _
          $region194: #{custom-call.4} parent=191 // pred_check_branch
            %1082 = sbr.rel (0) target = $region196
          $region195: #{custom-call.4} parent=191 // pred_region
            // Predicated region
            $region197: #{custom-call.4} parent=195 // pred_check
              _
            $region198: #{custom-call.4} parent=195 // pred_check_branch
              %1084 = sbr.rel target = $region200
            $region199: #{custom-call.4} parent=195 // pred_region
              // Predicated region
              $region212: #{custom-call.4} parent=199 // pred_check
                _
              $region213: #{custom-call.4} parent=199 // pred_check_branch
                %1100 = sbr.rel (0) target = $region215
              $region214: #{custom-call.4} parent=199 // pred_region
                %s1102 = ssub.s32 4, 1
                loop: start=0, step=1, limit=1
                $region216: #{custom-call.4} parent=214 // loop_pre_header
                  _
                $region217: #{custom-call.4} parent=214 // loop_header
                  %s1104 = sphi 0, %s1108
                  %p1105 = scmp.ge.s32.totalorder %s1104, 1
                  %s1109 = sphi %s1019, %s1019
                  %s1110 = sphi %s1080, %s1080
                $region218: #{custom-call.4} parent=214 // loop_header_branch
                  %1107 = sbr.rel (%p1105) target = $region222
                $region219: #{custom-call.4} parent=214 // loop_body
                  %v1111 = vld [vmem:[%s1109] sm:%s1102]
                  %1112 = vst [vmem:[%s1110] sm:%s1102] %v1111
                $region220: #{custom-call.4} parent=214 // loop_footer
                  %s1108 = sadd.s32 1, %s1104
                $region221: #{custom-call.4} parent=214 // loop_footer_branch
                  %1103 = sbr.rel target = $region217
                $region222: #{custom-call.4} parent=214 // loop_exit
                  _
              $region215: #{custom-call.4} parent=199 // pred_fallthru
                _
            $region200: #{custom-call.4} parent=195 // pred_fallthru
              _
            // Predicated region
            $region201: #{custom-call.4} parent=195 // pred_check
              _
            $region202: #{custom-call.4} parent=195 // pred_check_branch
              %1086 = sbr.rel (0) target = $region204
            $region203: #{custom-call.4} parent=195 // pred_region
              %s1088 = ssub.s32 4, 1
              loop: start=0, step=1, limit=1
              $region205: #{custom-call.4} parent=203 // loop_pre_header
                _
              $region206: #{custom-call.4} parent=203 // loop_header
                %s1090 = sphi 0, %s1094
                %p1091 = scmp.ge.s32.totalorder %s1090, 1
                %s1095 = sphi %s1019, %s1019
                %s1096 = sphi %s1080, %s1080
              $region207: #{custom-call.4} parent=203 // loop_header_branch
                %1093 = sbr.rel (%p1091) target = $region211
              $region208: #{custom-call.4} parent=203 // loop_body
                %v1097 = vld [vmem:[%s1095] sm:%s1088]
                %1098 = vst [vmem:[%s1096] sm:%s1088] %v1097
              $region209: #{custom-call.4} parent=203 // loop_footer
                %s1094 = sadd.s32 1, %s1090
              $region210: #{custom-call.4} parent=203 // loop_footer_branch
                %1089 = sbr.rel target = $region206
              $region211: #{custom-call.4} parent=203 // loop_exit
                _
            $region204: #{custom-call.4} parent=195 // pred_fallthru
              _
          $region196: #{custom-call.4} parent=191 // pred_fallthru
            _
          %1113 = vnop
        $region192: #{custom-call.4} parent=139 // pred_fallthru
          _
        %s1114 = smul.addr %s17, 4
        %s1115 = scalar_lea.vmem %s6, %s1114
        // Predicated region
        $region223: #{custom-call.4} parent=139 // pred_check
          _
        $region224: #{custom-call.4} parent=139 // pred_check_branch
          %1117 = sbr.rel (0) target = $region226
        $region225: #{custom-call.4} parent=139 // pred_region
          // Predicated region
          $region227: #{custom-call.4} parent=225 // pred_check
            _
          $region228: #{custom-call.4} parent=225 // pred_check_branch
            %1119 = sbr.rel target = $region230
          $region229: #{custom-call.4} parent=225 // pred_region
            // Predicated region
            $region242: #{custom-call.4} parent=229 // pred_check
              _
            $region243: #{custom-call.4} parent=229 // pred_check_branch
              %1135 = sbr.rel (0) target = $region245
            $region244: #{custom-call.4} parent=229 // pred_region
              %s1137 = ssub.s32 16, 1
              loop: start=0, step=1, limit=1
              $region246: #{custom-call.4} parent=244 // loop_pre_header
                _
              $region247: #{custom-call.4} parent=244 // loop_header
                %s1139 = sphi 0, %s1143
                %p1140 = scmp.ge.s32.totalorder %s1139, 1
                %s1144 = sphi %s1023, %s1023
                %s1145 = sphi %s1115, %s1115
              $region248: #{custom-call.4} parent=244 // loop_header_branch
                %1142 = sbr.rel (%p1140) target = $region252
              $region249: #{custom-call.4} parent=244 // loop_body
                %v1146 = vld [vmem:[%s1144] sm:%s1137]
                %1147 = vst [vmem:[%s1145] sm:%s1137] %v1146
              $region250: #{custom-call.4} parent=244 // loop_footer
                %s1143 = sadd.s32 1, %s1139
              $region251: #{custom-call.4} parent=244 // loop_footer_branch
                %1138 = sbr.rel target = $region247
              $region252: #{custom-call.4} parent=244 // loop_exit
                _
            $region245: #{custom-call.4} parent=229 // pred_fallthru
              _
          $region230: #{custom-call.4} parent=225 // pred_fallthru
            _
          // Predicated region
          $region231: #{custom-call.4} parent=225 // pred_check
            _
          $region232: #{custom-call.4} parent=225 // pred_check_branch
            %1121 = sbr.rel (0) target = $region234
          $region233: #{custom-call.4} parent=225 // pred_region
            %s1123 = ssub.s32 16, 1
            loop: start=0, step=1, limit=1
            $region235: #{custom-call.4} parent=233 // loop_pre_header
              _
            $region236: #{custom-call.4} parent=233 // loop_header
              %s1125 = sphi 0, %s1129
              %p1126 = scmp.ge.s32.totalorder %s1125, 1
              %s1130 = sphi %s1023, %s1023
              %s1131 = sphi %s1115, %s1115
            $region237: #{custom-call.4} parent=233 // loop_header_branch
              %1128 = sbr.rel (%p1126) target = $region241
            $region238: #{custom-call.4} parent=233 // loop_body
              %v1132 = vld [vmem:[%s1130] sm:%s1123]
              %1133 = vst [vmem:[%s1131] sm:%s1123] %v1132
            $region239: #{custom-call.4} parent=233 // loop_footer
              %s1129 = sadd.s32 1, %s1125
            $region240: #{custom-call.4} parent=233 // loop_footer_branch
              %1124 = sbr.rel target = $region236
            $region241: #{custom-call.4} parent=233 // loop_exit
              _
          $region234: #{custom-call.4} parent=225 // pred_fallthru
            _
        $region226: #{custom-call.4} parent=139 // pred_fallthru
          _
        %1148 = vnop
        %s1149 = smul.addr %s17, 4
        %s1150 = scalar_lea.vmem %s7, %s1149
        // Predicated region
        $region253: #{custom-call.4} parent=139 // pred_check
          _
        $region254: #{custom-call.4} parent=139 // pred_check_branch
          %1152 = sbr.rel (0) target = $region256
        $region255: #{custom-call.4} parent=139 // pred_region
          // Predicated region
          $region257: #{custom-call.4} parent=255 // pred_check
            _
          $region258: #{custom-call.4} parent=255 // pred_check_branch
            %1154 = sbr.rel target = $region260
          $region259: #{custom-call.4} parent=255 // pred_region
            // Predicated region
            $region272: #{custom-call.4} parent=259 // pred_check
              _
            $region273: #{custom-call.4} parent=259 // pred_check_branch
              %1170 = sbr.rel (0) target = $region275
            $region274: #{custom-call.4} parent=259 // pred_region
              %s1172 = ssub.s32 16, 1
              loop: start=0, step=1, limit=1
              $region276: #{custom-call.4} parent=274 // loop_pre_header
                _
              $region277: #{custom-call.4} parent=274 // loop_header
                %s1174 = sphi 0, %s1178
                %p1175 = scmp.ge.s32.totalorder %s1174, 1
                %s1179 = sphi %s1027, %s1027
                %s1180 = sphi %s1150, %s1150
              $region278: #{custom-call.4} parent=274 // loop_header_branch
                %1177 = sbr.rel (%p1175) target = $region282
              $region279: #{custom-call.4} parent=274 // loop_body
                %v1181 = vld [vmem:[%s1179] sm:%s1172]
                %1182 = vst [vmem:[%s1180] sm:%s1172] %v1181
              $region280: #{custom-call.4} parent=274 // loop_footer
                %s1178 = sadd.s32 1, %s1174
              $region281: #{custom-call.4} parent=274 // loop_footer_branch
                %1173 = sbr.rel target = $region277
              $region282: #{custom-call.4} parent=274 // loop_exit
                _
            $region275: #{custom-call.4} parent=259 // pred_fallthru
              _
          $region260: #{custom-call.4} parent=255 // pred_fallthru
            _
          // Predicated region
          $region261: #{custom-call.4} parent=255 // pred_check
            _
          $region262: #{custom-call.4} parent=255 // pred_check_branch
            %1156 = sbr.rel (0) target = $region264
          $region263: #{custom-call.4} parent=255 // pred_region
            %s1158 = ssub.s32 16, 1
            loop: start=0, step=1, limit=1
            $region265: #{custom-call.4} parent=263 // loop_pre_header
              _
            $region266: #{custom-call.4} parent=263 // loop_header
              %s1160 = sphi 0, %s1164
              %p1161 = scmp.ge.s32.totalorder %s1160, 1
              %s1165 = sphi %s1027, %s1027
              %s1166 = sphi %s1150, %s1150
            $region267: #{custom-call.4} parent=263 // loop_header_branch
              %1163 = sbr.rel (%p1161) target = $region271
            $region268: #{custom-call.4} parent=263 // loop_body
              %v1167 = vld [vmem:[%s1165] sm:%s1158]
              %1168 = vst [vmem:[%s1166] sm:%s1158] %v1167
            $region269: #{custom-call.4} parent=263 // loop_footer
              %s1164 = sadd.s32 1, %s1160
            $region270: #{custom-call.4} parent=263 // loop_footer_branch
              %1159 = sbr.rel target = $region266
            $region271: #{custom-call.4} parent=263 // loop_exit
              _
          $region264: #{custom-call.4} parent=255 // pred_fallthru
            _
        $region256: #{custom-call.4} parent=139 // pred_fallthru
          _
        %1183 = vnop
        %s1184 = smul.addr %s17, 4
        %s1185 = scalar_lea.vmem %s8, %s1184
        // Predicated region
        $region283: #{custom-call.4} parent=139 // pred_check
          _
        $region284: #{custom-call.4} parent=139 // pred_check_branch
          %1187 = sbr.rel (0) target = $region286
        $region285: #{custom-call.4} parent=139 // pred_region
          // Predicated region
          $region287: #{custom-call.4} parent=285 // pred_check
            _
          $region288: #{custom-call.4} parent=285 // pred_check_branch
            %1189 = sbr.rel target = $region290
          $region289: #{custom-call.4} parent=285 // pred_region
            // Predicated region
            $region302: #{custom-call.4} parent=289 // pred_check
              _
            $region303: #{custom-call.4} parent=289 // pred_check_branch
              %1205 = sbr.rel (0) target = $region305
            $region304: #{custom-call.4} parent=289 // pred_region
              %s1207 = ssub.s32 16, 1
              loop: start=0, step=1, limit=1
              $region306: #{custom-call.4} parent=304 // loop_pre_header
                _
              $region307: #{custom-call.4} parent=304 // loop_header
                %s1209 = sphi 0, %s1213
                %p1210 = scmp.ge.s32.totalorder %s1209, 1
                %s1214 = sphi %s1031, %s1031
                %s1215 = sphi %s1185, %s1185
              $region308: #{custom-call.4} parent=304 // loop_header_branch
                %1212 = sbr.rel (%p1210) target = $region312
              $region309: #{custom-call.4} parent=304 // loop_body
                %v1216 = vld [vmem:[%s1214] sm:%s1207]
                %1217 = vst [vmem:[%s1215] sm:%s1207] %v1216
              $region310: #{custom-call.4} parent=304 // loop_footer
                %s1213 = sadd.s32 1, %s1209
              $region311: #{custom-call.4} parent=304 // loop_footer_branch
                %1208 = sbr.rel target = $region307
              $region312: #{custom-call.4} parent=304 // loop_exit
                _
            $region305: #{custom-call.4} parent=289 // pred_fallthru
              _
          $region290: #{custom-call.4} parent=285 // pred_fallthru
            _
          // Predicated region
          $region291: #{custom-call.4} parent=285 // pred_check
            _
          $region292: #{custom-call.4} parent=285 // pred_check_branch
            %1191 = sbr.rel (0) target = $region294
          $region293: #{custom-call.4} parent=285 // pred_region
            %s1193 = ssub.s32 16, 1
            loop: start=0, step=1, limit=1
            $region295: #{custom-call.4} parent=293 // loop_pre_header
              _
            $region296: #{custom-call.4} parent=293 // loop_header
              %s1195 = sphi 0, %s1199
              %p1196 = scmp.ge.s32.totalorder %s1195, 1
              %s1200 = sphi %s1031, %s1031
              %s1201 = sphi %s1185, %s1185
            $region297: #{custom-call.4} parent=293 // loop_header_branch
              %1198 = sbr.rel (%p1196) target = $region301
            $region298: #{custom-call.4} parent=293 // loop_body
              %v1202 = vld [vmem:[%s1200] sm:%s1193]
              %1203 = vst [vmem:[%s1201] sm:%s1193] %v1202
            $region299: #{custom-call.4} parent=293 // loop_footer
              %s1199 = sadd.s32 1, %s1195
            $region300: #{custom-call.4} parent=293 // loop_footer_branch
              %1194 = sbr.rel target = $region296
            $region301: #{custom-call.4} parent=293 // loop_exit
              _
          $region294: #{custom-call.4} parent=285 // pred_fallthru
            _
        $region286: #{custom-call.4} parent=139 // pred_fallthru
          _
        %1218 = vnop
        %s1219 = smul.addr %s17, 4
        %s1220 = scalar_lea.vmem %s9, %s1219
        // Predicated region
        $region313: #{custom-call.4} parent=139 // pred_check
          _
        $region314: #{custom-call.4} parent=139 // pred_check_branch
          %1222 = sbr.rel (0) target = $region316
        $region315: #{custom-call.4} parent=139 // pred_region
          // Predicated region
          $region317: #{custom-call.4} parent=315 // pred_check
            _
          $region318: #{custom-call.4} parent=315 // pred_check_branch
            %1224 = sbr.rel target = $region320
          $region319: #{custom-call.4} parent=315 // pred_region
            // Predicated region
            $region332: #{custom-call.4} parent=319 // pred_check
              _
            $region333: #{custom-call.4} parent=319 // pred_check_branch
              %1240 = sbr.rel (0) target = $region335
            $region334: #{custom-call.4} parent=319 // pred_region
              %s1242 = ssub.s32 16, 1
              loop: start=0, step=1, limit=1
              $region336: #{custom-call.4} parent=334 // loop_pre_header
                _
              $region337: #{custom-call.4} parent=334 // loop_header
                %s1244 = sphi 0, %s1248
                %p1245 = scmp.ge.s32.totalorder %s1244, 1
                %s1249 = sphi %s1035, %s1035
                %s1250 = sphi %s1220, %s1220
              $region338: #{custom-call.4} parent=334 // loop_header_branch
                %1247 = sbr.rel (%p1245) target = $region342
              $region339: #{custom-call.4} parent=334 // loop_body
                %v1251 = vld [vmem:[%s1249] sm:%s1242]
                %1252 = vst [vmem:[%s1250] sm:%s1242] %v1251
              $region340: #{custom-call.4} parent=334 // loop_footer
                %s1248 = sadd.s32 1, %s1244
              $region341: #{custom-call.4} parent=334 // loop_footer_branch
                %1243 = sbr.rel target = $region337
              $region342: #{custom-call.4} parent=334 // loop_exit
                _
            $region335: #{custom-call.4} parent=319 // pred_fallthru
              _
          $region320: #{custom-call.4} parent=315 // pred_fallthru
            _
          // Predicated region
          $region321: #{custom-call.4} parent=315 // pred_check
            _
          $region322: #{custom-call.4} parent=315 // pred_check_branch
            %1226 = sbr.rel (0) target = $region324
          $region323: #{custom-call.4} parent=315 // pred_region
            %s1228 = ssub.s32 16, 1
            loop: start=0, step=1, limit=1
            $region325: #{custom-call.4} parent=323 // loop_pre_header
              _
            $region326: #{custom-call.4} parent=323 // loop_header
              %s1230 = sphi 0, %s1234
              %p1231 = scmp.ge.s32.totalorder %s1230, 1
              %s1235 = sphi %s1035, %s1035
              %s1236 = sphi %s1220, %s1220
            $region327: #{custom-call.4} parent=323 // loop_header_branch
              %1233 = sbr.rel (%p1231) target = $region331
            $region328: #{custom-call.4} parent=323 // loop_body
              %v1237 = vld [vmem:[%s1235] sm:%s1228]
              %1238 = vst [vmem:[%s1236] sm:%s1228] %v1237
            $region329: #{custom-call.4} parent=323 // loop_footer
              %s1234 = sadd.s32 1, %s1230
            $region330: #{custom-call.4} parent=323 // loop_footer_branch
              %1229 = sbr.rel target = $region326
            $region331: #{custom-call.4} parent=323 // loop_exit
              _
          $region324: #{custom-call.4} parent=315 // pred_fallthru
            _
        $region316: #{custom-call.4} parent=139 // pred_fallthru
          _
        %1253 = vnop
      $region140: #{custom-call.4} parent=5 // pred_fallthru
        _
      %p1254 = scmp.le.s32.totalorder 2, %s12
      // Predicated region
      $region343: #{custom-call.4} parent=5 // pred_check
        %p1255 = pneg %p1254
      $region344: #{custom-call.4} parent=5 // pred_check_branch
        %1257 = sbr.rel (%p1255) target = $region346
      $region345: #{custom-call.4} parent=5 // pred_region
        %s1258 = ssub.s32 %s12, 2
        // Predicated region
        $region347: #{custom-call.4} parent=345 // pred_check
          %p1259 = pneg %p43
        $region348: #{custom-call.4} parent=345 // pred_check_branch
          %1261 = sbr.rel (%p1259) target = $region350
        $region349: #{custom-call.4} parent=345 // pred_region
          %s1262 = sand.u32 %s28, 1
          %s1263 = sand.u32 %s28, 1
          %s1264 = smul.addr %s1263, 2
          %s1265 = scalar_lea.vmem [#allocation9], %s1264
        $region350: #{custom-call.4} parent=345 // pred_fallthru
          _
        // Predicated region
        $region351: #{custom-call.4} parent=345 // pred_check
          %p1266 = pneg %p71
        $region352: #{custom-call.4} parent=345 // pred_check_branch
          %1268 = sbr.rel (%p1266) target = $region354
        $region353: #{custom-call.4} parent=345 // pred_region
          %s1269 = sand.u32 %s56, 1
          %s1270 = sand.u32 %s56, 1
          %s1271 = smul.addr %s1270, 2
          %s1272 = scalar_lea.vmem [#allocation11], %s1271
        $region354: #{custom-call.4} parent=345 // pred_fallthru
          _
        %s1273 = sand.u32 %s18, 1
        %s1274 = sand.u32 %s18, 1
        %s1275 = smul.addr %s1274, 4
        %s1276 = scalar_lea.vmem [#allocation13], %s1275
        %s1277 = sand.u32 %s18, 1
        %s1278 = sand.u32 %s18, 1
        %s1279 = smul.addr %s1278, 4
        %s1280 = scalar_lea.vmem [#allocation15], %s1279
        %s1281 = sand.u32 %s18, 1
        %s1282 = sand.u32 %s18, 1
        %s1283 = smul.addr %s1282, 4
        %s1284 = scalar_lea.vmem [#allocation17], %s1283
        %s1285 = sand.u32 %s18, 1
        %s1286 = sand.u32 %s18, 1
        %s1287 = smul.addr %s1286, 4
        %s1288 = scalar_lea.vmem [#allocation19], %s1287
      $region346: #{custom-call.4} parent=5 // pred_fallthru
        _
    $region6: #{custom-call.4} parent=1 // loop_footer
      %s16 = sadd.s32 1, %s12
    $region7: #{custom-call.4} parent=1 // loop_footer_branch
      %11 = sbr.rel target = $region3
    $region8: #{custom-call.4} parent=1 // loop_exit
      _

// kernel: reverse
$region0: #{reverse}
  %s0 = inlined_call_operand.vmem [shape: bf16[2,8,4], index: 0, kind: input, shape index: {}]
  %s1 = inlined_call_operand.vmem [shape: bf16[2,8,4], index: 1, kind: output, shape index: {}]
  $region1: #{reverse} parent=0
    #allocation0 [shape = 'u8[16384]{0}', space=vmem, size = 0x4000, scoped, tag = 'operand span for operand 0']
    #allocation1 [shape = 'u8[4096]{0}', space=vmem, size = 0x1000, scoped, tag = 'packed  for operand 0']
    #allocation2 [shape = 'u8[8192]{0}', space=vmem, size = 0x2000, scoped, tag = 'operand span for operand 1']
    #allocation3 [shape = 'u8[2048]{0}', space=vmem, size = 0x800, scoped, tag = 'packed  for operand 1']
    %s2 = scalar_lea.vmem [#allocation1], 2
    // Predicated region
    $region2: #{reverse} parent=1 // pred_check
      _
    $region3: #{reverse} parent=1 // pred_check_branch
      %4 = sbr.rel (0) target = $region5
    $region4: #{reverse} parent=1 // pred_region
      // Predicated region
      $region6: #{reverse} parent=4 // pred_check
        _
      $region7: #{reverse} parent=4 // pred_check_branch
        %6 = sbr.rel target = $region9
      $region8: #{reverse} parent=4 // pred_region
        // Predicated region
        $region21: #{reverse} parent=8 // pred_check
          _
        $region22: #{reverse} parent=8 // pred_check_branch
          %24 = sbr.rel (0) target = $region24
        $region23: #{reverse} parent=8 // pred_region
          %s26 = ssub.s32 4, 1
          loop: start=0, step=1, limit=1
          $region25: #{reverse} parent=23 // loop_pre_header
            _
          $region26: #{reverse} parent=23 // loop_header
            %s28 = sphi 0, %s32
            %p29 = scmp.ge.s32.totalorder %s28, 1
            %s33 = sphi %s0, %s0
            %s34 = sphi %s2, %s2
          $region27: #{reverse} parent=23 // loop_header_branch
            %31 = sbr.rel (%p29) target = $region31
          $region28: #{reverse} parent=23 // loop_body
            %v35 = vld [vmem:[%s33] sm:%s26]
            %36 = vst [vmem:[%s34] sm:%s26] %v35
            %v37 = vld [vmem:[%s33 + $0x2] sm:%s26]
            %38 = vst [vmem:[%s34 + $0x4] sm:%s26] %v37
          $region29: #{reverse} parent=23 // loop_footer
            %s32 = sadd.s32 1, %s28
          $region30: #{reverse} parent=23 // loop_footer_branch
            %27 = sbr.rel target = $region26
          $region31: #{reverse} parent=23 // loop_exit
            _
        $region24: #{reverse} parent=8 // pred_fallthru
          _
      $region9: #{reverse} parent=4 // pred_fallthru
        _
      // Predicated region
      $region10: #{reverse} parent=4 // pred_check
        _
      $region11: #{reverse} parent=4 // pred_check_branch
        %8 = sbr.rel (0) target = $region13
      $region12: #{reverse} parent=4 // pred_region
        %s10 = ssub.s32 4, 1
        loop: start=0, step=1, limit=1
        $region14: #{reverse} parent=12 // loop_pre_header
          _
        $region15: #{reverse} parent=12 // loop_header
          %s12 = sphi 0, %s16
          %p13 = scmp.ge.s32.totalorder %s12, 1
          %s17 = sphi %s0, %s0
          %s18 = sphi %s2, %s2
        $region16: #{reverse} parent=12 // loop_header_branch
          %15 = sbr.rel (%p13) target = $region20
        $region17: #{reverse} parent=12 // loop_body
          %v19 = vld [vmem:[%s17] sm:%s10]
          %20 = vst [vmem:[%s18] sm:%s10] %v19
          %v21 = vld [vmem:[%s17 + $0x2] sm:%s10]
          %22 = vst [vmem:[%s18 + $0x4] sm:%s10] %v21
        $region18: #{reverse} parent=12 // loop_footer
          %s16 = sadd.s32 1, %s12
        $region19: #{reverse} parent=12 // loop_footer_branch
          %11 = sbr.rel target = $region15
        $region20: #{reverse} parent=12 // loop_exit
          _
      $region13: #{reverse} parent=4 // pred_fallthru
        _
    $region5: #{reverse} parent=1 // pred_fallthru
      _
    %39 = vnop
    %s41 = smul.u32 2, 2
    %s42 = sshll.u32 1, %s41
    %s43 = ssub.s32 %s42, 1
    %s44 = smul.addr 2, 3
    %s45 = scalar_lea.vmem [#allocation1], %s44
    %s46 = sshrl.u32 %s43, 1
    %s47 = sor.u32 %s43, %s46
    %s48 = sand.u32 %s47, 85
    %s49 = sshrl.u32 %s48, 1
    %s50 = sor.u32 %s48, %s49
    %s51 = sand.u32 51, %s50
    %s52 = sshrl.u32 %s51, 2
    %s53 = sor.u32 %s51, %s52
    %s54 = sand.u32 15, %s53
    %v55 = vld [vmem:[%s45] sm:%s54]
    %v56 = vunpack.c.l.bf16 %v55
    %v57 = vunpack.c.h.bf16 %v55
    %s58 = scalar_lea.vmem [#allocation0], 24
    %59 = vst [vmem:[%s58] sm:%s43] %v56
    %s60 = smul.addr 2, 2
    %s61 = scalar_lea.vmem [#allocation1], %s60
    %s62 = sshrl.u32 %s43, 1
    %s63 = sor.u32 %s43, %s62
    %s64 = sand.u32 %s63, 85
    %s65 = sshrl.u32 %s64, 1
    %s66 = sor.u32 %s64, %s65
    %s67 = sand.u32 51, %s66
    %s68 = sshrl.u32 %s67, 2
    %s69 = sor.u32 %s67, %s68
    %s70 = sand.u32 15, %s69
    %v71 = vld [vmem:[%s61] sm:%s70]
    %v72 = vunpack.c.l.bf16 %v71
    %v73 = vunpack.c.h.bf16 %v71
    %s74 = scalar_lea.vmem [#allocation0], 16
    %75 = vst [vmem:[%s74] sm:%s43] %v72
    %s76 = scalar_lea.vmem [#allocation1], 2
    %s77 = sshrl.u32 %s43, 1
    %s78 = sor.u32 %s43, %s77
    %s79 = sand.u32 %s78, 85
    %s80 = sshrl.u32 %s79, 1
    %s81 = sor.u32 %s79, %s80
    %s82 = sand.u32 51, %s81
    %s83 = sshrl.u32 %s82, 2
    %s84 = sor.u32 %s82, %s83
    %s85 = sand.u32 15, %s84
    %v86 = vld [vmem:[%s76] sm:%s85]
    %v87 = vunpack.c.l.bf16 %v86
    %v88 = vunpack.c.h.bf16 %v86
    %s89 = scalar_lea.vmem [#allocation0], 8
    %90 = vst [vmem:[%s89] sm:%s43] %v87
    %s91 = sshrl.u32 %s43, 1
    %s92 = sor.u32 %s43, %s91
    %s93 = sand.u32 %s92, 85
    %s94 = sshrl.u32 %s93, 1
    %s95 = sor.u32 %s93, %s94
    %s96 = sand.u32 51, %s95
    %s97 = sshrl.u32 %s96, 2
    %s98 = sor.u32 %s96, %s97
    %s99 = sand.u32 15, %s98
    %v100 = vld [vmem:[#allocation1] sm:%s99]
    %v101 = vunpack.c.l.bf16 %v100
    %v102 = vunpack.c.h.bf16 %v100
    %103 = vst [vmem:[#allocation0] sm:%s43] %v101
    %s104 = scalar_lea.vmem [#allocation0], 7
    %v105 = vld [vmem:[%s104] ss:$-1 sm:$0xff]
    %v106 = vrot.slane %v105, 4
    %107 = vst [vmem:[#allocation2] sm:$0xff] %v106
    %s108 = scalar_lea.vmem [#allocation0], 8
    %s109 = scalar_lea.vmem %s108, 7 [#allocation0]
    %v110 = vld [vmem:[%s109] ss:$-1 sm:$0xff]
    %v111 = vrot.slane %v110, 4
    %v112 = vlaneseq
    %v113 = vshrl.u32 %v112, 7
    %vm114 = vcmp.lt.s32.totalorder %v113, 4
    %115 = vst.msk [vmem:[#allocation2] sm:$0xff] %vm114, %v111
    %s116 = scalar_lea.vmem [#allocation2], 8
    %s117 = scalar_lea.vmem [#allocation0], 16
    %s118 = scalar_lea.vmem %s117, 7 [#allocation0]
    %v119 = vld [vmem:[%s118] ss:$-1 sm:$0xff]
    %v120 = vrot.slane %v119, 4
    %121 = vst [vmem:[%s116] sm:$0xff] %v120
    %s122 = scalar_lea.vmem %s117, 8 [#allocation0]
    %s123 = scalar_lea.vmem %s122, 7 [#allocation0]
    %v124 = vld [vmem:[%s123] ss:$-1 sm:$0xff]
    %v125 = vrot.slane %v124, 4
    %v126 = vlaneseq
    %v127 = vshrl.u32 %v126, 7
    %vm128 = vcmp.lt.s32.totalorder %v127, 4
    %129 = vst.msk [vmem:[%s116] sm:$0xff] %vm128, %v125
    %s131 = smul.u32 2, 2
    %s132 = sshll.u32 1, %s131
    %s133 = ssub.s32 %s132, 1
    %s134 = sshrl.u32 %s131, 1
    %v135 = vld [vmem:[#allocation2] sm:%s133]
    %v136 = vpack.c.bf16 0.0, %v135
    %s137 = sshll.u32 1, %s134
    %s138 = ssub.s32 %s137, 1
    %139 = vst [vmem:[#allocation3] sm:%s138] %v136
    %s140 = scalar_lea.vmem [#allocation2], 8
    %v141 = vld [vmem:[%s140] sm:%s133]
    %v142 = vpack.c.bf16 0.0, %v141
    %s143 = sshll.u32 1, %s134
    %s144 = ssub.s32 %s143, 1
    %s145 = scalar_lea.vmem [#allocation3], 2
    %146 = vst [vmem:[%s145] sm:%s144] %v142
    // Predicated region
    $region32: #{reverse} parent=1 // pred_check
      _
    $region33: #{reverse} parent=1 // pred_check_branch
      %148 = sbr.rel (0) target = $region35
    $region34: #{reverse} parent=1 // pred_region
      // Predicated region
      $region36: #{reverse} parent=34 // pred_check
        _
      $region37: #{reverse} parent=34 // pred_check_branch
        %150 = sbr.rel target = $region39
      $region38: #{reverse} parent=34 // pred_region
        // Predicated region
        $region51: #{reverse} parent=38 // pred_check
          _
        $region52: #{reverse} parent=38 // pred_check_branch
          %168 = sbr.rel (0) target = $region54
        $region53: #{reverse} parent=38 // pred_region
          %s170 = ssub.s32 4, 1
          loop: start=0, step=1, limit=1
          $region55: #{reverse} parent=53 // loop_pre_header
            _
          $region56: #{reverse} parent=53 // loop_header
            %s172 = sphi 0, %s176
            %p173 = scmp.ge.s32.totalorder %s172, 1
            %s177 = sphi [#allocation3], [#allocation3]
            %s178 = sphi %s1, %s1
          $region57: #{reverse} parent=53 // loop_header_branch
            %175 = sbr.rel (%p173) target = $region61
          $region58: #{reverse} parent=53 // loop_body
            %v179 = vld [vmem:[%s177] sm:%s170]
            %180 = vst [vmem:[%s178] sm:%s170] %v179
            %v181 = vld [vmem:[%s177 + $0x2] sm:%s170]
            %182 = vst [vmem:[%s178 + $0x2] sm:%s170] %v181
          $region59: #{reverse} parent=53 // loop_footer
            %s176 = sadd.s32 1, %s172
          $region60: #{reverse} parent=53 // loop_footer_branch
            %171 = sbr.rel target = $region56
          $region61: #{reverse} parent=53 // loop_exit
            _
        $region54: #{reverse} parent=38 // pred_fallthru
          _
      $region39: #{reverse} parent=34 // pred_fallthru
        _
      // Predicated region
      $region40: #{reverse} parent=34 // pred_check
        _
      $region41: #{reverse} parent=34 // pred_check_branch
        %152 = sbr.rel (0) target = $region43
      $region42: #{reverse} parent=34 // pred_region
        %s154 = ssub.s32 4, 1
        loop: start=0, step=1, limit=1
        $region44: #{reverse} parent=42 // loop_pre_header
          _
        $region45: #{reverse} parent=42 // loop_header
          %s156 = sphi 0, %s160
          %p157 = scmp.ge.s32.totalorder %s156, 1
          %s161 = sphi [#allocation3], [#allocation3]
          %s162 = sphi %s1, %s1
        $region46: #{reverse} parent=42 // loop_header_branch
          %159 = sbr.rel (%p157) target = $region50
        $region47: #{reverse} parent=42 // loop_body
          %v163 = vld [vmem:[%s161] sm:%s154]
          %164 = vst [vmem:[%s162] sm:%s154] %v163
          %v165 = vld [vmem:[%s161 + $0x2] sm:%s154]
          %166 = vst [vmem:[%s162 + $0x2] sm:%s154] %v165
        $region48: #{reverse} parent=42 // loop_footer
          %s160 = sadd.s32 1, %s156
        $region49: #{reverse} parent=42 // loop_footer_branch
          %155 = sbr.rel target = $region45
        $region50: #{reverse} parent=42 // loop_exit
          _
      $region43: #{reverse} parent=34 // pred_fallthru
        _
    $region35: #{reverse} parent=1 // pred_fallthru
      _
    %183 = vnop

// kernel: reverse.1
$region0: #{reverse.1}
  %s0 = inlined_call_operand.vmem [shape: f32[2,4], index: 0, kind: input, shape index: {}]
  %s1 = inlined_call_operand.vmem [shape: f32[2,4], index: 1, kind: output, shape index: {}]
  %v2 = vlaneseq
  %v3 = vsub.s32 3, %v2
  %4 = vset.pattern.permute.xlu0 %v3
  $region1: #{reverse.1} parent=0
    #allocation0 [shape = 'u8[4096]{0}', space=vmem, size = 0x1000, scoped, tag = 'operand span for operand 0']
    #allocation1 [shape = 'u8[1024]{0}', space=vmem, size = 0x400, scoped, tag = 'packed  for operand 0']
    #allocation2 [shape = 'u8[4096]{0}', space=vmem, size = 0x1000, scoped, tag = 'operand span for operand 1']
    #allocation3 [shape = 'u8[1024]{0}', space=vmem, size = 0x400, scoped, tag = 'packed  for operand 1']
    // Predicated region
    $region2: #{reverse.1} parent=1 // pred_check
      _
    $region3: #{reverse.1} parent=1 // pred_check_branch
      %6 = sbr.rel (0) target = $region5
    $region4: #{reverse.1} parent=1 // pred_region
      // Predicated region
      $region6: #{reverse.1} parent=4 // pred_check
        _
      $region7: #{reverse.1} parent=4 // pred_check_branch
        %8 = sbr.rel target = $region9
      $region8: #{reverse.1} parent=4 // pred_region
        // Predicated region
        $region21: #{reverse.1} parent=8 // pred_check
          _
        $region22: #{reverse.1} parent=8 // pred_check_branch
          %24 = sbr.rel (0) target = $region24
        $region23: #{reverse.1} parent=8 // pred_region
          %s26 = ssub.s32 4, 1
          loop: start=0, step=1, limit=1
          $region25: #{reverse.1} parent=23 // loop_pre_header
            _
          $region26: #{reverse.1} parent=23 // loop_header
            %s28 = sphi 0, %s32
            %p29 = scmp.ge.s32.totalorder %s28, 1
            %s33 = sphi %s0, %s0
            %s34 = sphi [#allocation1], [#allocation1]
          $region27: #{reverse.1} parent=23 // loop_header_branch
            %31 = sbr.rel (%p29) target = $region31
          $region28: #{reverse.1} parent=23 // loop_body
            %v35 = vld [vmem:[%s33] sm:%s26]
            %36 = vst [vmem:[%s34] sm:%s26] %v35
          $region29: #{reverse.1} parent=23 // loop_footer
            %s32 = sadd.s32 1, %s28
          $region30: #{reverse.1} parent=23 // loop_footer_branch
            %27 = sbr.rel target = $region26
          $region31: #{reverse.1} parent=23 // loop_exit
            _
        $region24: #{reverse.1} parent=8 // pred_fallthru
          _
      $region9: #{reverse.1} parent=4 // pred_fallthru
        _
      // Predicated region
      $region10: #{reverse.1} parent=4 // pred_check
        _
      $region11: #{reverse.1} parent=4 // pred_check_branch
        %10 = sbr.rel (0) target = $region13
      $region12: #{reverse.1} parent=4 // pred_region
        %s12 = ssub.s32 4, 1
        loop: start=0, step=1, limit=1
        $region14: #{reverse.1} parent=12 // loop_pre_header
          _
        $region15: #{reverse.1} parent=12 // loop_header
          %s14 = sphi 0, %s18
          %p15 = scmp.ge.s32.totalorder %s14, 1
          %s19 = sphi %s0, %s0
          %s20 = sphi [#allocation1], [#allocation1]
        $region16: #{reverse.1} parent=12 // loop_header_branch
          %17 = sbr.rel (%p15) target = $region20
        $region17: #{reverse.1} parent=12 // loop_body
          %v21 = vld [vmem:[%s19] sm:%s12]
          %22 = vst [vmem:[%s20] sm:%s12] %v21
        $region18: #{reverse.1} parent=12 // loop_footer
          %s18 = sadd.s32 1, %s14
        $region19: #{reverse.1} parent=12 // loop_footer_branch
          %13 = sbr.rel target = $region15
        $region20: #{reverse.1} parent=12 // loop_exit
          _
      $region13: #{reverse.1} parent=4 // pred_fallthru
        _
    $region5: #{reverse.1} parent=1 // pred_fallthru
      _
    %37 = vnop
    %s39 = sshll.u32 1, 2
    %s40 = ssub.s32 %s39, 1
    %v41 = vld [vmem:[#allocation1] sm:%s40]
    %42 = vst [vmem:[#allocation0] sm:%s40] %v41
    %v43 = vld [vmem:[#allocation0] sm:$0xff]
    %44 = vperm.xlu0 %4, %v43
    %v45 = vpop.permute.xlu0 %44
    %46 = vst [vmem:[#allocation2] sm:$0xff] %v45
    %s48 = sshll.u32 1, 2
    %s49 = ssub.s32 %s48, 1
    %v51 = vld [vmem:[#allocation2] sm:%s49]
    %s52 = sshll.u32 1, 2
    %s53 = ssub.s32 %s52, 1
    %54 = vst [vmem:[#allocation3] sm:%s53] %v51
    // Predicated region
    $region32: #{reverse.1} parent=1 // pred_check
      _
    $region33: #{reverse.1} parent=1 // pred_check_branch
      %56 = sbr.rel (0) target = $region35
    $region34: #{reverse.1} parent=1 // pred_region
      // Predicated region
      $region36: #{reverse.1} parent=34 // pred_check
        _
      $region37: #{reverse.1} parent=34 // pred_check_branch
        %58 = sbr.rel target = $region39
      $region38: #{reverse.1} parent=34 // pred_region
        // Predicated region
        $region51: #{reverse.1} parent=38 // pred_check
          _
        $region52: #{reverse.1} parent=38 // pred_check_branch
          %74 = sbr.rel (0) target = $region54
        $region53: #{reverse.1} parent=38 // pred_region
          %s76 = ssub.s32 4, 1
          loop: start=0, step=1, limit=1
          $region55: #{reverse.1} parent=53 // loop_pre_header
            _
          $region56: #{reverse.1} parent=53 // loop_header
            %s78 = sphi 0, %s82
            %p79 = scmp.ge.s32.totalorder %s78, 1
            %s83 = sphi [#allocation3], [#allocation3]
            %s84 = sphi %s1, %s1
          $region57: #{reverse.1} parent=53 // loop_header_branch
            %81 = sbr.rel (%p79) target = $region61
          $region58: #{reverse.1} parent=53 // loop_body
            %v85 = vld [vmem:[%s83] sm:%s76]
            %86 = vst [vmem:[%s84] sm:%s76] %v85
          $region59: #{reverse.1} parent=53 // loop_footer
            %s82 = sadd.s32 1, %s78
          $region60: #{reverse.1} parent=53 // loop_footer_branch
            %77 = sbr.rel target = $region56
          $region61: #{reverse.1} parent=53 // loop_exit
            _
        $region54: #{reverse.1} parent=38 // pred_fallthru
          _
      $region39: #{reverse.1} parent=34 // pred_fallthru
        _
      // Predicated region
      $region40: #{reverse.1} parent=34 // pred_check
        _
      $region41: #{reverse.1} parent=34 // pred_check_branch
        %60 = sbr.rel (0) target = $region43
      $region42: #{reverse.1} parent=34 // pred_region
        %s62 = ssub.s32 4, 1
        loop: start=0, step=1, limit=1
        $region44: #{reverse.1} parent=42 // loop_pre_header
          _
        $region45: #{reverse.1} parent=42 // loop_header
          %s64 = sphi 0, %s68
          %p65 = scmp.ge.s32.totalorder %s64, 1
          %s69 = sphi [#allocation3], [#allocation3]
          %s70 = sphi %s1, %s1
        $region46: #{reverse.1} parent=42 // loop_header_branch
          %67 = sbr.rel (%p65) target = $region50
        $region47: #{reverse.1} parent=42 // loop_body
          %v71 = vld [vmem:[%s69] sm:%s62]
          %72 = vst [vmem:[%s70] sm:%s62] %v71
        $region48: #{reverse.1} parent=42 // loop_footer
          %s68 = sadd.s32 1, %s64
        $region49: #{reverse.1} parent=42 // loop_footer_branch
          %63 = sbr.rel target = $region45
        $region50: #{reverse.1} parent=42 // loop_exit
          _
      $region43: #{reverse.1} parent=34 // pred_fallthru
        _
    $region35: #{reverse.1} parent=1 // pred_fallthru
      _
    %87 = vnop

// kernel: custom-call.5
$region0: #{custom-call.5}
  %s0 = inlined_call_operand.vmem [shape: f32[2,6,2,2], index: 0, kind: input, shape index: {}]
  %s1 = inlined_call_operand.vmem [shape: f32[2,6,2,2], index: 1, kind: input, shape index: {}]
  %s2 = inlined_call_operand.vmem [shape: f32[2,6,2,2], index: 2, kind: input, shape index: {}]
  %s3 = inlined_call_operand.vmem [shape: f32[2,6,2,2], index: 3, kind: input, shape index: {}]
  %s4 = inlined_call_operand.vmem [shape: f32[2,6,2], index: 4, kind: output, shape index: {0}]
  %s5 = inlined_call_operand.vmem [shape: f32[2,6,2], index: 5, kind: output, shape index: {1}]
  %s6 = inlined_call_operand.vmem [shape: f32[2,6,2,2], index: 6, kind: output, shape index: {2}]
  %s7 = inlined_call_operand.vmem [shape: f32[2,6,2,2], index: 7, kind: output, shape index: {3}]
  %s8 = inlined_call_operand.vmem [shape: f32[2,6,2,2], index: 8, kind: output, shape index: {4}]
  %s9 = inlined_call_operand.vmem [shape: f32[2,6,2,2], index: 9, kind: output, shape index: {5}]
  %10 = xla_tuple %s4, %s5, %s6, %s7, %s8, %s9
  $region1: #{custom-call.5} parent=0
    #allocation0 [shape = 'u8[4096]{0}', space=vmem, size = 0x1000, scoped, tag = 'operand span for operand 0']
    #allocation1 [shape = 'u8[2048]{0}', space=vmem, size = 0x800, scoped, tag = 'packed  for operand 0']
    #allocation2 [shape = 'u8[4096]{0}', space=vmem, size = 0x1000, scoped, tag = 'operand span for operand 1']
    #allocation3 [shape = 'u8[2048]{0}', space=vmem, size = 0x800, scoped, tag = 'packed  for operand 1']
    #allocation4 [shape = 'u8[4096]{0}', space=vmem, size = 0x1000, scoped, tag = 'operand span for operand 2']
    #allocation5 [shape = 'u8[2048]{0}', space=vmem, size = 0x800, scoped, tag = 'packed  for operand 2']
    #allocation6 [shape = 'u8[4096]{0}', space=vmem, size = 0x1000, scoped, tag = 'operand span for operand 3']
    #allocation7 [shape = 'u8[2048]{0}', space=vmem, size = 0x800, scoped, tag = 'packed  for operand 3']
    #allocation8 [shape = 'u8[8192]{0}', space=vmem, size = 0x2000, scoped, tag = 'operand span for operand 4']
    #allocation9 [shape = 'u8[8192]{0}', space=vmem, size = 0x2000, scoped, tag = 'operand span for operand 5']
    #allocation10 [shape = 'u8[4096]{0}', space=vmem, size = 0x1000, scoped, tag = 'operand span for operand 6']
    #allocation11 [shape = 'u8[2048]{0}', space=vmem, size = 0x800, scoped, tag = 'packed  for operand 6']
    #allocation12 [shape = 'u8[4096]{0}', space=vmem, size = 0x1000, scoped, tag = 'operand span for operand 7']
    #allocation13 [shape = 'u8[2048]{0}', space=vmem, size = 0x800, scoped, tag = 'packed  for operand 7']
    #allocation14 [shape = 'u8[4096]{0}', space=vmem, size = 0x1000, scoped, tag = 'operand span for operand 8']
    #allocation15 [shape = 'u8[2048]{0}', space=vmem, size = 0x800, scoped, tag = 'packed  for operand 8']
    #allocation16 [shape = 'u8[4096]{0}', space=vmem, size = 0x1000, scoped, tag = 'operand span for operand 9']
    #allocation17 [shape = 'u8[2048]{0}', space=vmem, size = 0x800, scoped, tag = 'packed  for operand 9']
    loop: start=0, step=1, limit=14
    $region2: #{custom-call.5} parent=1 // loop_pre_header
      _
    $region3: #{custom-call.5} parent=1 // loop_header
      %s12 = sphi 0, %s16
      %p13 = scmp.ge.s32.totalorder %s12, 14
      %s19 = sphi 0, %s31
      %s20 = sphi 0, %s27
      %s21 = sphi 0, %s19
      %s22 = sphi 0, %s20
      %s23 = sphi 0, %s21
      %s24 = sphi 0, %s22
      %s38 = sphi 0, %s40
      %s41 = sphi 0, %s38
      %s42 = sphi 0, %s41
      %s58 = sphi 0, %s42
      %s68 = sphi 0, %s70
      %s71 = sphi 0, %s68
      %s72 = sphi 0, %s71
      %s88 = sphi 0, %s72
    $region4: #{custom-call.5} parent=1 // loop_header_branch
      %15 = sbr.rel (%p13) target = $region8
    $region5: #{custom-call.5} parent=1 // loop_body
      %s17 = ssub.s32 %s12, 1
      %s18 = ssub.s32 %s12, 2
      %s25 = sadd.s32 1, %s20
      %p26 = scmp.ge.s32.totalorder %s25, 6
      %s27 = scalar_select %p26, 0, %s25
      %s28 = sadd.s32 1, %s19
      %s29 = scalar_select %p26, %s28, %s19
      %p30 = scmp.ge.s32.totalorder %s29, 2
      %s31 = scalar_select %p30, 0, %s29
      %s32 = sshrl.u32 %s20, 3
      %s33 = sshrl.u32 %s27, 3
      %s34 = ssub.s32 %s19, %s31
      %s35 = ssub.s32 %s32, %s33
      %s36 = sor.u32 %s34, %s35
      %p37 = scmp.eq.s32.totalorder %s36, 0
      %s39 = sadd.s32 %s38, 1
      %s40 = scalar_select %p37, %s38, %s39
      %p43 = pneg %p37
      %p44 = scmp.eq.s32.totalorder %s12, 11
      %p45 = por %p43, %p44
      %p46 = scmp.ne.s32.totalorder %s38, %s41
      %p47 = scmp.eq.s32.totalorder %s12, 0
      %p48 = por %p46, %p47
      %p49 = scmp.ne.s32.totalorder %s38, %s41
      %p50 = scmp.eq.s32.totalorder %s17, 11
      %p51 = por %p49, %p50
      %p52 = scmp.ne.s32.totalorder %s41, %s42
      %p53 = scmp.eq.s32.totalorder %s17, 0
      %p54 = por %p52, %p53
      %p55 = scmp.ne.s32.totalorder %s41, %s42
      %p56 = scmp.eq.s32.totalorder %s18, 11
      %p57 = por %p55, %p56
      %p59 = scmp.ne.s32.totalorder %s42, %s58
      %p60 = scmp.eq.s32.totalorder %s18, 0
      %p61 = por %p59, %p60
      %s62 = sshrl.u32 %s20, 3
      %s63 = sshrl.u32 %s27, 3
      %s64 = ssub.s32 %s19, %s31
      %s65 = ssub.s32 %s62, %s63
      %s66 = sor.u32 %s64, %s65
      %p67 = scmp.eq.s32.totalorder %s66, 0
      %s69 = sadd.s32 %s68, 1
      %s70 = scalar_select %p67, %s68, %s69
      %p73 = pneg %p67
      %p74 = scmp.eq.s32.totalorder %s12, 11
      %p75 = por %p73, %p74
      %p76 = scmp.ne.s32.totalorder %s68, %s71
      %p77 = scmp.eq.s32.totalorder %s12, 0
      %p78 = por %p76, %p77
      %p79 = scmp.ne.s32.totalorder %s68, %s71
      %p80 = scmp.eq.s32.totalorder %s17, 11
      %p81 = por %p79, %p80
      %p82 = scmp.ne.s32.totalorder %s71, %s72
      %p83 = scmp.eq.s32.totalorder %s17, 0
      %p84 = por %p82, %p83
      %p85 = scmp.ne.s32.totalorder %s71, %s72
      %p86 = scmp.eq.s32.totalorder %s18, 11
      %p87 = por %p85, %p86
      %p89 = scmp.ne.s32.totalorder %s72, %s88
      %p90 = scmp.eq.s32.totalorder %s18, 0
      %p91 = por %p89, %p90
      %p92 = scmp.le.s32.totalorder 1, %s12
      %p93 = scmp.lt.s32.totalorder %s12, 13
      %p94 = pnand %p92, %p93
      %p95 = pneg %p94
      // Predicated region
      $region9: #{custom-call.5} parent=5 // pred_check
        _
      $region10: #{custom-call.5} parent=5 // pred_check_branch
        %97 = sbr.rel (%p94) target = $region12
      $region11: #{custom-call.5} parent=5 // pred_region
        %s98 = ssub.s32 %s12, 1
      $region12: #{custom-call.5} parent=5 // pred_fallthru
        _
      %p99 = scmp.lt.s32.totalorder %s12, 12
      // Predicated region
      $region13: #{custom-call.5} parent=5 // pred_check
        %p100 = pneg %p99
      $region14: #{custom-call.5} parent=5 // pred_check_branch
        %102 = sbr.rel (%p100) target = $region16
      $region15: #{custom-call.5} parent=5 // pred_region
        %s103 = sand.u32 %s12, 1
        %s104 = sand.u32 %s12, 1
        %s105 = smul.addr %s104, 2
        %s106 = scalar_lea.vmem [#allocation1], %s105
        %s107 = smul.addr %s19, 6
        %s108 = sadd.s32 %s20, %s107
        %s109 = smul.addr %s108, 2
        %s110 = scalar_lea.vmem %s0, %s109
        // Predicated region
        $region17: #{custom-call.5} parent=15 // pred_check
          _
        $region18: #{custom-call.5} parent=15 // pred_check_branch
          %112 = sbr.rel (0) target = $region20
        $region19: #{custom-call.5} parent=15 // pred_region
          // Predicated region
          $region21: #{custom-call.5} parent=19 // pred_check
            _
          $region22: #{custom-call.5} parent=19 // pred_check_branch
            %114 = sbr.rel target = $region24
          $region23: #{custom-call.5} parent=19 // pred_region
            // Predicated region
            $region36: #{custom-call.5} parent=23 // pred_check
              _
            $region37: #{custom-call.5} parent=23 // pred_check_branch
              %130 = sbr.rel (0) target = $region39
            $region38: #{custom-call.5} parent=23 // pred_region
              %s132 = ssub.s32 4, 1
              loop: start=0, step=1, limit=1
              $region40: #{custom-call.5} parent=38 // loop_pre_header
                _
              $region41: #{custom-call.5} parent=38 // loop_header
                %s134 = sphi 0, %s138
                %p135 = scmp.ge.s32.totalorder %s134, 1
                %s139 = sphi %s110, %s110
                %s140 = sphi %s106, %s106
              $region42: #{custom-call.5} parent=38 // loop_header_branch
                %137 = sbr.rel (%p135) target = $region46
              $region43: #{custom-call.5} parent=38 // loop_body
                %v141 = vld [vmem:[%s139] sm:%s132]
                %142 = vst [vmem:[%s140] sm:%s132] %v141
              $region44: #{custom-call.5} parent=38 // loop_footer
                %s138 = sadd.s32 1, %s134
              $region45: #{custom-call.5} parent=38 // loop_footer_branch
                %133 = sbr.rel target = $region41
              $region46: #{custom-call.5} parent=38 // loop_exit
                _
            $region39: #{custom-call.5} parent=23 // pred_fallthru
              _
          $region24: #{custom-call.5} parent=19 // pred_fallthru
            _
          // Predicated region
          $region25: #{custom-call.5} parent=19 // pred_check
            _
          $region26: #{custom-call.5} parent=19 // pred_check_branch
            %116 = sbr.rel (0) target = $region28
          $region27: #{custom-call.5} parent=19 // pred_region
            %s118 = ssub.s32 4, 1
            loop: start=0, step=1, limit=1
            $region29: #{custom-call.5} parent=27 // loop_pre_header
              _
            $region30: #{custom-call.5} parent=27 // loop_header
              %s120 = sphi 0, %s124
              %p121 = scmp.ge.s32.totalorder %s120, 1
              %s125 = sphi %s110, %s110
              %s126 = sphi %s106, %s106
            $region31: #{custom-call.5} parent=27 // loop_header_branch
              %123 = sbr.rel (%p121) target = $region35
            $region32: #{custom-call.5} parent=27 // loop_body
              %v127 = vld [vmem:[%s125] sm:%s118]
              %128 = vst [vmem:[%s126] sm:%s118] %v127
            $region33: #{custom-call.5} parent=27 // loop_footer
              %s124 = sadd.s32 1, %s120
            $region34: #{custom-call.5} parent=27 // loop_footer_branch
              %119 = sbr.rel target = $region30
            $region35: #{custom-call.5} parent=27 // loop_exit
              _
          $region28: #{custom-call.5} parent=19 // pred_fallthru
            _
        $region20: #{custom-call.5} parent=15 // pred_fallthru
          _
        %143 = vnop
        %s144 = sand.u32 %s12, 1
        %s145 = sand.u32 %s12, 1
        %s146 = smul.addr %s145, 2
        %s147 = scalar_lea.vmem [#allocation3], %s146
        %s148 = smul.addr %s19, 6
        %s149 = sadd.s32 %s20, %s148
        %s150 = smul.addr %s149, 2
        %s151 = scalar_lea.vmem %s1, %s150
        // Predicated region
        $region47: #{custom-call.5} parent=15 // pred_check
          _
        $region48: #{custom-call.5} parent=15 // pred_check_branch
          %153 = sbr.rel (0) target = $region50
        $region49: #{custom-call.5} parent=15 // pred_region
          // Predicated region
          $region51: #{custom-call.5} parent=49 // pred_check
            _
          $region52: #{custom-call.5} parent=49 // pred_check_branch
            %155 = sbr.rel target = $region54
          $region53: #{custom-call.5} parent=49 // pred_region
            // Predicated region
            $region66: #{custom-call.5} parent=53 // pred_check
              _
            $region67: #{custom-call.5} parent=53 // pred_check_branch
              %171 = sbr.rel (0) target = $region69
            $region68: #{custom-call.5} parent=53 // pred_region
              %s173 = ssub.s32 4, 1
              loop: start=0, step=1, limit=1
              $region70: #{custom-call.5} parent=68 // loop_pre_header
                _
              $region71: #{custom-call.5} parent=68 // loop_header
                %s175 = sphi 0, %s179
                %p176 = scmp.ge.s32.totalorder %s175, 1
                %s180 = sphi %s151, %s151
                %s181 = sphi %s147, %s147
              $region72: #{custom-call.5} parent=68 // loop_header_branch
                %178 = sbr.rel (%p176) target = $region76
              $region73: #{custom-call.5} parent=68 // loop_body
                %v182 = vld [vmem:[%s180] sm:%s173]
                %183 = vst [vmem:[%s181] sm:%s173] %v182
              $region74: #{custom-call.5} parent=68 // loop_footer
                %s179 = sadd.s32 1, %s175
              $region75: #{custom-call.5} parent=68 // loop_footer_branch
                %174 = sbr.rel target = $region71
              $region76: #{custom-call.5} parent=68 // loop_exit
                _
            $region69: #{custom-call.5} parent=53 // pred_fallthru
              _
          $region54: #{custom-call.5} parent=49 // pred_fallthru
            _
          // Predicated region
          $region55: #{custom-call.5} parent=49 // pred_check
            _
          $region56: #{custom-call.5} parent=49 // pred_check_branch
            %157 = sbr.rel (0) target = $region58
          $region57: #{custom-call.5} parent=49 // pred_region
            %s159 = ssub.s32 4, 1
            loop: start=0, step=1, limit=1
            $region59: #{custom-call.5} parent=57 // loop_pre_header
              _
            $region60: #{custom-call.5} parent=57 // loop_header
              %s161 = sphi 0, %s165
              %p162 = scmp.ge.s32.totalorder %s161, 1
              %s166 = sphi %s151, %s151
              %s167 = sphi %s147, %s147
            $region61: #{custom-call.5} parent=57 // loop_header_branch
              %164 = sbr.rel (%p162) target = $region65
            $region62: #{custom-call.5} parent=57 // loop_body
              %v168 = vld [vmem:[%s166] sm:%s159]
              %169 = vst [vmem:[%s167] sm:%s159] %v168
            $region63: #{custom-call.5} parent=57 // loop_footer
              %s165 = sadd.s32 1, %s161
            $region64: #{custom-call.5} parent=57 // loop_footer_branch
              %160 = sbr.rel target = $region60
            $region65: #{custom-call.5} parent=57 // loop_exit
              _
          $region58: #{custom-call.5} parent=49 // pred_fallthru
            _
        $region50: #{custom-call.5} parent=15 // pred_fallthru
          _
        %184 = vnop
        %s185 = sand.u32 %s12, 1
        %s186 = sand.u32 %s12, 1
        %s187 = smul.addr %s186, 2
        %s188 = scalar_lea.vmem [#allocation5], %s187
        %s189 = smul.addr %s19, 6
        %s190 = sadd.s32 %s20, %s189
        %s191 = smul.addr %s190, 2
        %s192 = scalar_lea.vmem %s2, %s191
        // Predicated region
        $region77: #{custom-call.5} parent=15 // pred_check
          _
        $region78: #{custom-call.5} parent=15 // pred_check_branch
          %194 = sbr.rel (0) target = $region80
        $region79: #{custom-call.5} parent=15 // pred_region
          // Predicated region
          $region81: #{custom-call.5} parent=79 // pred_check
            _
          $region82: #{custom-call.5} parent=79 // pred_check_branch
            %196 = sbr.rel target = $region84
          $region83: #{custom-call.5} parent=79 // pred_region
            // Predicated region
            $region96: #{custom-call.5} parent=83 // pred_check
              _
            $region97: #{custom-call.5} parent=83 // pred_check_branch
              %212 = sbr.rel (0) target = $region99
            $region98: #{custom-call.5} parent=83 // pred_region
              %s214 = ssub.s32 4, 1
              loop: start=0, step=1, limit=1
              $region100: #{custom-call.5} parent=98 // loop_pre_header
                _
              $region101: #{custom-call.5} parent=98 // loop_header
                %s216 = sphi 0, %s220
                %p217 = scmp.ge.s32.totalorder %s216, 1
                %s221 = sphi %s192, %s192
                %s222 = sphi %s188, %s188
              $region102: #{custom-call.5} parent=98 // loop_header_branch
                %219 = sbr.rel (%p217) target = $region106
              $region103: #{custom-call.5} parent=98 // loop_body
                %v223 = vld [vmem:[%s221] sm:%s214]
                %224 = vst [vmem:[%s222] sm:%s214] %v223
              $region104: #{custom-call.5} parent=98 // loop_footer
                %s220 = sadd.s32 1, %s216
              $region105: #{custom-call.5} parent=98 // loop_footer_branch
                %215 = sbr.rel target = $region101
              $region106: #{custom-call.5} parent=98 // loop_exit
                _
            $region99: #{custom-call.5} parent=83 // pred_fallthru
              _
          $region84: #{custom-call.5} parent=79 // pred_fallthru
            _
          // Predicated region
          $region85: #{custom-call.5} parent=79 // pred_check
            _
          $region86: #{custom-call.5} parent=79 // pred_check_branch
            %198 = sbr.rel (0) target = $region88
          $region87: #{custom-call.5} parent=79 // pred_region
            %s200 = ssub.s32 4, 1
            loop: start=0, step=1, limit=1
            $region89: #{custom-call.5} parent=87 // loop_pre_header
              _
            $region90: #{custom-call.5} parent=87 // loop_header
              %s202 = sphi 0, %s206
              %p203 = scmp.ge.s32.totalorder %s202, 1
              %s207 = sphi %s192, %s192
              %s208 = sphi %s188, %s188
            $region91: #{custom-call.5} parent=87 // loop_header_branch
              %205 = sbr.rel (%p203) target = $region95
            $region92: #{custom-call.5} parent=87 // loop_body
              %v209 = vld [vmem:[%s207] sm:%s200]
              %210 = vst [vmem:[%s208] sm:%s200] %v209
            $region93: #{custom-call.5} parent=87 // loop_footer
              %s206 = sadd.s32 1, %s202
            $region94: #{custom-call.5} parent=87 // loop_footer_branch
              %201 = sbr.rel target = $region90
            $region95: #{custom-call.5} parent=87 // loop_exit
              _
          $region88: #{custom-call.5} parent=79 // pred_fallthru
            _
        $region80: #{custom-call.5} parent=15 // pred_fallthru
          _
        %225 = vnop
        %s226 = sand.u32 %s12, 1
        %s227 = sand.u32 %s12, 1
        %s228 = smul.addr %s227, 2
        %s229 = scalar_lea.vmem [#allocation7], %s228
        %s230 = smul.addr %s19, 6
        %s231 = sadd.s32 %s20, %s230
        %s232 = smul.addr %s231, 2
        %s233 = scalar_lea.vmem %s3, %s232
        // Predicated region
        $region107: #{custom-call.5} parent=15 // pred_check
          _
        $region108: #{custom-call.5} parent=15 // pred_check_branch
          %235 = sbr.rel (0) target = $region110
        $region109: #{custom-call.5} parent=15 // pred_region
          // Predicated region
          $region111: #{custom-call.5} parent=109 // pred_check
            _
          $region112: #{custom-call.5} parent=109 // pred_check_branch
            %237 = sbr.rel target = $region114
          $region113: #{custom-call.5} parent=109 // pred_region
            // Predicated region
            $region126: #{custom-call.5} parent=113 // pred_check
              _
            $region127: #{custom-call.5} parent=113 // pred_check_branch
              %253 = sbr.rel (0) target = $region129
            $region128: #{custom-call.5} parent=113 // pred_region
              %s255 = ssub.s32 4, 1
              loop: start=0, step=1, limit=1
              $region130: #{custom-call.5} parent=128 // loop_pre_header
                _
              $region131: #{custom-call.5} parent=128 // loop_header
                %s257 = sphi 0, %s261
                %p258 = scmp.ge.s32.totalorder %s257, 1
                %s262 = sphi %s233, %s233
                %s263 = sphi %s229, %s229
              $region132: #{custom-call.5} parent=128 // loop_header_branch
                %260 = sbr.rel (%p258) target = $region136
              $region133: #{custom-call.5} parent=128 // loop_body
                %v264 = vld [vmem:[%s262] sm:%s255]
                %265 = vst [vmem:[%s263] sm:%s255] %v264
              $region134: #{custom-call.5} parent=128 // loop_footer
                %s261 = sadd.s32 1, %s257
              $region135: #{custom-call.5} parent=128 // loop_footer_branch
                %256 = sbr.rel target = $region131
              $region136: #{custom-call.5} parent=128 // loop_exit
                _
            $region129: #{custom-call.5} parent=113 // pred_fallthru
              _
          $region114: #{custom-call.5} parent=109 // pred_fallthru
            _
          // Predicated region
          $region115: #{custom-call.5} parent=109 // pred_check
            _
          $region116: #{custom-call.5} parent=109 // pred_check_branch
            %239 = sbr.rel (0) target = $region118
          $region117: #{custom-call.5} parent=109 // pred_region
            %s241 = ssub.s32 4, 1
            loop: start=0, step=1, limit=1
            $region119: #{custom-call.5} parent=117 // loop_pre_header
              _
            $region120: #{custom-call.5} parent=117 // loop_header
              %s243 = sphi 0, %s247
              %p244 = scmp.ge.s32.totalorder %s243, 1
              %s248 = sphi %s233, %s233
              %s249 = sphi %s229, %s229
            $region121: #{custom-call.5} parent=117 // loop_header_branch
              %246 = sbr.rel (%p244) target = $region125
            $region122: #{custom-call.5} parent=117 // loop_body
              %v250 = vld [vmem:[%s248] sm:%s241]
              %251 = vst [vmem:[%s249] sm:%s241] %v250
            $region123: #{custom-call.5} parent=117 // loop_footer
              %s247 = sadd.s32 1, %s243
            $region124: #{custom-call.5} parent=117 // loop_footer_branch
              %242 = sbr.rel target = $region120
            $region125: #{custom-call.5} parent=117 // loop_exit
              _
          $region118: #{custom-call.5} parent=109 // pred_fallthru
            _
        $region110: #{custom-call.5} parent=15 // pred_fallthru
          _
        %266 = vnop
      $region16: #{custom-call.5} parent=5 // pred_fallthru
        _
      %p267 = scmp.le.s32.totalorder 1, %s12
      %p268 = scmp.lt.s32.totalorder %s12, 13
      %p269 = pnand %p267, %p268
      %p270 = pneg %p269
      // Predicated region
      $region137: #{custom-call.5} parent=5 // pred_check
        _
      $region138: #{custom-call.5} parent=5 // pred_check_branch
        %272 = sbr.rel (%p269) target = $region140
      $region139: #{custom-call.5} parent=5 // pred_region
        #allocation18 [shape = 'f32[2,2]{1,0}', space=vmem, size = 0x1000, scoped, tag = 'a top-left matrix']
        #allocation19 [shape = 'f32[2,2]{1,0}', space=vmem, size = 0x1000, scoped, tag = 'a top-right matrix']
        #allocation20 [shape = 'f32[2,2]{1,0}', space=vmem, size = 0x1000, scoped, tag = 'a bottom-left matrix']
        #allocation21 [shape = 'f32[2,2]{1,0}', space=vmem, size = 0x1000, scoped, tag = 'a bottom-right matrix']
        %s273 = ssub.s32 %s12, 1
        %s274 = sand.u32 %s17, 1
        %s275 = sand.u32 %s17, 1
        %s276 = smul.addr %s275, 2
        %s277 = scalar_lea.vmem [#allocation1], %s276
        %s278 = sand.u32 %s17, 1
        %s279 = sand.u32 %s17, 1
        %s280 = smul.addr %s279, 2
        %s281 = scalar_lea.vmem [#allocation3], %s280
        %s282 = sand.u32 %s17, 1
        %s283 = sand.u32 %s17, 1
        %s284 = smul.addr %s283, 2
        %s285 = scalar_lea.vmem [#allocation5], %s284
        %s286 = sand.u32 %s17, 1
        %s287 = sand.u32 %s17, 1
        %s288 = smul.addr %s287, 2
        %s289 = scalar_lea.vmem [#allocation7], %s288
        %s290 = sand.u32 %s17, 1
        %s291 = sand.u32 %s17, 1
        %s292 = smul.addr %s291, 2
        %s293 = scalar_lea.vmem [#allocation1], %s292
        %s294 = sand.u32 %s17, 1
        %s295 = sand.u32 %s17, 1
        %s296 = smul.addr %s295, 2
        %s297 = scalar_lea.vmem [#allocation3], %s296
        %s298 = sand.u32 %s17, 1
        %s299 = sand.u32 %s17, 1
        %s300 = smul.addr %s299, 2
        %s301 = scalar_lea.vmem [#allocation5], %s300
        %s302 = sand.u32 %s17, 1
        %s303 = sand.u32 %s17, 1
        %s304 = smul.addr %s303, 2
        %s305 = scalar_lea.vmem [#allocation7], %s304
        %p306 = pneg %p54
        %p307 = pneg %p51
        %s308 = sand.u32 %s41, 1
        %s309 = sand.u32 %s41, 1
        %s310 = smul.addr %s309, 8
        %s311 = scalar_lea.vmem [#allocation8], %s310
        %p312 = pneg %p84
        %p313 = pneg %p81
        %s314 = sand.u32 %s71, 1
        %s315 = sand.u32 %s71, 1
        %s316 = smul.addr %s315, 8
        %s317 = scalar_lea.vmem [#allocation9], %s316
        %s318 = sand.u32 %s17, 1
        %s319 = sand.u32 %s17, 1
        %s320 = smul.addr %s319, 2
        %s321 = scalar_lea.vmem [#allocation11], %s320
        %s322 = sand.u32 %s17, 1
        %s323 = sand.u32 %s17, 1
        %s324 = smul.addr %s323, 2
        %s325 = scalar_lea.vmem [#allocation13], %s324
        %s326 = sand.u32 %s17, 1
        %s327 = sand.u32 %s17, 1
        %s328 = smul.addr %s327, 2
        %s329 = scalar_lea.vmem [#allocation15], %s328
        %s330 = sand.u32 %s17, 1
        %s331 = sand.u32 %s17, 1
        %s332 = smul.addr %s331, 2
        %s333 = scalar_lea.vmem [#allocation17], %s332
        %s335 = sshll.u32 1, 2
        %s336 = ssub.s32 %s335, 1
        %v337 = vld [vmem:[%s293] sm:%s336]
        %338 = vst [vmem:[#allocation0] sm:%s336] %v337
        %s340 = sshll.u32 1, 2
        %s341 = ssub.s32 %s340, 1
        %v342 = vld [vmem:[%s297] sm:%s341]
        %343 = vst [vmem:[#allocation2] sm:%s341] %v342
        %s345 = sshll.u32 1, 2
        %s346 = ssub.s32 %s345, 1
        %v347 = vld [vmem:[%s301] sm:%s346]
        %348 = vst [vmem:[#allocation4] sm:%s346] %v347
        %s350 = sshll.u32 1, 2
        %s351 = ssub.s32 %s350, 1
        %v352 = vld [vmem:[%s305] sm:%s351]
        %353 = vst [vmem:[#allocation6] sm:%s351] %v352
        %s354 = sshrl.u32 %s22, 3
        %s355 = sshrl.u32 %s22, 3
        %s356 = smov [#allocation18]
        %v357 = vld [vmem:[#allocation0] sm:$0xff]
        %358 = vst [vmem:[%s356] sm:$0xff] %v357
        %s359 = smov [#allocation19]
        %v360 = vld [vmem:[#allocation2] sm:$0xff]
        %361 = vst [vmem:[%s359] sm:$0xff] %v360
        %s362 = smov [#allocation20]
        %v363 = vld [vmem:[#allocation4] sm:$0xff]
        %364 = vst [vmem:[%s362] sm:$0xff] %v363
        %s365 = smov [#allocation21]
        %v366 = vld [vmem:[#allocation6] sm:$0xff]
        %367 = vst [vmem:[%s365] sm:$0xff] %v366
        %368 = vst [vmem:[#allocation10] sm:$0xff] 0.0
        %369 = vst [vmem:[#allocation12] sm:$0xff] 0.0
        %370 = vst [vmem:[#allocation14] sm:$0xff] 0.0
        %371 = vst [vmem:[#allocation16] sm:$0xff] 0.0
        %s372 = smov [#allocation10]
        %v373 = vlaneseq
        %v374 = vand.u32 %v373, 127
        %v375 = vmov %v374
        %v376 = vlaneseq
        %v377 = vshrl.u32 %v376, 7
        %v378 = vmov %v377
        %v379 = vld [vmem:[%s372] sm:$0x3]
        %vm382 = vcmp.eq.s32.totalorder %v378, %v375
        %v383 = vsel %vm382, 1.0, %v379
        %384 = vst [vmem:[%s372] sm:$0x3] %v383
        %s385 = smov [#allocation16]
        %v386 = vlaneseq
        %v387 = vand.u32 %v386, 127
        %v388 = vmov %v387
        %v389 = vlaneseq
        %v390 = vshrl.u32 %v389, 7
        %v391 = vmov %v390
        %v392 = vld [vmem:[%s385] sm:$0x3]
        %vm395 = vcmp.eq.s32.totalorder %v391, %v388
        %v396 = vsel %vm395, 1.0, %v392
        %397 = vst [vmem:[%s385] sm:$0x3] %v396
        // While loop
        $region141: #{custom-call.5} parent=139 // loop_pre_header
          _
        $region142: #{custom-call.5} parent=139 // loop_header
          %s399 = sphi 0, %s941
          %v400 = vlaneseq
          %v401 = vand.u32 %v400, 127
          %v402 = vmov %v401
          %v403 = vlaneseq
          %v404 = vshrl.u32 %v403, 7
          %v405 = vmov %v404
          %s406 = smov [#allocation18]
          %v407 = vlaneseq
          %v408 = vand.u32 %v407, 127
          %vm409 = vcmp.ge.s32.totalorder %v408, 0
          %vm410 = vcmp.lt.s32.totalorder %v408, 2
          %vm411 = vmand %vm409, %vm410
          %v412 = vld [vmem:[%s406] sm:$0x3]
          %v413 = vsel %vm411, %v412, 0.0
          %v414 = vmul.f32 %v413, %v413
          %vm417 = vcmp.eq.s32.totalorder %v405, %v402
          %v418 = vsel %vm417, 0.0, %v414
          %v419 = vlaneseq
          %v420 = vand.u32 %v419, 127
          %v421 = vmov %v420
          %v422 = vlaneseq
          %v423 = vshrl.u32 %v422, 7
          %v424 = vmov %v423
          %s425 = smov [#allocation19]
          %v426 = vlaneseq
          %v427 = vand.u32 %v426, 127
          %vm428 = vcmp.ge.s32.totalorder %v427, 0
          %vm429 = vcmp.lt.s32.totalorder %v427, 2
          %vm430 = vmand %vm428, %vm429
          %v431 = vld [vmem:[%s425] sm:$0x3]
          %v432 = vsel %vm430, %v431, 0.0
          %v433 = vmul.f32 %v432, %v432
          %v434 = vadd.f32 %v418, %v433
          %v435 = vadd.f32 %v414, %v433
          %v436 = vlaneseq
          %v437 = vand.u32 %v436, 127
          %v438 = vmov %v437
          %v439 = vlaneseq
          %v440 = vshrl.u32 %v439, 7
          %v441 = vmov %v440
          %s442 = smov [#allocation20]
          %v443 = vlaneseq
          %v444 = vand.u32 %v443, 127
          %vm445 = vcmp.ge.s32.totalorder %v444, 0
          %vm446 = vcmp.lt.s32.totalorder %v444, 2
          %vm447 = vmand %vm445, %vm446
          %v448 = vld [vmem:[%s442] sm:$0x3]
          %v449 = vsel %vm447, %v448, 0.0
          %v450 = vmul.f32 %v449, %v449
          %v451 = vadd.f32 %v434, %v450
          %v452 = vadd.f32 %v435, %v450
          %v453 = vlaneseq
          %v454 = vand.u32 %v453, 127
          %v455 = vmov %v454
          %v456 = vlaneseq
          %v457 = vshrl.u32 %v456, 7
          %v458 = vmov %v457
          %s459 = smov [#allocation21]
          %v460 = vlaneseq
          %v461 = vand.u32 %v460, 127
          %vm462 = vcmp.ge.s32.totalorder %v461, 0
          %vm463 = vcmp.lt.s32.totalorder %v461, 2
          %vm464 = vmand %vm462, %vm463
          %v465 = vld [vmem:[%s459] sm:$0x3]
          %v466 = vsel %vm464, %v465, 0.0
          %v467 = vmul.f32 %v466, %v466
          %vm470 = vcmp.eq.s32.totalorder %v458, %v455
          %v471 = vsel %vm470, 0.0, %v467
          %v472 = vadd.f32 %v451, %v471
          %v473 = vadd.f32 %v452, %v467
          %474 = vadd.xlane.f32.xlu0 %v473
          %v475 = vpop.xlane.xlu0 %474
          %v476 = vrot.slane %v475, 4
          %v477 = vadd.f32 %v475, %v476
          %v478 = vrot.slane %v477, 2
          %v479 = vadd.f32 %v477, %v478
          %v480 = vrot.slane %v479, 1
          %v481 = vadd.f32 %v479, %v480
          %482 = vadd.xlane.f32.xlu0 %v472
          %v483 = vpop.xlane.xlu0 %482
          %v484 = vrot.slane %v483, 4
          %v485 = vadd.f32 %v483, %v484
          %v486 = vrot.slane %v485, 2
          %v487 = vadd.f32 %v485, %v486
          %v488 = vrot.slane %v487, 1
          %v489 = vadd.f32 %v487, %v488
          %s490 = vtos %v489
          %s491 = vtos %v481
          %s492 = smul.f32 1e-10, %s491
          %p493 = scmp.le.f32.partialorder %s490, %s492
          %p494 = scmp.ge.s32.totalorder %s399, 15
          %p495 = por %p493, %p494
        $region143: #{custom-call.5} parent=139 // loop_header_branch
          %943 = sbr.rel (%p495) target = $region147
        $region144: #{custom-call.5} parent=139 // loop_body
          loop: start=0, step=1, limit=3
          $region148: #{custom-call.5} parent=144 // loop_pre_header
            _
          $region149: #{custom-call.5} parent=144 // loop_header
            %s497 = sphi 0, %s501
            %p498 = scmp.ge.s32.totalorder %s497, 3
          $region150: #{custom-call.5} parent=144 // loop_header_branch
            %500 = sbr.rel (%p498) target = $region154
          $region151: #{custom-call.5} parent=144 // loop_body
            #allocation22 [shape = 'f32[1024]{0}', space=vmem, size = 0x1000, scoped, tag = 'a_tl_diag vmem']
            #allocation23 [shape = 'f32[1024]{0}', space=vmem, size = 0x1000, scoped, tag = 'a_tr_diag vmem']
            #allocation24 [shape = 'f32[1024]{0}', space=vmem, size = 0x1000, scoped, tag = 'a_br_diag vmem']
            #allocation25 [shape = 'f32[1024]{0}', space=vmem, size = 0x1000, scoped, tag = 'rt1 vmem']
            #allocation26 [shape = 'f32[1024]{0}', space=vmem, size = 0x1000, scoped, tag = 'rt2 vmem']
            #allocation27 [shape = 'f32[1024]{0}', space=vmem, size = 0x1000, scoped, tag = 'c vmem']
            #allocation28 [shape = 'f32[1024]{0}', space=vmem, size = 0x1000, scoped, tag = 's vmem']
            #allocation29 [shape = 'f32[4096]{0}', space=vmem, size = 0x4000, scoped, tag = 'c broadcast']
            #allocation30 [shape = 'f32[4096]{0}', space=vmem, size = 0x4000, scoped, tag = 's broadcast']
            %s502 = smov [#allocation18]
            %s503 = smov [#allocation22]
            %v504 = vlaneseq
            %v505 = vand.u32 %v504, 127
            %v506 = vmov %v505
            %v507 = vlaneseq
            %v508 = vshrl.u32 %v507, 7
            %v509 = vmov %v508
            %v510 = vld [vmem:[%s502] sm:$0x3]
            %vm513 = vcmp.eq.s32.totalorder %v509, %v506
            %v514 = vsel %vm513, %v510, 0.0
            %v515 = vrot.slane %v514, 4
            %v516 = vadd.f32 %v514, %v515
            %v517 = vrot.slane %v516, 2
            %v518 = vadd.f32 %v516, %v517
            %v519 = vrot.slane %v518, 1
            %v520 = vadd.f32 %v518, %v519
            %521 = vst [vmem:[%s503] sm:$0x1] %v520
            %s522 = smov [#allocation19]
            %s523 = smov [#allocation23]
            %v524 = vlaneseq
            %v525 = vand.u32 %v524, 127
            %v526 = vmov %v525
            %v527 = vlaneseq
            %v528 = vshrl.u32 %v527, 7
            %v529 = vmov %v528
            %v530 = vld [vmem:[%s522] sm:$0x3]
            %vm533 = vcmp.eq.s32.totalorder %v529, %v526
            %v534 = vsel %vm533, %v530, 0.0
            %v535 = vrot.slane %v534, 4
            %v536 = vadd.f32 %v534, %v535
            %v537 = vrot.slane %v536, 2
            %v538 = vadd.f32 %v536, %v537
            %v539 = vrot.slane %v538, 1
            %v540 = vadd.f32 %v538, %v539
            %541 = vst [vmem:[%s523] sm:$0x1] %v540
            %s542 = smov [#allocation21]
            %s543 = smov [#allocation24]
            %v544 = vlaneseq
            %v545 = vand.u32 %v544, 127
            %v546 = vmov %v545
            %v547 = vlaneseq
            %v548 = vshrl.u32 %v547, 7
            %v549 = vmov %v548
            %v550 = vld [vmem:[%s542] sm:$0x3]
            %vm553 = vcmp.eq.s32.totalorder %v549, %v546
            %v554 = vsel %vm553, %v550, 0.0
            %v555 = vrot.slane %v554, 4
            %v556 = vadd.f32 %v554, %v555
            %v557 = vrot.slane %v556, 2
            %v558 = vadd.f32 %v556, %v557
            %v559 = vrot.slane %v558, 1
            %v560 = vadd.f32 %v558, %v559
            %561 = vst [vmem:[%s543] sm:$0x1] %v560
            %s562 = smov [#allocation27]
            %s563 = smov [#allocation28]
            %s564 = smov [#allocation22]
            %v565 = vld [vmem:[%s564] sm:$0xff]
            %s566 = smov [#allocation23]
            %v567 = vld [vmem:[%s566] sm:$0xff]
            %s568 = smov [#allocation24]
            %v569 = vld [vmem:[%s568] sm:$0xff]
            %v570 = vsub.f32 %v569, %v565
            %v571 = vmul.f32 2.0, %v567
            %v572 = vrcp.pop %v571
            %v573 = vmul.f32 %v570, %v572
            %vm574 = vcmp.ge.f32.partialorder %v573, 0.0
            %v575 = vmul.f32 %v573, %v573
            %v576 = vadd.f32 1.0, %v575
            %v577 = vrsqrt.pop %v576
            %v578 = vmul.f32 %v576, %v577
            %vm579 = vcmp.eq.f32.partialorder %v576, inf
            %v580 = vsel %vm579, %v576, %v578
            %vm581 = vcmp.eq.f32.partialorder %v576, 0.0
            %v582 = vand.u32 %v576, 2147483648
            %v583 = vsel %vm581, %v582, %v580
            %v584 = vxor.u32 %v583, 2147483648
            %v585 = vsel %vm574, %v583, %v584
            %v586 = vadd.f32 %v573, %v585
            %v587 = vrcp.pop %v586
            %v588 = vand.u32 2147483647, %v565
            %v589 = vand.u32 2147483647, %v567
            %v590 = vand.u32 2147483647, %v569
            %v591 = vmin.f32 %v588, %v590
            %v592 = vmul.f32 1.1920929e-08, %v591
            %vm593 = vcmp.le.f32.partialorder %v589, %v592
            %v594 = vsel %vm593, 0.0, %v587
            %v595 = vmul.f32 %v594, %v594
            %v596 = vadd.f32 1.0, %v595
            %v597 = vrsqrt.pop %v596
            %v598 = vmul.f32 %v594, %v597
            %v599 = vmul.f32 %v594, %v567
            %v600 = vsub.f32 %v565, %v599
            %v601 = vmul.f32 %v594, %v567
            %v602 = vadd.f32 %v569, %v601
            %s603 = smov [#allocation25]
            %604 = vst [vmem:[%s603] sm:$0xff] %v600
            %s605 = smov [#allocation26]
            %606 = vst [vmem:[%s605] sm:$0xff] %v602
            %s607 = smov %s562
            %608 = vst [vmem:[%s607] sm:$0xff] %v597
            %s609 = smov %s563
            %610 = vst [vmem:[%s609] sm:$0xff] %v598
            %s611 = smov [#allocation27]
            %v612 = vld [vmem:[%s611] ss:$0 sm:$0xff]
            %v613 = vlaneseq
            %v614 = vand.u32 %v613, 127
            %v615 = vmov %v614
            %v616 = vlaneseq
            %v617 = vshrl.u32 %v616, 7
            %v618 = vmov %v617
            %vm620 = vcmp.eq.s32.totalorder %v618, %v615
            %v621 = vsel %vm620, %v612, 0.0
            %622 = vadd.xlane.f32.xlu0 %v621
            %v623 = vpop.xlane.xlu0 %622
            %s624 = smov [#allocation29]
            %625 = vst [vmem:[%s624] sm:$0xff] %v623
            %s626 = smov [#allocation28]
            %v627 = vld [vmem:[%s626] ss:$0 sm:$0xff]
            %v628 = vlaneseq
            %v629 = vand.u32 %v628, 127
            %v630 = vmov %v629
            %v631 = vlaneseq
            %v632 = vshrl.u32 %v631, 7
            %v633 = vmov %v632
            %vm635 = vcmp.eq.s32.totalorder %v633, %v630
            %v636 = vsel %vm635, %v627, 0.0
            %637 = vadd.xlane.f32.xlu0 %v636
            %v638 = vpop.xlane.xlu0 %637
            %s639 = smov [#allocation30]
            %640 = vst [vmem:[%s639] sm:$0xff] %v638
            %s641 = smov [#allocation29]
            %v642 = vld [vmem:[%s641] sm:$0xff]
            %s643 = smov [#allocation30]
            %v644 = vld [vmem:[%s643] sm:$0xff]
            %s645 = smov [#allocation18]
            %s646 = smov [#allocation19]
            %s647 = smov [#allocation20]
            %s648 = smov [#allocation21]
            %v649 = vld [vmem:[%s645] sm:$0x3]
            %v650 = vld [vmem:[%s646] sm:$0x3]
            %v651 = vld [vmem:[%s647] sm:$0x3]
            %v652 = vld [vmem:[%s648] sm:$0x3]
            %v653 = vmul.f32 %v642, %v649
            %v654 = vmul.f32 %v644, %v651
            %v655 = vsub.f32 %v653, %v654
            %v656 = vmul.f32 %v642, %v650
            %v657 = vmul.f32 %v644, %v652
            %v658 = vsub.f32 %v656, %v657
            %v659 = vmul.f32 %v644, %v649
            %v660 = vmul.f32 %v642, %v651
            %v661 = vadd.f32 %v659, %v660
            %v662 = vmul.f32 %v644, %v650
            %v663 = vmul.f32 %v642, %v652
            %v664 = vadd.f32 %v662, %v663
            %665 = vst [vmem:[%s645] sm:$0x3] %v655
            %666 = vst [vmem:[%s646] sm:$0x3] %v658
            %667 = vst [vmem:[%s647] sm:$0x3] %v661
            %668 = vst [vmem:[%s648] sm:$0x3] %v664
            %s669 = smov [#allocation27]
            %v670 = vld [vmem:[%s669] ss:$0 sm:$0xff]
            %s671 = smov [#allocation28]
            %v672 = vld [vmem:[%s671] ss:$0 sm:$0xff]
            %s673 = smov [#allocation18]
            %s674 = smov [#allocation19]
            %s675 = smov [#allocation20]
            %s676 = smov [#allocation21]
            %v677 = vld [vmem:[%s673] sm:$0x3]
            %v678 = vld [vmem:[%s674] sm:$0x3]
            %v679 = vld [vmem:[%s675] sm:$0x3]
            %v680 = vld [vmem:[%s676] sm:$0x3]
            %v681 = vmul.f32 %v670, %v677
            %v682 = vmul.f32 %v672, %v678
            %v683 = vsub.f32 %v681, %v682
            %v684 = vmul.f32 %v672, %v677
            %v685 = vmul.f32 %v670, %v678
            %v686 = vadd.f32 %v684, %v685
            %v687 = vmul.f32 %v670, %v679
            %v688 = vmul.f32 %v672, %v680
            %v689 = vsub.f32 %v687, %v688
            %v690 = vmul.f32 %v672, %v679
            %v691 = vmul.f32 %v670, %v680
            %v692 = vadd.f32 %v690, %v691
            %693 = vst [vmem:[%s673] sm:$0x3] %v683
            %694 = vst [vmem:[%s674] sm:$0x3] %v686
            %695 = vst [vmem:[%s675] sm:$0x3] %v689
            %696 = vst [vmem:[%s676] sm:$0x3] %v692
            %s697 = smov [#allocation18]
            %s698 = smov [#allocation25]
            %v699 = vlaneseq
            %v700 = vand.u32 %v699, 127
            %v701 = vmov %v700
            %v702 = vlaneseq
            %v703 = vshrl.u32 %v702, 7
            %v704 = vmov %v703
            %v705 = vld [vmem:[%s698] ss:$0 sm:$0xff]
            %v706 = vld [vmem:[%s697] sm:$0x3]
            %vm709 = vcmp.eq.s32.totalorder %v704, %v701
            %v710 = vsel %vm709, %v705, %v706
            %711 = vst [vmem:[%s697] sm:$0x3] %v710
            %s712 = smov [#allocation19]
            %v713 = vlaneseq
            %v714 = vand.u32 %v713, 127
            %v715 = vmov %v714
            %v716 = vlaneseq
            %v717 = vshrl.u32 %v716, 7
            %v718 = vmov %v717
            %v719 = vld [vmem:[%s712] sm:$0x3]
            %vm722 = vcmp.eq.s32.totalorder %v718, %v715
            %v723 = vsel %vm722, 0.0, %v719
            %724 = vst [vmem:[%s712] sm:$0x3] %v723
            %s725 = smov [#allocation20]
            %v726 = vlaneseq
            %v727 = vand.u32 %v726, 127
            %v728 = vmov %v727
            %v729 = vlaneseq
            %v730 = vshrl.u32 %v729, 7
            %v731 = vmov %v730
            %v732 = vld [vmem:[%s725] sm:$0x3]
            %vm735 = vcmp.eq.s32.totalorder %v731, %v728
            %v736 = vsel %vm735, 0.0, %v732
            %737 = vst [vmem:[%s725] sm:$0x3] %v736
            %s738 = smov [#allocation21]
            %s739 = smov [#allocation26]
            %v740 = vlaneseq
            %v741 = vand.u32 %v740, 127
            %v742 = vmov %v741
            %v743 = vlaneseq
            %v744 = vshrl.u32 %v743, 7
            %v745 = vmov %v744
            %v746 = vld [vmem:[%s739] ss:$0 sm:$0xff]
            %v747 = vld [vmem:[%s738] sm:$0x3]
            %vm750 = vcmp.eq.s32.totalorder %v745, %v742
            %v751 = vsel %vm750, %v746, %v747
            %752 = vst [vmem:[%s738] sm:$0x3] %v751
            %s753 = smov [#allocation18]
            %s754 = smov [#allocation19]
            %v755 = vld [vmem:[%s754] sm:$0x3]
            %756 = vrot.lane.b32.xlu0 %v755, 1
            %v757 = vpop.permute.xlu0 %756
            %v758 = vld [vmem:[%s753] sm:$0x3]
            %v759 = vld [vmem:[%s753] sm:$0x3]
            %760 = vrot.lane.b32.xlu0 %v759, 1
            %v761 = vpop.permute.xlu0 %760
            %v762 = vlaneseq
            %v763 = vand.u32 %v762, 127
            %vm764 = vcmp.eq.s32.totalorder %v763, 0
            %v765 = vsel %vm764, %v759, %v761
            %v766 = vlaneseq
            %v767 = vand.u32 %v766, 127
            %vm768 = vcmp.eq.s32.totalorder %v767, 1
            %v769 = vsel %vm768, %v757, %v765
            %v770 = vlaneseq
            %v771 = vand.u32 %v770, 127
            %vm772 = vcmp.ge.s32.totalorder %v771, 0
            %vm773 = vcmp.lt.s32.totalorder %v771, 2
            %vm774 = vmand %vm772, %vm773
            %v775 = vsel %vm774, %v769, 0.0
            %v776 = vld [vmem:[%s754] sm:$0x3]
            %777 = vrot.lane.b32.xlu0 %v776, 127
            %v778 = vpop.permute.xlu0 %777
            %v779 = vlaneseq
            %v780 = vand.u32 %v779, 127
            %vm781 = vcmp.eq.s32.totalorder %v780, 1
            %v782 = vsel %vm781, %v758, %v778
            %783 = vst [vmem:[%s753] sm:$0x3] %v775
            %784 = vst [vmem:[%s754] sm:$0x3] %v782
            %s785 = smov [#allocation20]
            %s786 = smov [#allocation21]
            %v787 = vld [vmem:[%s786] sm:$0x3]
            %788 = vrot.lane.b32.xlu0 %v787, 1
            %v789 = vpop.permute.xlu0 %788
            %v790 = vld [vmem:[%s785] sm:$0x3]
            %v791 = vld [vmem:[%s785] sm:$0x3]
            %792 = vrot.lane.b32.xlu0 %v791, 1
            %v793 = vpop.permute.xlu0 %792
            %v794 = vlaneseq
            %v795 = vand.u32 %v794, 127
            %vm796 = vcmp.eq.s32.totalorder %v795, 0
            %v797 = vsel %vm796, %v791, %v793
            %v798 = vlaneseq
            %v799 = vand.u32 %v798, 127
            %vm800 = vcmp.eq.s32.totalorder %v799, 1
            %v801 = vsel %vm800, %v789, %v797
            %v802 = vlaneseq
            %v803 = vand.u32 %v802, 127
            %vm804 = vcmp.ge.s32.totalorder %v803, 0
            %vm805 = vcmp.lt.s32.totalorder %v803, 2
            %vm806 = vmand %vm804, %vm805
            %v807 = vsel %vm806, %v801, 0.0
            %v808 = vld [vmem:[%s786] sm:$0x3]
            %809 = vrot.lane.b32.xlu0 %v808, 127
            %v810 = vpop.permute.xlu0 %809
            %v811 = vlaneseq
            %v812 = vand.u32 %v811, 127
            %vm813 = vcmp.eq.s32.totalorder %v812, 1
            %v814 = vsel %vm813, %v790, %v810
            %815 = vst [vmem:[%s785] sm:$0x3] %v807
            %816 = vst [vmem:[%s786] sm:$0x3] %v814
            %s817 = smov [#allocation18]
            %s818 = smov [#allocation20]
            %v819 = vld [vmem:[%s817] ss:$0 sm:$0xff]
            %s821 = scalar_lea.vmem %s817, 4294967295
            %v822 = vld [vmem:[%s821] sm:$0x2]
            %v823 = vlaneseq
            %v824 = vshrl.u32 %v823, 7
            %vm825 = vcmp.eq.s32.totalorder %v824, 0
            %v826 = vsel %vm825, %v819, %v822
            %s827 = scalar_lea.vmem %s817, 1
            %v828 = vld [vmem:[%s827] ss:$0 sm:$0xff]
            %829 = vst [vmem:[%s817] sm:$0x3] %v826
            %v830 = vld [vmem:[%s818] ss:$0 sm:$0xff]
            %s831 = scalar_lea.vmem %s817, 1
            %832 = vst [vmem:[%s831] sm:$0x1] %v830
            %s833 = scalar_lea.vmem %s818, 1
            %v834 = vld [vmem:[%s833] sm:$0x1]
            %v835 = vlaneseq
            %v836 = vshrl.u32 %v835, 7
            %vm837 = vcmp.eq.s32.totalorder %v836, 1
            %v838 = vsel %vm837, %v828, %v834
            %v839 = vld [vmem:[%s818] ss:$0 sm:$0xff]
            %840 = vst [vmem:[%s818] sm:$0x3] %v838
            %s841 = smov [#allocation19]
            %s842 = smov [#allocation21]
            %v843 = vld [vmem:[%s841] ss:$0 sm:$0xff]
            %s845 = scalar_lea.vmem %s841, 4294967295
            %v846 = vld [vmem:[%s845] sm:$0x2]
            %v847 = vlaneseq
            %v848 = vshrl.u32 %v847, 7
            %vm849 = vcmp.eq.s32.totalorder %v848, 0
            %v850 = vsel %vm849, %v843, %v846
            %s851 = scalar_lea.vmem %s841, 1
            %v852 = vld [vmem:[%s851] ss:$0 sm:$0xff]
            %853 = vst [vmem:[%s841] sm:$0x3] %v850
            %v854 = vld [vmem:[%s842] ss:$0 sm:$0xff]
            %s855 = scalar_lea.vmem %s841, 1
            %856 = vst [vmem:[%s855] sm:$0x1] %v854
            %s857 = scalar_lea.vmem %s842, 1
            %v858 = vld [vmem:[%s857] sm:$0x1]
            %v859 = vlaneseq
            %v860 = vshrl.u32 %v859, 7
            %vm861 = vcmp.eq.s32.totalorder %v860, 1
            %v862 = vsel %vm861, %v852, %v858
            %v863 = vld [vmem:[%s842] ss:$0 sm:$0xff]
            %864 = vst [vmem:[%s842] sm:$0x3] %v862
            %s865 = smov [#allocation29]
            %v866 = vld [vmem:[%s865] sm:$0xff]
            %s867 = smov [#allocation30]
            %v868 = vld [vmem:[%s867] sm:$0xff]
            %s869 = smov [#allocation10]
            %s870 = smov [#allocation12]
            %s871 = smov [#allocation14]
            %s872 = smov [#allocation16]
            %v873 = vld [vmem:[%s869] sm:$0x3]
            %v874 = vld [vmem:[%s870] sm:$0x3]
            %v875 = vld [vmem:[%s871] sm:$0x3]
            %v876 = vld [vmem:[%s872] sm:$0x3]
            %v877 = vmul.f32 %v866, %v873
            %v878 = vmul.f32 %v868, %v875
            %v879 = vsub.f32 %v877, %v878
            %v880 = vmul.f32 %v866, %v874
            %v881 = vmul.f32 %v868, %v876
            %v882 = vsub.f32 %v880, %v881
            %v883 = vmul.f32 %v868, %v873
            %v884 = vmul.f32 %v866, %v875
            %v885 = vadd.f32 %v883, %v884
            %v886 = vmul.f32 %v868, %v874
            %v887 = vmul.f32 %v866, %v876
            %v888 = vadd.f32 %v886, %v887
            %889 = vst [vmem:[%s869] sm:$0x3] %v879
            %890 = vst [vmem:[%s870] sm:$0x3] %v882
            %891 = vst [vmem:[%s871] sm:$0x3] %v885
            %892 = vst [vmem:[%s872] sm:$0x3] %v888
            %s893 = smov [#allocation10]
            %s894 = smov [#allocation14]
            %v895 = vld [vmem:[%s893] ss:$0 sm:$0xff]
            %s897 = scalar_lea.vmem %s893, 4294967295
            %v898 = vld [vmem:[%s897] sm:$0x2]
            %v899 = vlaneseq
            %v900 = vshrl.u32 %v899, 7
            %vm901 = vcmp.eq.s32.totalorder %v900, 0
            %v902 = vsel %vm901, %v895, %v898
            %s903 = scalar_lea.vmem %s893, 1
            %v904 = vld [vmem:[%s903] ss:$0 sm:$0xff]
            %905 = vst [vmem:[%s893] sm:$0x3] %v902
            %v906 = vld [vmem:[%s894] ss:$0 sm:$0xff]
            %s907 = scalar_lea.vmem %s893, 1
            %908 = vst [vmem:[%s907] sm:$0x1] %v906
            %s909 = scalar_lea.vmem %s894, 1
            %v910 = vld [vmem:[%s909] sm:$0x1]
            %v911 = vlaneseq
            %v912 = vshrl.u32 %v911, 7
            %vm913 = vcmp.eq.s32.totalorder %v912, 1
            %v914 = vsel %vm913, %v904, %v910
            %v915 = vld [vmem:[%s894] ss:$0 sm:$0xff]
            %916 = vst [vmem:[%s894] sm:$0x3] %v914
            %s917 = smov [#allocation12]
            %s918 = smov [#allocation16]
            %v919 = vld [vmem:[%s917] ss:$0 sm:$0xff]
            %s921 = scalar_lea.vmem %s917, 4294967295
            %v922 = vld [vmem:[%s921] sm:$0x2]
            %v923 = vlaneseq
            %v924 = vshrl.u32 %v923, 7
            %vm925 = vcmp.eq.s32.totalorder %v924, 0
            %v926 = vsel %vm925, %v919, %v922
            %s927 = scalar_lea.vmem %s917, 1
            %v928 = vld [vmem:[%s927] ss:$0 sm:$0xff]
            %929 = vst [vmem:[%s917] sm:$0x3] %v926
            %v930 = vld [vmem:[%s918] ss:$0 sm:$0xff]
            %s931 = scalar_lea.vmem %s917, 1
            %932 = vst [vmem:[%s931] sm:$0x1] %v930
            %s933 = scalar_lea.vmem %s918, 1
            %v934 = vld [vmem:[%s933] sm:$0x1]
            %v935 = vlaneseq
            %v936 = vshrl.u32 %v935, 7
            %vm937 = vcmp.eq.s32.totalorder %v936, 1
            %v938 = vsel %vm937, %v928, %v934
            %v939 = vld [vmem:[%s918] ss:$0 sm:$0xff]
            %940 = vst [vmem:[%s918] sm:$0x3] %v938
          $region152: #{custom-call.5} parent=144 // loop_footer
            %s501 = sadd.s32 1, %s497
          $region153: #{custom-call.5} parent=144 // loop_footer_branch
            %496 = sbr.rel target = $region149
          $region154: #{custom-call.5} parent=144 // loop_exit
            _
          %s941 = sadd.s32 %s399, 1
        $region145: #{custom-call.5} parent=139 // loop_footer
          _
        $region146: #{custom-call.5} parent=139 // loop_footer_branch
          %398 = sbr.rel target = $region142
        $region147: #{custom-call.5} parent=139 // loop_exit
          _
        %s944 = sand.u32 %s22, 7
        %s945 = scalar_lea.vmem %s311, %s944 [#allocation8]
        %s946 = sand.u32 %s22, 7
        %s947 = scalar_lea.vmem %s317, %s946 [#allocation9]
        %s948 = smov [#allocation18]
        %s949 = smov %s945
        %v950 = vlaneseq
        %v951 = vand.u32 %v950, 127
        %v952 = vmov %v951
        %v953 = vlaneseq
        %v954 = vshrl.u32 %v953, 7
        %v955 = vmov %v954
        %v956 = vld [vmem:[%s948] sm:$0x3]
        %vm959 = vcmp.eq.s32.totalorder %v955, %v952
        %v960 = vsel %vm959, %v956, 0.0
        %v961 = vrot.slane %v960, 4
        %v962 = vadd.f32 %v960, %v961
        %v963 = vrot.slane %v962, 2
        %v964 = vadd.f32 %v962, %v963
        %v965 = vrot.slane %v964, 1
        %v966 = vadd.f32 %v964, %v965
        %967 = vst [vmem:[%s949] sm:$0x1] %v966
        %s968 = smov [#allocation21]
        %s969 = smov %s947
        %v970 = vlaneseq
        %v971 = vand.u32 %v970, 127
        %v972 = vmov %v971
        %v973 = vlaneseq
        %v974 = vshrl.u32 %v973, 7
        %v975 = vmov %v974
        %v976 = vld [vmem:[%s968] sm:$0x3]
        %vm979 = vcmp.eq.s32.totalorder %v975, %v972
        %v980 = vsel %vm979, %v976, 0.0
        %v981 = vrot.slane %v980, 4
        %v982 = vadd.f32 %v980, %v981
        %v983 = vrot.slane %v982, 2
        %v984 = vadd.f32 %v982, %v983
        %v985 = vrot.slane %v984, 1
        %v986 = vadd.f32 %v984, %v985
        %987 = vst [vmem:[%s969] sm:$0x1] %v986
        %s989 = sshll.u32 1, 2
        %s990 = ssub.s32 %s989, 1
        %v992 = vld [vmem:[#allocation10] sm:%s990]
        %s993 = sshll.u32 1, 2
        %s994 = ssub.s32 %s993, 1
        %995 = vst [vmem:[%s321] sm:%s994] %v992
        %s997 = sshll.u32 1, 2
        %s998 = ssub.s32 %s997, 1
        %v1000 = vld [vmem:[#allocation12] sm:%s998]
        %s1001 = sshll.u32 1, 2
        %s1002 = ssub.s32 %s1001, 1
        %1003 = vst [vmem:[%s325] sm:%s1002] %v1000
        %s1005 = sshll.u32 1, 2
        %s1006 = ssub.s32 %s1005, 1
        %v1008 = vld [vmem:[#allocation14] sm:%s1006]
        %s1009 = sshll.u32 1, 2
        %s1010 = ssub.s32 %s1009, 1
        %1011 = vst [vmem:[%s329] sm:%s1010] %v1008
        %s1013 = sshll.u32 1, 2
        %s1014 = ssub.s32 %s1013, 1
        %v1016 = vld [vmem:[#allocation16] sm:%s1014]
        %s1017 = sshll.u32 1, 2
        %s1018 = ssub.s32 %s1017, 1
        %1019 = vst [vmem:[%s333] sm:%s1018] %v1016
        %s1020 = sand.u32 %s41, 1
        %s1021 = sand.u32 %s41, 1
        %s1022 = smul.addr %s1021, 8
        %s1023 = scalar_lea.vmem [#allocation8], %s1022
        %s1024 = sand.u32 %s71, 1
        %s1025 = sand.u32 %s71, 1
        %s1026 = smul.addr %s1025, 8
        %s1027 = scalar_lea.vmem [#allocation9], %s1026
        %s1028 = sand.u32 %s17, 1
        %s1029 = sand.u32 %s17, 1
        %s1030 = smul.addr %s1029, 2
        %s1031 = scalar_lea.vmem [#allocation11], %s1030
        %s1032 = sand.u32 %s17, 1
        %s1033 = sand.u32 %s17, 1
        %s1034 = smul.addr %s1033, 2
        %s1035 = scalar_lea.vmem [#allocation13], %s1034
        %s1036 = sand.u32 %s17, 1
        %s1037 = sand.u32 %s17, 1
        %s1038 = smul.addr %s1037, 2
        %s1039 = scalar_lea.vmem [#allocation15], %s1038
        %s1040 = sand.u32 %s17, 1
        %s1041 = sand.u32 %s17, 1
        %s1042 = smul.addr %s1041, 2
        %s1043 = scalar_lea.vmem [#allocation17], %s1042
        // Predicated region
        $region155: #{custom-call.5} parent=139 // pred_check
          %p1044 = pneg %p51
        $region156: #{custom-call.5} parent=139 // pred_check_branch
          %1046 = sbr.rel (%p1044) target = $region158
        $region157: #{custom-call.5} parent=139 // pred_region
          %s1047 = sshrl.u32 %s22, 3
          %s1048 = sadd.s32 %s1047, %s21
          %s1049 = smul.addr %s1048, 8
          %s1050 = scalar_lea.vmem %s4, %s1049
          // Predicated region
          $region159: #{custom-call.5} parent=157 // pred_check
            _
          $region160: #{custom-call.5} parent=157 // pred_check_branch
            %1052 = sbr.rel (0) target = $region162
          $region161: #{custom-call.5} parent=157 // pred_region
            // Predicated region
            $region163: #{custom-call.5} parent=161 // pred_check
              _
            $region164: #{custom-call.5} parent=161 // pred_check_branch
              %1054 = sbr.rel (0) target = $region166
            $region165: #{custom-call.5} parent=161 // pred_region
              // Predicated region
              $region178: #{custom-call.5} parent=165 // pred_check
                _
              $region179: #{custom-call.5} parent=165 // pred_check_branch
                %1070 = sbr.rel (0) target = $region181
              $region180: #{custom-call.5} parent=165 // pred_region
                loop: start=0, step=1, limit=1
                $region182: #{custom-call.5} parent=180 // loop_pre_header
                  _
                $region183: #{custom-call.5} parent=180 // loop_header
                  %s1072 = sphi 0, %s1076
                  %p1073 = scmp.ge.s32.totalorder %s1072, 1
                  %s1077 = sphi %s1023, %s1023
                  %s1078 = sphi %s1050, %s1050
                $region184: #{custom-call.5} parent=180 // loop_header_branch
                  %1075 = sbr.rel (%p1073) target = $region188
                $region185: #{custom-call.5} parent=180 // loop_body
                  %v1079 = vld [vmem:[%s1077] sm:$0xff]
                  %1080 = vst [vmem:[%s1078] sm:$0xff] %v1079
                $region186: #{custom-call.5} parent=180 // loop_footer
                  %s1076 = sadd.s32 1, %s1072
                $region187: #{custom-call.5} parent=180 // loop_footer_branch
                  %1071 = sbr.rel target = $region183
                $region188: #{custom-call.5} parent=180 // loop_exit
                  _
              $region181: #{custom-call.5} parent=165 // pred_fallthru
                _
              // Predicated region
              $region189: #{custom-call.5} parent=165 // pred_check
                _
              $region190: #{custom-call.5} parent=165 // pred_check_branch
                %1082 = sbr.rel target = $region192
              $region191: #{custom-call.5} parent=165 // pred_region
                _
              $region192: #{custom-call.5} parent=165 // pred_fallthru
                _
            $region166: #{custom-call.5} parent=161 // pred_fallthru
              _
            // Predicated region
            $region167: #{custom-call.5} parent=161 // pred_check
              _
            $region168: #{custom-call.5} parent=161 // pred_check_branch
              %1056 = sbr.rel target = $region170
            $region169: #{custom-call.5} parent=161 // pred_region
              %s1058 = ssub.s32 256, 1
              loop: start=0, step=1, limit=1
              $region171: #{custom-call.5} parent=169 // loop_pre_header
                _
              $region172: #{custom-call.5} parent=169 // loop_header
                %s1060 = sphi 0, %s1064
                %p1061 = scmp.ge.s32.totalorder %s1060, 1
                %s1065 = sphi %s1023, %s1023
                %s1066 = sphi %s1050, %s1050
              $region173: #{custom-call.5} parent=169 // loop_header_branch
                %1063 = sbr.rel (%p1061) target = $region177
              $region174: #{custom-call.5} parent=169 // loop_body
                %v1067 = vld [vmem:[%s1065] sm:%s1058]
                %1068 = vst [vmem:[%s1066] sm:%s1058] %v1067
              $region175: #{custom-call.5} parent=169 // loop_footer
                %s1064 = sadd.s32 1, %s1060
              $region176: #{custom-call.5} parent=169 // loop_footer_branch
                %1059 = sbr.rel target = $region172
              $region177: #{custom-call.5} parent=169 // loop_exit
                _
            $region170: #{custom-call.5} parent=161 // pred_fallthru
              _
          $region162: #{custom-call.5} parent=157 // pred_fallthru
            _
          %1083 = vnop
        $region158: #{custom-call.5} parent=139 // pred_fallthru
          _
        // Predicated region
        $region193: #{custom-call.5} parent=139 // pred_check
          %p1084 = pneg %p81
        $region194: #{custom-call.5} parent=139 // pred_check_branch
          %1086 = sbr.rel (%p1084) target = $region196
        $region195: #{custom-call.5} parent=139 // pred_region
          %s1087 = sshrl.u32 %s22, 3
          %s1088 = sadd.s32 %s1087, %s21
          %s1089 = smul.addr %s1088, 8
          %s1090 = scalar_lea.vmem %s5, %s1089
          // Predicated region
          $region197: #{custom-call.5} parent=195 // pred_check
            _
          $region198: #{custom-call.5} parent=195 // pred_check_branch
            %1092 = sbr.rel (0) target = $region200
          $region199: #{custom-call.5} parent=195 // pred_region
            // Predicated region
            $region201: #{custom-call.5} parent=199 // pred_check
              _
            $region202: #{custom-call.5} parent=199 // pred_check_branch
              %1094 = sbr.rel (0) target = $region204
            $region203: #{custom-call.5} parent=199 // pred_region
              // Predicated region
              $region216: #{custom-call.5} parent=203 // pred_check
                _
              $region217: #{custom-call.5} parent=203 // pred_check_branch
                %1110 = sbr.rel (0) target = $region219
              $region218: #{custom-call.5} parent=203 // pred_region
                loop: start=0, step=1, limit=1
                $region220: #{custom-call.5} parent=218 // loop_pre_header
                  _
                $region221: #{custom-call.5} parent=218 // loop_header
                  %s1112 = sphi 0, %s1116
                  %p1113 = scmp.ge.s32.totalorder %s1112, 1
                  %s1117 = sphi %s1027, %s1027
                  %s1118 = sphi %s1090, %s1090
                $region222: #{custom-call.5} parent=218 // loop_header_branch
                  %1115 = sbr.rel (%p1113) target = $region226
                $region223: #{custom-call.5} parent=218 // loop_body
                  %v1119 = vld [vmem:[%s1117] sm:$0xff]
                  %1120 = vst [vmem:[%s1118] sm:$0xff] %v1119
                $region224: #{custom-call.5} parent=218 // loop_footer
                  %s1116 = sadd.s32 1, %s1112
                $region225: #{custom-call.5} parent=218 // loop_footer_branch
                  %1111 = sbr.rel target = $region221
                $region226: #{custom-call.5} parent=218 // loop_exit
                  _
              $region219: #{custom-call.5} parent=203 // pred_fallthru
                _
              // Predicated region
              $region227: #{custom-call.5} parent=203 // pred_check
                _
              $region228: #{custom-call.5} parent=203 // pred_check_branch
                %1122 = sbr.rel target = $region230
              $region229: #{custom-call.5} parent=203 // pred_region
                _
              $region230: #{custom-call.5} parent=203 // pred_fallthru
                _
            $region204: #{custom-call.5} parent=199 // pred_fallthru
              _
            // Predicated region
            $region205: #{custom-call.5} parent=199 // pred_check
              _
            $region206: #{custom-call.5} parent=199 // pred_check_branch
              %1096 = sbr.rel target = $region208
            $region207: #{custom-call.5} parent=199 // pred_region
              %s1098 = ssub.s32 256, 1
              loop: start=0, step=1, limit=1
              $region209: #{custom-call.5} parent=207 // loop_pre_header
                _
              $region210: #{custom-call.5} parent=207 // loop_header
                %s1100 = sphi 0, %s1104
                %p1101 = scmp.ge.s32.totalorder %s1100, 1
                %s1105 = sphi %s1027, %s1027
                %s1106 = sphi %s1090, %s1090
              $region211: #{custom-call.5} parent=207 // loop_header_branch
                %1103 = sbr.rel (%p1101) target = $region215
              $region212: #{custom-call.5} parent=207 // loop_body
                %v1107 = vld [vmem:[%s1105] sm:%s1098]
                %1108 = vst [vmem:[%s1106] sm:%s1098] %v1107
              $region213: #{custom-call.5} parent=207 // loop_footer
                %s1104 = sadd.s32 1, %s1100
              $region214: #{custom-call.5} parent=207 // loop_footer_branch
                %1099 = sbr.rel target = $region210
              $region215: #{custom-call.5} parent=207 // loop_exit
                _
            $region208: #{custom-call.5} parent=199 // pred_fallthru
              _
          $region200: #{custom-call.5} parent=195 // pred_fallthru
            _
          %1123 = vnop
        $region196: #{custom-call.5} parent=139 // pred_fallthru
          _
        %s1124 = smul.addr %s21, 6
        %s1125 = sadd.s32 %s22, %s1124
        %s1126 = smul.addr %s1125, 2
        %s1127 = scalar_lea.vmem %s6, %s1126
        // Predicated region
        $region231: #{custom-call.5} parent=139 // pred_check
          _
        $region232: #{custom-call.5} parent=139 // pred_check_branch
          %1129 = sbr.rel (0) target = $region234
        $region233: #{custom-call.5} parent=139 // pred_region
          // Predicated region
          $region235: #{custom-call.5} parent=233 // pred_check
            _
          $region236: #{custom-call.5} parent=233 // pred_check_branch
            %1131 = sbr.rel target = $region238
          $region237: #{custom-call.5} parent=233 // pred_region
            // Predicated region
            $region250: #{custom-call.5} parent=237 // pred_check
              _
            $region251: #{custom-call.5} parent=237 // pred_check_branch
              %1147 = sbr.rel (0) target = $region253
            $region252: #{custom-call.5} parent=237 // pred_region
              %s1149 = ssub.s32 4, 1
              loop: start=0, step=1, limit=1
              $region254: #{custom-call.5} parent=252 // loop_pre_header
                _
              $region255: #{custom-call.5} parent=252 // loop_header
                %s1151 = sphi 0, %s1155
                %p1152 = scmp.ge.s32.totalorder %s1151, 1
                %s1156 = sphi %s1031, %s1031
                %s1157 = sphi %s1127, %s1127
              $region256: #{custom-call.5} parent=252 // loop_header_branch
                %1154 = sbr.rel (%p1152) target = $region260
              $region257: #{custom-call.5} parent=252 // loop_body
                %v1158 = vld [vmem:[%s1156] sm:%s1149]
                %1159 = vst [vmem:[%s1157] sm:%s1149] %v1158
              $region258: #{custom-call.5} parent=252 // loop_footer
                %s1155 = sadd.s32 1, %s1151
              $region259: #{custom-call.5} parent=252 // loop_footer_branch
                %1150 = sbr.rel target = $region255
              $region260: #{custom-call.5} parent=252 // loop_exit
                _
            $region253: #{custom-call.5} parent=237 // pred_fallthru
              _
          $region238: #{custom-call.5} parent=233 // pred_fallthru
            _
          // Predicated region
          $region239: #{custom-call.5} parent=233 // pred_check
            _
          $region240: #{custom-call.5} parent=233 // pred_check_branch
            %1133 = sbr.rel (0) target = $region242
          $region241: #{custom-call.5} parent=233 // pred_region
            %s1135 = ssub.s32 4, 1
            loop: start=0, step=1, limit=1
            $region243: #{custom-call.5} parent=241 // loop_pre_header
              _
            $region244: #{custom-call.5} parent=241 // loop_header
              %s1137 = sphi 0, %s1141
              %p1138 = scmp.ge.s32.totalorder %s1137, 1
              %s1142 = sphi %s1031, %s1031
              %s1143 = sphi %s1127, %s1127
            $region245: #{custom-call.5} parent=241 // loop_header_branch
              %1140 = sbr.rel (%p1138) target = $region249
            $region246: #{custom-call.5} parent=241 // loop_body
              %v1144 = vld [vmem:[%s1142] sm:%s1135]
              %1145 = vst [vmem:[%s1143] sm:%s1135] %v1144
            $region247: #{custom-call.5} parent=241 // loop_footer
              %s1141 = sadd.s32 1, %s1137
            $region248: #{custom-call.5} parent=241 // loop_footer_branch
              %1136 = sbr.rel target = $region244
            $region249: #{custom-call.5} parent=241 // loop_exit
              _
          $region242: #{custom-call.5} parent=233 // pred_fallthru
            _
        $region234: #{custom-call.5} parent=139 // pred_fallthru
          _
        %1160 = vnop
        %s1161 = smul.addr %s21, 6
        %s1162 = sadd.s32 %s22, %s1161
        %s1163 = smul.addr %s1162, 2
        %s1164 = scalar_lea.vmem %s7, %s1163
        // Predicated region
        $region261: #{custom-call.5} parent=139 // pred_check
          _
        $region262: #{custom-call.5} parent=139 // pred_check_branch
          %1166 = sbr.rel (0) target = $region264
        $region263: #{custom-call.5} parent=139 // pred_region
          // Predicated region
          $region265: #{custom-call.5} parent=263 // pred_check
            _
          $region266: #{custom-call.5} parent=263 // pred_check_branch
            %1168 = sbr.rel target = $region268
          $region267: #{custom-call.5} parent=263 // pred_region
            // Predicated region
            $region280: #{custom-call.5} parent=267 // pred_check
              _
            $region281: #{custom-call.5} parent=267 // pred_check_branch
              %1184 = sbr.rel (0) target = $region283
            $region282: #{custom-call.5} parent=267 // pred_region
              %s1186 = ssub.s32 4, 1
              loop: start=0, step=1, limit=1
              $region284: #{custom-call.5} parent=282 // loop_pre_header
                _
              $region285: #{custom-call.5} parent=282 // loop_header
                %s1188 = sphi 0, %s1192
                %p1189 = scmp.ge.s32.totalorder %s1188, 1
                %s1193 = sphi %s1035, %s1035
                %s1194 = sphi %s1164, %s1164
              $region286: #{custom-call.5} parent=282 // loop_header_branch
                %1191 = sbr.rel (%p1189) target = $region290
              $region287: #{custom-call.5} parent=282 // loop_body
                %v1195 = vld [vmem:[%s1193] sm:%s1186]
                %1196 = vst [vmem:[%s1194] sm:%s1186] %v1195
              $region288: #{custom-call.5} parent=282 // loop_footer
                %s1192 = sadd.s32 1, %s1188
              $region289: #{custom-call.5} parent=282 // loop_footer_branch
                %1187 = sbr.rel target = $region285
              $region290: #{custom-call.5} parent=282 // loop_exit
                _
            $region283: #{custom-call.5} parent=267 // pred_fallthru
              _
          $region268: #{custom-call.5} parent=263 // pred_fallthru
            _
          // Predicated region
          $region269: #{custom-call.5} parent=263 // pred_check
            _
          $region270: #{custom-call.5} parent=263 // pred_check_branch
            %1170 = sbr.rel (0) target = $region272
          $region271: #{custom-call.5} parent=263 // pred_region
            %s1172 = ssub.s32 4, 1
            loop: start=0, step=1, limit=1
            $region273: #{custom-call.5} parent=271 // loop_pre_header
              _
            $region274: #{custom-call.5} parent=271 // loop_header
              %s1174 = sphi 0, %s1178
              %p1175 = scmp.ge.s32.totalorder %s1174, 1
              %s1179 = sphi %s1035, %s1035
              %s1180 = sphi %s1164, %s1164
            $region275: #{custom-call.5} parent=271 // loop_header_branch
              %1177 = sbr.rel (%p1175) target = $region279
            $region276: #{custom-call.5} parent=271 // loop_body
              %v1181 = vld [vmem:[%s1179] sm:%s1172]
              %1182 = vst [vmem:[%s1180] sm:%s1172] %v1181
            $region277: #{custom-call.5} parent=271 // loop_footer
              %s1178 = sadd.s32 1, %s1174
            $region278: #{custom-call.5} parent=271 // loop_footer_branch
              %1173 = sbr.rel target = $region274
            $region279: #{custom-call.5} parent=271 // loop_exit
              _
          $region272: #{custom-call.5} parent=263 // pred_fallthru
            _
        $region264: #{custom-call.5} parent=139 // pred_fallthru
          _
        %1197 = vnop
        %s1198 = smul.addr %s21, 6
        %s1199 = sadd.s32 %s22, %s1198
        %s1200 = smul.addr %s1199, 2
        %s1201 = scalar_lea.vmem %s8, %s1200
        // Predicated region
        $region291: #{custom-call.5} parent=139 // pred_check
          _
        $region292: #{custom-call.5} parent=139 // pred_check_branch
          %1203 = sbr.rel (0) target = $region294
        $region293: #{custom-call.5} parent=139 // pred_region
          // Predicated region
          $region295: #{custom-call.5} parent=293 // pred_check
            _
          $region296: #{custom-call.5} parent=293 // pred_check_branch
            %1205 = sbr.rel target = $region298
          $region297: #{custom-call.5} parent=293 // pred_region
            // Predicated region
            $region310: #{custom-call.5} parent=297 // pred_check
              _
            $region311: #{custom-call.5} parent=297 // pred_check_branch
              %1221 = sbr.rel (0) target = $region313
            $region312: #{custom-call.5} parent=297 // pred_region
              %s1223 = ssub.s32 4, 1
              loop: start=0, step=1, limit=1
              $region314: #{custom-call.5} parent=312 // loop_pre_header
                _
              $region315: #{custom-call.5} parent=312 // loop_header
                %s1225 = sphi 0, %s1229
                %p1226 = scmp.ge.s32.totalorder %s1225, 1
                %s1230 = sphi %s1039, %s1039
                %s1231 = sphi %s1201, %s1201
              $region316: #{custom-call.5} parent=312 // loop_header_branch
                %1228 = sbr.rel (%p1226) target = $region320
              $region317: #{custom-call.5} parent=312 // loop_body
                %v1232 = vld [vmem:[%s1230] sm:%s1223]
                %1233 = vst [vmem:[%s1231] sm:%s1223] %v1232
              $region318: #{custom-call.5} parent=312 // loop_footer
                %s1229 = sadd.s32 1, %s1225
              $region319: #{custom-call.5} parent=312 // loop_footer_branch
                %1224 = sbr.rel target = $region315
              $region320: #{custom-call.5} parent=312 // loop_exit
                _
            $region313: #{custom-call.5} parent=297 // pred_fallthru
              _
          $region298: #{custom-call.5} parent=293 // pred_fallthru
            _
          // Predicated region
          $region299: #{custom-call.5} parent=293 // pred_check
            _
          $region300: #{custom-call.5} parent=293 // pred_check_branch
            %1207 = sbr.rel (0) target = $region302
          $region301: #{custom-call.5} parent=293 // pred_region
            %s1209 = ssub.s32 4, 1
            loop: start=0, step=1, limit=1
            $region303: #{custom-call.5} parent=301 // loop_pre_header
              _
            $region304: #{custom-call.5} parent=301 // loop_header
              %s1211 = sphi 0, %s1215
              %p1212 = scmp.ge.s32.totalorder %s1211, 1
              %s1216 = sphi %s1039, %s1039
              %s1217 = sphi %s1201, %s1201
            $region305: #{custom-call.5} parent=301 // loop_header_branch
              %1214 = sbr.rel (%p1212) target = $region309
            $region306: #{custom-call.5} parent=301 // loop_body
              %v1218 = vld [vmem:[%s1216] sm:%s1209]
              %1219 = vst [vmem:[%s1217] sm:%s1209] %v1218
            $region307: #{custom-call.5} parent=301 // loop_footer
              %s1215 = sadd.s32 1, %s1211
            $region308: #{custom-call.5} parent=301 // loop_footer_branch
              %1210 = sbr.rel target = $region304
            $region309: #{custom-call.5} parent=301 // loop_exit
              _
          $region302: #{custom-call.5} parent=293 // pred_fallthru
            _
        $region294: #{custom-call.5} parent=139 // pred_fallthru
          _
        %1234 = vnop
        %s1235 = smul.addr %s21, 6
        %s1236 = sadd.s32 %s22, %s1235
        %s1237 = smul.addr %s1236, 2
        %s1238 = scalar_lea.vmem %s9, %s1237
        // Predicated region
        $region321: #{custom-call.5} parent=139 // pred_check
          _
        $region322: #{custom-call.5} parent=139 // pred_check_branch
          %1240 = sbr.rel (0) target = $region324
        $region323: #{custom-call.5} parent=139 // pred_region
          // Predicated region
          $region325: #{custom-call.5} parent=323 // pred_check
            _
          $region326: #{custom-call.5} parent=323 // pred_check_branch
            %1242 = sbr.rel target = $region328
          $region327: #{custom-call.5} parent=323 // pred_region
            // Predicated region
            $region340: #{custom-call.5} parent=327 // pred_check
              _
            $region341: #{custom-call.5} parent=327 // pred_check_branch
              %1258 = sbr.rel (0) target = $region343
            $region342: #{custom-call.5} parent=327 // pred_region
              %s1260 = ssub.s32 4, 1
              loop: start=0, step=1, limit=1
              $region344: #{custom-call.5} parent=342 // loop_pre_header
                _
              $region345: #{custom-call.5} parent=342 // loop_header
                %s1262 = sphi 0, %s1266
                %p1263 = scmp.ge.s32.totalorder %s1262, 1
                %s1267 = sphi %s1043, %s1043
                %s1268 = sphi %s1238, %s1238
              $region346: #{custom-call.5} parent=342 // loop_header_branch
                %1265 = sbr.rel (%p1263) target = $region350
              $region347: #{custom-call.5} parent=342 // loop_body
                %v1269 = vld [vmem:[%s1267] sm:%s1260]
                %1270 = vst [vmem:[%s1268] sm:%s1260] %v1269
              $region348: #{custom-call.5} parent=342 // loop_footer
                %s1266 = sadd.s32 1, %s1262
              $region349: #{custom-call.5} parent=342 // loop_footer_branch
                %1261 = sbr.rel target = $region345
              $region350: #{custom-call.5} parent=342 // loop_exit
                _
            $region343: #{custom-call.5} parent=327 // pred_fallthru
              _
          $region328: #{custom-call.5} parent=323 // pred_fallthru
            _
          // Predicated region
          $region329: #{custom-call.5} parent=323 // pred_check
            _
          $region330: #{custom-call.5} parent=323 // pred_check_branch
            %1244 = sbr.rel (0) target = $region332
          $region331: #{custom-call.5} parent=323 // pred_region
            %s1246 = ssub.s32 4, 1
            loop: start=0, step=1, limit=1
            $region333: #{custom-call.5} parent=331 // loop_pre_header
              _
            $region334: #{custom-call.5} parent=331 // loop_header
              %s1248 = sphi 0, %s1252
              %p1249 = scmp.ge.s32.totalorder %s1248, 1
              %s1253 = sphi %s1043, %s1043
              %s1254 = sphi %s1238, %s1238
            $region335: #{custom-call.5} parent=331 // loop_header_branch
              %1251 = sbr.rel (%p1249) target = $region339
            $region336: #{custom-call.5} parent=331 // loop_body
              %v1255 = vld [vmem:[%s1253] sm:%s1246]
              %1256 = vst [vmem:[%s1254] sm:%s1246] %v1255
            $region337: #{custom-call.5} parent=331 // loop_footer
              %s1252 = sadd.s32 1, %s1248
            $region338: #{custom-call.5} parent=331 // loop_footer_branch
              %1247 = sbr.rel target = $region334
            $region339: #{custom-call.5} parent=331 // loop_exit
              _
          $region332: #{custom-call.5} parent=323 // pred_fallthru
            _
        $region324: #{custom-call.5} parent=139 // pred_fallthru
          _
        %1271 = vnop
      $region140: #{custom-call.5} parent=5 // pred_fallthru
        _
      %p1272 = scmp.le.s32.totalorder 2, %s12
      // Predicated region
      $region351: #{custom-call.5} parent=5 // pred_check
        %p1273 = pneg %p1272
      $region352: #{custom-call.5} parent=5 // pred_check_branch
        %1275 = sbr.rel (%p1273) target = $region354
      $region353: #{custom-call.5} parent=5 // pred_region
        %s1276 = ssub.s32 %s12, 2
        // Predicated region
        $region355: #{custom-call.5} parent=353 // pred_check
          %p1277 = pneg %p57
        $region356: #{custom-call.5} parent=353 // pred_check_branch
          %1279 = sbr.rel (%p1277) target = $region358
        $region357: #{custom-call.5} parent=353 // pred_region
          %s1280 = sand.u32 %s42, 1
          %s1281 = sand.u32 %s42, 1
          %s1282 = smul.addr %s1281, 8
          %s1283 = scalar_lea.vmem [#allocation8], %s1282
        $region358: #{custom-call.5} parent=353 // pred_fallthru
          _
        // Predicated region
        $region359: #{custom-call.5} parent=353 // pred_check
          %p1284 = pneg %p87
        $region360: #{custom-call.5} parent=353 // pred_check_branch
          %1286 = sbr.rel (%p1284) target = $region362
        $region361: #{custom-call.5} parent=353 // pred_region
          %s1287 = sand.u32 %s72, 1
          %s1288 = sand.u32 %s72, 1
          %s1289 = smul.addr %s1288, 8
          %s1290 = scalar_lea.vmem [#allocation9], %s1289
        $region362: #{custom-call.5} parent=353 // pred_fallthru
          _
        %s1291 = sand.u32 %s18, 1
        %s1292 = sand.u32 %s18, 1
        %s1293 = smul.addr %s1292, 2
        %s1294 = scalar_lea.vmem [#allocation11], %s1293
        %s1295 = sand.u32 %s18, 1
        %s1296 = sand.u32 %s18, 1
        %s1297 = smul.addr %s1296, 2
        %s1298 = scalar_lea.vmem [#allocation13], %s1297
        %s1299 = sand.u32 %s18, 1
        %s1300 = sand.u32 %s18, 1
        %s1301 = smul.addr %s1300, 2
        %s1302 = scalar_lea.vmem [#allocation15], %s1301
        %s1303 = sand.u32 %s18, 1
        %s1304 = sand.u32 %s18, 1
        %s1305 = smul.addr %s1304, 2
        %s1306 = scalar_lea.vmem [#allocation17], %s1305
      $region354: #{custom-call.5} parent=5 // pred_fallthru
        _
    $region6: #{custom-call.5} parent=1 // loop_footer
      %s16 = sadd.s32 1, %s12
    $region7: #{custom-call.5} parent=1 // loop_footer_branch
      %11 = sbr.rel target = $region3
    $region8: #{custom-call.5} parent=1 // loop_exit
      _

// kernel: _lambda_.2
$region0: #{_lambda_.2}
  #allocation0 [shape = 'u32[]', space=smem, size = 0x4, offset = 0x4, fixed_abs, tag = 'smem constant byte address 0x4 - core index']
  #allocation1 [shape = 'u32[144,128]{1,0:T(1,128)}', space=vmem, size = 0x12000, scoped, tag = 'internal scratch']
  %s0 = inlined_call_operand.vmem [shape: f32[37,512], index: 0, kind: input, shape index: {}]
  %s1 = inlined_call_operand.vmem [shape: f32[8,37], index: 1, kind: input, shape index: {}]
  %s2 = inlined_call_operand.vmem [shape: f32[8,512], index: 2, kind: output, shape index: {0}]
  %s3 = inlined_call_operand.vmem [shape: f32[16,8], index: 3, kind: output, shape index: {1}]
  %4 = xla_tuple %s2, %s3
  %s5 = sld [smem:[#allocation0]]
  $region72: #{_lambda_.2} parent=0
    _
  %s7 = ssub.s32 1, %s5
  %s8 = scalar_select 0, %s7, %s5
  $region1: #{_lambda_.2} parent=0
    #allocation2 [shape = 'u8[81920]{0}', space=vmem, size = 0x14000, scoped, tag = 'input window, operand 0']
    loop: start=0, step=1, limit=4
    $region2: #{_lambda_.2} parent=1 // loop_pre_header
      _
    $region3: #{_lambda_.2} parent=1 // loop_header
      %s10 = sphi 0, %s14
      %p11 = scmp.ge.s32.totalorder %s10, 4
      %s20 = sphi 0, %s22
      %s23 = sphi 0, %s20
      %s24 = sphi 0, %s23
      %s40 = sphi 0, %s24
      %s44 = sphi 0, %s44
      %s46 = sphi 0, %s44
      %s47 = sphi 0, %s46
      %s61 = sphi 0, %s47
      %s67 = sphi 0, %s69
      %s70 = sphi 0, %s67
      %s71 = sphi 0, %s70
      %s87 = sphi 0, %s71
      %s93 = sphi 0, %s95
      %s96 = sphi 0, %s93
      %s97 = sphi 0, %s96
      %s113 = sphi 0, %s97
    $region4: #{_lambda_.2} parent=1 // loop_header_branch
      %13 = sbr.rel (%p11) target = $region8
    $region5: #{_lambda_.2} parent=1 // loop_body
      %s15 = ssub.s32 %s10, 1
      %s16 = ssub.s32 %s10, 2
      %s17 = sadd.s32 %s10, 1
      %s18 = ssub.s32 %s10, %s17
      %p19 = scmp.eq.s32.totalorder %s18, 0
      %s21 = sadd.s32 %s20, 1
      %s22 = scalar_select %p19, %s20, %s21
      %p25 = pneg %p19
      %p26 = scmp.eq.s32.totalorder %s10, 1
      %p27 = por %p25, %p26
      %p28 = scmp.ne.s32.totalorder %s20, %s23
      %p29 = scmp.eq.s32.totalorder %s10, 0
      %p30 = por %p28, %p29
      %p31 = scmp.ne.s32.totalorder %s20, %s23
      %p32 = scmp.eq.s32.totalorder %s15, 1
      %p33 = por %p31, %p32
      %p34 = scmp.ne.s32.totalorder %s23, %s24
      %p35 = scmp.eq.s32.totalorder %s15, 0
      %p36 = por %p34, %p35
      %p37 = scmp.ne.s32.totalorder %s23, %s24
      %p38 = scmp.eq.s32.totalorder %s16, 1
      %p39 = por %p37, %p38
      %p41 = scmp.ne.s32.totalorder %s24, %s40
      %p42 = scmp.eq.s32.totalorder %s16, 0
      %p43 = por %p41, %p42
      %s45 = sadd.s32 %s44, 1
      %p48 = scmp.eq.s32.totalorder %s10, 1
      %p49 = scmp.ne.s32.totalorder %s44, %s46
      %p50 = scmp.eq.s32.totalorder %s10, 0
      %p51 = por %p49, %p50
      %p52 = scmp.ne.s32.totalorder %s44, %s46
      %p53 = scmp.eq.s32.totalorder %s15, 1
      %p54 = por %p52, %p53
      %p55 = scmp.ne.s32.totalorder %s46, %s47
      %p56 = scmp.eq.s32.totalorder %s15, 0
      %p57 = por %p55, %p56
      %p58 = scmp.ne.s32.totalorder %s46, %s47
      %p59 = scmp.eq.s32.totalorder %s16, 1
      %p60 = por %p58, %p59
      %p62 = scmp.ne.s32.totalorder %s47, %s61
      %p63 = scmp.eq.s32.totalorder %s16, 0
      %p64 = por %p62, %p63
      %s65 = ssub.s32 %s10, %s17
      %p66 = scmp.eq.s32.totalorder %s65, 0
      %s68 = sadd.s32 %s67, 1
      %s69 = scalar_select %p66, %s67, %s68
      %p72 = pneg %p66
      %p73 = scmp.eq.s32.totalorder %s10, 1
      %p74 = por %p72, %p73
      %p75 = scmp.ne.s32.totalorder %s67, %s70
      %p76 = scmp.eq.s32.totalorder %s10, 0
      %p77 = por %p75, %p76
      %p78 = scmp.ne.s32.totalorder %s67, %s70
      %p79 = scmp.eq.s32.totalorder %s15, 1
      %p80 = por %p78, %p79
      %p81 = scmp.ne.s32.totalorder %s70, %s71
      %p82 = scmp.eq.s32.totalorder %s15, 0
      %p83 = por %p81, %p82
      %p84 = scmp.ne.s32.totalorder %s70, %s71
      %p85 = scmp.eq.s32.totalorder %s16, 1
      %p86 = por %p84, %p85
      %p88 = scmp.ne.s32.totalorder %s71, %s87
      %p89 = scmp.eq.s32.totalorder %s16, 0
      %p90 = por %p88, %p89
      %s91 = ssub.s32 %s10, %s17
      %p92 = scmp.eq.s32.totalorder %s91, 0
      %s94 = sadd.s32 %s93, 1
      %s95 = scalar_select %p92, %s93, %s94
      %p98 = pneg %p92
      %p99 = scmp.eq.s32.totalorder %s10, 1
      %p100 = por %p98, %p99
      %p101 = scmp.ne.s32.totalorder %s93, %s96
      %p102 = scmp.eq.s32.totalorder %s10, 0
      %p103 = por %p101, %p102
      %p104 = scmp.ne.s32.totalorder %s93, %s96
      %p105 = scmp.eq.s32.totalorder %s15, 1
      %p106 = por %p104, %p105
      %p107 = scmp.ne.s32.totalorder %s96, %s97
      %p108 = scmp.eq.s32.totalorder %s15, 0
      %p109 = por %p107, %p108
      %p110 = scmp.ne.s32.totalorder %s96, %s97
      %p111 = scmp.eq.s32.totalorder %s16, 1
      %p112 = por %p110, %p111
      %p114 = scmp.ne.s32.totalorder %s97, %s113
      %p115 = scmp.eq.s32.totalorder %s16, 0
      %p116 = por %p114, %p115
      %p117 = scmp.le.s32.totalorder 1, %s10
      %p118 = scmp.lt.s32.totalorder %s10, 3
      %p119 = pnand %p117, %p118
      %p120 = pneg %p119
      // Predicated region
      $region9: #{_lambda_.2} parent=5 // pred_check
        _
      $region10: #{_lambda_.2} parent=5 // pred_check_branch
        %122 = sbr.rel (%p119) target = $region12
      $region11: #{_lambda_.2} parent=5 // pred_region
        %s123 = ssub.s32 %s10, 1
        // Predicated region
        $region13: #{_lambda_.2} parent=11 // pred_check
          %p124 = pneg %p57
        $region14: #{_lambda_.2} parent=11 // pred_check_branch
          %126 = sbr.rel (%p124) target = $region16
        $region15: #{_lambda_.2} parent=11 // pred_region
          _
        $region16: #{_lambda_.2} parent=11 // pred_fallthru
          _
      $region12: #{_lambda_.2} parent=5 // pred_fallthru
        _
      %p127 = scmp.lt.s32.totalorder %s10, 2
      // Predicated region
      $region17: #{_lambda_.2} parent=5 // pred_check
        %p128 = pneg %p127
      $region18: #{_lambda_.2} parent=5 // pred_check_branch
        %130 = sbr.rel (%p128) target = $region20
      $region19: #{_lambda_.2} parent=5 // pred_region
        // Predicated region
        $region21: #{_lambda_.2} parent=19 // pred_check
          %p131 = pneg %p30
        $region22: #{_lambda_.2} parent=19 // pred_check_branch
          %133 = sbr.rel (%p131) target = $region24
        $region23: #{_lambda_.2} parent=19 // pred_region
          %s134 = sand.u32 %s20, 1
          %s135 = sand.u32 %s20, 1
          %s136 = smul.addr %s135, 80
          %s137 = scalar_lea.vmem [#allocation2], %s136
          %s138 = smul.u32 2, %s10
          %s139 = smul.addr %s138, 8
          %s140 = scalar_lea.vmem %s0, %s139
          // Predicated region
          $region25: #{_lambda_.2} parent=23 // pred_check
            _
          $region26: #{_lambda_.2} parent=23 // pred_check_branch
            %142 = sbr.rel (0) target = $region28
          $region27: #{_lambda_.2} parent=23 // pred_region
            // Predicated region
            $region29: #{_lambda_.2} parent=27 // pred_check
              _
            $region30: #{_lambda_.2} parent=27 // pred_check_branch
              %144 = sbr.rel (0) target = $region32
            $region31: #{_lambda_.2} parent=27 // pred_region
              loop: start=0, step=1, limit=1
              $region33: #{_lambda_.2} parent=31 // loop_pre_header
                _
              $region34: #{_lambda_.2} parent=31 // loop_header
                %s146 = sphi 0, %s150
                %p147 = scmp.ge.s32.totalorder %s146, 1
                %s151 = sphi %s140, %s140
                %s152 = sphi %s137, %s137
              $region35: #{_lambda_.2} parent=31 // loop_header_branch
                %149 = sbr.rel (%p147) target = $region39
              $region36: #{_lambda_.2} parent=31 // loop_body
                %v153 = vld [vmem:[%s151] sm:$0xff]
                %154 = vst [vmem:[%s152] sm:$0xff] %v153
                %v155 = vld [vmem:[%s151 + $0x8] sm:$0xff]
                %156 = vst [vmem:[%s152 + $0x8] sm:$0xff] %v155
                %v157 = vld [vmem:[%s151 + $0x20] sm:$0xff]
                %158 = vst [vmem:[%s152 + $0x10] sm:$0xff] %v157
                %v159 = vld [vmem:[%s151 + $0x28] sm:$0xff]
                %160 = vst [vmem:[%s152 + $0x18] sm:$0xff] %v159
                %v161 = vld [vmem:[%s151 + $0x40] sm:$0xff]
                %162 = vst [vmem:[%s152 + $0x20] sm:$0xff] %v161
                %v163 = vld [vmem:[%s151 + $0x48] sm:$0xff]
                %164 = vst [vmem:[%s152 + $0x28] sm:$0xff] %v163
                %v165 = vld [vmem:[%s151 + $0x60] sm:$0xff]
                %166 = vst [vmem:[%s152 + $0x30] sm:$0xff] %v165
                %v167 = vld [vmem:[%s151 + $0x68] sm:$0xff]
                %168 = vst [vmem:[%s152 + $0x38] sm:$0xff] %v167
                %v169 = vld [vmem:[%s151 + $0x80] sm:$0xff]
                %170 = vst [vmem:[%s152 + $0x40] sm:$0xff] %v169
                %v171 = vld [vmem:[%s151 + $0x88] sm:$0xff]
                %172 = vst [vmem:[%s152 + $0x48] sm:$0xff] %v171
              $region37: #{_lambda_.2} parent=31 // loop_footer
                %s150 = sadd.s32 1, %s146
              $region38: #{_lambda_.2} parent=31 // loop_footer_branch
                %145 = sbr.rel target = $region34
              $region39: #{_lambda_.2} parent=31 // loop_exit
                _
            $region32: #{_lambda_.2} parent=27 // pred_fallthru
              _
            // Predicated region
            $region40: #{_lambda_.2} parent=27 // pred_check
              _
            $region41: #{_lambda_.2} parent=27 // pred_check_branch
              %174 = sbr.rel target = $region43
            $region42: #{_lambda_.2} parent=27 // pred_region
              _
            $region43: #{_lambda_.2} parent=27 // pred_fallthru
              _
          $region28: #{_lambda_.2} parent=23 // pred_fallthru
            _
          %175 = vnop
        $region24: #{_lambda_.2} parent=19 // pred_fallthru
          _
      $region20: #{_lambda_.2} parent=5 // pred_fallthru
        _
      %p176 = scmp.le.s32.totalorder 1, %s10
      %p177 = scmp.lt.s32.totalorder %s10, 3
      %p178 = pnand %p176, %p177
      %p179 = pneg %p178
      // Predicated region
      $region44: #{_lambda_.2} parent=5 // pred_check
        _
      $region45: #{_lambda_.2} parent=5 // pred_check_branch
        %181 = sbr.rel (%p178) target = $region47
      $region46: #{_lambda_.2} parent=5 // pred_region
        %s182 = ssub.s32 %s10, 1
        %s183 = sand.u32 %s23, 1
        %s184 = sand.u32 %s23, 1
        %s185 = smul.addr %s184, 80
        %s186 = scalar_lea.vmem [#allocation2], %s185
        // Predicated region
        $region48: #{_lambda_.2} parent=46 // pred_check
          %p187 = pneg %p36
        $region49: #{_lambda_.2} parent=46 // pred_check_branch
          %189 = sbr.rel (%p187) target = $region51
        $region50: #{_lambda_.2} parent=46 // pred_region
          _
        $region51: #{_lambda_.2} parent=46 // pred_fallthru
          _
        %s190 = sand.u32 %s23, 1
        %s191 = sand.u32 %s23, 1
        %s192 = smul.addr %s191, 80
        %s193 = scalar_lea.vmem [#allocation2], %s192
        %p194 = pneg %p36
        %p195 = pneg %p33
        %p196 = pneg %p57
        %p197 = pneg %p54
        %p198 = pneg %p83
        %p199 = pneg %p80
        %s200 = smul.u32 2, %s15
        %p201 = scmp.lt.s32.totalorder %s200, 3
        %s202 = scalar_select %p201, %s200, 3
        %s203 = smul.addr %s202, 8
        %s204 = scalar_lea.vmem %s2, %s203
        %p205 = pneg %p109
        %p206 = pneg %p106
        %p207 = scmp.lt.s32.totalorder %s15, 1
        %s208 = scalar_select %p207, %s15, 1
        %s209 = smul.addr %s208, 8
        %s210 = scalar_lea.vmem %s3, %s209
        %s211 = smul.u32 2, %s15
        %s212 = smul.u32 2, %s15
        %p213 = scmp.lt.s32.totalorder %s212, 3
        %s214 = scalar_select %p213, %s212, 3
        %s215 = smul.addr %s214, 8
        %s216 = scalar_lea.vmem %s2, %s215
        %s217 = smul.u32 2, %s15
        %p218 = scmp.lt.s32.totalorder %s15, 1
        %s219 = scalar_select %p218, %s15, 1
        %s220 = smul.addr %s219, 8
        %s221 = scalar_lea.vmem %s3, %s220
        %v222 = vld [vmem:[%s1] sm:$0xff]
        %v223 = vld [vmem:[%s186] sm:$0xff]
        %v224 = vld [vmem:[%s186 + $0x8] sm:$0xff]
        %v225 = vld [vmem:[%s186 + $0x10] sm:$0xff]
        %v226 = vld [vmem:[%s186 + $0x18] sm:$0xff]
        %v227 = vld [vmem:[%s186 + $0x20] sm:$0xff]
        %v228 = vld [vmem:[%s186 + $0x28] sm:$0xff]
        %v229 = vld [vmem:[%s186 + $0x30] sm:$0xff]
        %v230 = vld [vmem:[%s186 + $0x38] sm:$0xff]
        %v231 = vld [vmem:[%s186 + $0x40] sm:$0x1f]
        %v232 = vld [vmem:[%s186 + $0x48] sm:$0x1f]
        %vm233 = vcmask 302080
        %v235 = vsel %vm233, %v222, 0
        %vm237 = vcmask 1044480
        %v239 = vsel %vm237, %v231, 0
        %v242 = vsel %vm237, %v232, 0
        %244 = vmatprep.subr.mxu0 0.0
        %245 = vmatpush1.msra.mxu0 0.0
        %246 = vmatprep.subr.mxu0 0.0
        %247 = vmatpush1.msra.mxu0 0.0
        %248 = vmatprep.subr.mxu0 0.0
        %249 = vmatpush1.msra.mxu0 0.0
        %250 = vmatprep.subr.mxu0 0.0
        %251 = vmatpush1.msra.mxu0 0.0
        %252 = vmatprep.subr.mxu0 0.0
        %253 = vmatpush1.msra.mxu0 0.0
        %254 = vmatprep.subr.mxu0 0.0
        %255 = vmatpush1.msra.mxu0 0.0
        %256 = vmatprep.subr.mxu0 0.0
        %257 = vmatpush1.msra.mxu0 0.0
        %258 = vmatprep.subr.mxu0 0.0
        %259 = vmatpush1.msra.mxu0 0.0
        %260 = vmatprep.subr.mxu0 0.0
        %261 = vmatpush1.msra.mxu0 0.0
        %262 = vmatprep.subr.mxu0 0.0
        %263 = vmatpush1.msra.mxu0 0.0
        %264 = vmatprep.subr.mxu0 0.0
        %265 = vmatpush1.msra.mxu0 0.0
        %266 = vmatprep.subr.mxu0 %v242
        %267 = vmatpush1.msra.mxu0 %v239
        %268 = vmatprep.subr.mxu0 %v230
        %269 = vmatpush1.msra.mxu0 %v229
        %270 = vmatprep.subr.mxu0 %v228
        %271 = vmatpush1.msra.mxu0 %v227
        %272 = vmatprep.subr.mxu0 %v226
        %273 = vmatpush1.msra.mxu0 %v225
        %274 = vmatprep.subr.mxu0 %v224
        %275 = vmatpush1.msra.mxu0 %v223
        %276 = vmatprep.subr.mxu0 0.0
        %277 = vmatpush2.msra.mxu0 0.0
        %278 = vmatprep.subr.mxu0 0.0
        %279 = vmatpush2.msra.mxu0 0.0
        %280 = vmatprep.subr.mxu0 0.0
        %281 = vmatpush2.msra.mxu0 0.0
        %282 = vmatprep.subr.mxu0 0.0
        %283 = vmatpush2.msra.mxu0 0.0
        %284 = vmatprep.subr.mxu0 0.0
        %285 = vmatpush2.msra.mxu0 0.0
        %286 = vmatprep.subr.mxu0 0.0
        %287 = vmatpush2.msra.mxu0 0.0
        %288 = vmatprep.subr.mxu0 0.0
        %289 = vmatpush2.msra.mxu0 0.0
        %290 = vmatprep.subr.mxu0 0.0
        %291 = vmatpush2.msra.mxu0 0.0
        %292 = vmatprep.subr.mxu0 0.0
        %293 = vmatpush2.msra.mxu0 0.0
        %294 = vmatprep.subr.mxu0 0.0
        %295 = vmatpush2.msra.mxu0 0.0
        %296 = vmatprep.subr.mxu0 0.0
        %297 = vmatpush2.msra.mxu0 0.0
        %298 = vmatprep.subr.mxu0 0.0
        %299 = vmatpush2.msra.mxu0 0.0
        %300 = vmatprep.subr.mxu0 0.0
        %301 = vmatpush2.msra.mxu0 0.0
        %302 = vmatprep.subr.mxu0 0.0
        %303 = vmatpush2.msra.mxu0 0.0
        %304 = vmatprep.subr.mxu0 0.0
        %305 = vmatpush2.msra.mxu0 0.0
        %306 = vmatprep.subr.mxu0 0.0
        %307 = vmatpush2.msra.mxu0 0.0
        %308 = vmatprep.mubr.f32.mxu0 0.0
        %309 = vmatmul.mubr.f32.gmra.mxu0 %v235
        %v310 = vpop.f32.mrf.mxu0
        %v311 = vadd.f32 0.0, %v310
        %v312 = vpop.f32.mrf.mxu0
        %v313 = vadd.f32 0.0, %v312
        %314 = vdwg.mxu0
        %315 = vst [vmem:[%s216] sm:$0xff] %v311
        %316 = vst [vmem:[%s216 + $0x8] sm:$0xff] %v313
        %317 = vmatprep.subr.mxu0 0.0
        %318 = vmatpush1.xpose.msra.mxu0 0.0
        %319 = vmatprep.subr.mxu0 0.0
        %320 = vmatpush1.xpose.msra.mxu0 0.0
        %321 = vmatprep.subr.mxu0 0.0
        %322 = vmatpush1.xpose.msra.mxu0 0.0
        %323 = vmatprep.subr.mxu0 0.0
        %324 = vmatpush1.xpose.msra.mxu0 0.0
        %325 = vmatprep.subr.mxu0 0.0
        %326 = vmatpush1.xpose.msra.mxu0 0.0
        %327 = vmatprep.subr.mxu0 0.0
        %328 = vmatpush1.xpose.msra.mxu0 0.0
        %329 = vmatprep.subr.mxu0 0.0
        %330 = vmatpush1.xpose.msra.mxu0 0.0
        %331 = vmatprep.subr.mxu0 0.0
        %332 = vmatpush1.xpose.msra.mxu0 0.0
        %333 = vmatprep.subr.mxu0 0.0
        %334 = vmatpush1.xpose.msra.mxu0 0.0
        %335 = vmatprep.subr.mxu0 0.0
        %336 = vmatpush1.xpose.msra.mxu0 0.0
        %337 = vmatprep.subr.mxu0 0.0
        %338 = vmatpush1.xpose.msra.mxu0 0.0
        %339 = vmatprep.subr.mxu0 0.0
        %340 = vmatpush1.xpose.msra.mxu0 0.0
        %341 = vmatprep.subr.mxu0 0.0
        %342 = vmatpush1.xpose.msra.mxu0 0.0
        %343 = vmatprep.subr.mxu0 0.0
        %344 = vmatpush1.xpose.msra.mxu0 0.0
        %345 = vmatprep.subr.mxu0 0.0
        %346 = vmatpush1.xpose.msra.mxu0 0.0
        %347 = vmatprep.subr.mxu0 %v313
        %348 = vmatpush1.xpose.msra.mxu0 %v311
        %349 = vmatprep.subr.mxu0 0.0
        %350 = vmatpush2.xpose.msra.mxu0 0.0
        %351 = vmatprep.subr.mxu0 0.0
        %352 = vmatpush2.xpose.msra.mxu0 0.0
        %353 = vmatprep.subr.mxu0 0.0
        %354 = vmatpush2.xpose.msra.mxu0 0.0
        %355 = vmatprep.subr.mxu0 0.0
        %356 = vmatpush2.xpose.msra.mxu0 0.0
        %357 = vmatprep.subr.mxu0 0.0
        %358 = vmatpush2.xpose.msra.mxu0 0.0
        %359 = vmatprep.subr.mxu0 0.0
        %360 = vmatpush2.xpose.msra.mxu0 0.0
        %361 = vmatprep.subr.mxu0 0.0
        %362 = vmatpush2.xpose.msra.mxu0 0.0
        %363 = vmatprep.subr.mxu0 0.0
        %364 = vmatpush2.xpose.msra.mxu0 0.0
        %365 = vmatprep.subr.mxu0 0.0
        %366 = vmatpush2.xpose.msra.mxu0 0.0
        %367 = vmatprep.subr.mxu0 0.0
        %368 = vmatpush2.xpose.msra.mxu0 0.0
        %369 = vmatprep.subr.mxu0 0.0
        %370 = vmatpush2.xpose.msra.mxu0 0.0
        %371 = vmatprep.subr.mxu0 0.0
        %372 = vmatpush2.xpose.msra.mxu0 0.0
        %373 = vmatprep.subr.mxu0 0.0
        %374 = vmatpush2.xpose.msra.mxu0 0.0
        %375 = vmatprep.subr.mxu0 0.0
        %376 = vmatpush2.xpose.msra.mxu0 0.0
        %377 = vmatprep.subr.mxu0 0.0
        %378 = vmatpush2.xpose.msra.mxu0 0.0
        %379 = vmatprep.subr.mxu0 0.0
        %380 = vmatpush2.xpose.msra.mxu0 0.0
        %381 = vmatprep.mubr.f32.mxu0 %v313
        %382 = vmatmul.mubr.f32.gmra.mxu0 %v311
        %v383 = vpop.f32.mrf.mxu0
        %v384 = vadd.f32 0.0, %v383
        %v385 = vpop.f32.mrf.mxu0
        %386 = vdwg.mxu0
        %vm387 = vcmask 64512
        %388 = vst.msk [vmem:[%s221] sm:$0xff] %vm387, %v384
        %s389 = smul.u32 2, %s15
        %p390 = scmp.lt.s32.totalorder %s389, 3
        %s391 = scalar_select %p390, %s389, 3
        %s392 = smul.addr %s391, 8
        %s393 = scalar_lea.vmem %s2, %s392
        %p394 = scmp.lt.s32.totalorder %s15, 1
        %s395 = scalar_select %p394, %s15, 1
        %s396 = smul.addr %s395, 8
        %s397 = scalar_lea.vmem %s3, %s396
        // Predicated region
        $region52: #{_lambda_.2} parent=46 // pred_check
          %p398 = pneg %p80
        $region53: #{_lambda_.2} parent=46 // pred_check_branch
          %400 = sbr.rel (%p398) target = $region55
        $region54: #{_lambda_.2} parent=46 // pred_region
          %s401 = smul.u32 2, %s15
        $region55: #{_lambda_.2} parent=46 // pred_fallthru
          _
        // Predicated region
        $region56: #{_lambda_.2} parent=46 // pred_check
          %p402 = pneg %p106
        $region57: #{_lambda_.2} parent=46 // pred_check_branch
          %404 = sbr.rel (%p402) target = $region59
        $region58: #{_lambda_.2} parent=46 // pred_region
          _
        $region59: #{_lambda_.2} parent=46 // pred_fallthru
          _
      $region47: #{_lambda_.2} parent=5 // pred_fallthru
        _
      %p405 = scmp.le.s32.totalorder 2, %s10
      // Predicated region
      $region60: #{_lambda_.2} parent=5 // pred_check
        %p406 = pneg %p405
      $region61: #{_lambda_.2} parent=5 // pred_check_branch
        %408 = sbr.rel (%p406) target = $region63
      $region62: #{_lambda_.2} parent=5 // pred_region
        %s409 = ssub.s32 %s10, 2
        // Predicated region
        $region64: #{_lambda_.2} parent=62 // pred_check
          %p410 = pneg %p86
        $region65: #{_lambda_.2} parent=62 // pred_check_branch
          %412 = sbr.rel (%p410) target = $region67
        $region66: #{_lambda_.2} parent=62 // pred_region
          %s413 = smul.u32 2, %s16
          %p414 = scmp.lt.s32.totalorder %s413, 3
          %s415 = scalar_select %p414, %s413, 3
          %s416 = smul.addr %s415, 8
          %s417 = scalar_lea.vmem %s2, %s416
        $region67: #{_lambda_.2} parent=62 // pred_fallthru
          _
        // Predicated region
        $region68: #{_lambda_.2} parent=62 // pred_check
          %p418 = pneg %p112
        $region69: #{_lambda_.2} parent=62 // pred_check_branch
          %420 = sbr.rel (%p418) target = $region71
        $region70: #{_lambda_.2} parent=62 // pred_region
          %p421 = scmp.lt.s32.totalorder %s16, 1
          %s422 = scalar_select %p421, %s16, 1
          %s423 = smul.addr %s422, 8
          %s424 = scalar_lea.vmem %s3, %s423
        $region71: #{_lambda_.2} parent=62 // pred_fallthru
          _
      $region63: #{_lambda_.2} parent=5 // pred_fallthru
        _
    $region6: #{_lambda_.2} parent=1 // loop_footer
      %s14 = sadd.s32 1, %s10
    $region7: #{_lambda_.2} parent=1 // loop_footer_branch
      %9 = sbr.rel target = $region3
    $region8: #{_lambda_.2} parent=1 // loop_exit
      _

// kernel: _lambda_.3
$region0: #{_lambda_.3}
  #allocation0 [shape = 'u32[]', space=smem, size = 0x4, offset = 0x4, fixed_abs, tag = 'smem constant byte address 0x4 - core index']
  #allocation1 [shape = 'u32[144,128]{1,0:T(1,128)}', space=vmem, size = 0x12000, scoped, tag = 'internal scratch']
  %s0 = inlined_call_operand.vmem [shape: f32[8,256], index: 0, kind: input, shape index: {}]
  %s1 = inlined_call_operand.vmem [shape: f32[256,128], index: 1, kind: input, shape index: {}]
  %s2 = inlined_call_operand.vmem [shape: f32[8,128], index: 2, kind: output, shape index: {}]
  %s3 = sld [smem:[#allocation0]]
  $region18: #{_lambda_.3} parent=0
    _
  %s5 = ssub.s32 1, %s3
  %s6 = scalar_select 0, %s5, %s3
  // Predicated region
  $region2: #{_lambda_.3} parent=0 // pred_check
    _
  $region3: #{_lambda_.3} parent=0 // pred_check_branch
    %8 = sbr.rel (0) target = $region5
  $region4: #{_lambda_.3} parent=0 // pred_region
    _
  $region5: #{_lambda_.3} parent=0 // pred_fallthru
    _
  // Predicated region
  $region6: #{_lambda_.3} parent=0 // pred_check
    _
  $region7: #{_lambda_.3} parent=0 // pred_check_branch
    %10 = sbr.rel (0) target = $region9
  $region8: #{_lambda_.3} parent=0 // pred_region
    _
  $region9: #{_lambda_.3} parent=0 // pred_fallthru
    _
  %v11 = vld [vmem:[%s0] sm:$0xff]
  %v12 = vld [vmem:[%s0 + $0x8] sm:$0xff]
  %v13 = vld [vmem:[%s1] sm:$0xff]
  %v14 = vld [vmem:[%s1 + $0x8] sm:$0xff]
  %v15 = vld [vmem:[%s1 + $0x10] sm:$0xff]
  %v16 = vld [vmem:[%s1 + $0x18] sm:$0xff]
  %v17 = vld [vmem:[%s1 + $0x20] sm:$0xff]
  %v18 = vld [vmem:[%s1 + $0x28] sm:$0xff]
  %v19 = vld [vmem:[%s1 + $0x30] sm:$0xff]
  %v20 = vld [vmem:[%s1 + $0x38] sm:$0xff]
  %v21 = vld [vmem:[%s1 + $0x40] sm:$0xff]
  %v22 = vld [vmem:[%s1 + $0x48] sm:$0xff]
  %v23 = vld [vmem:[%s1 + $0x50] sm:$0xff]
  %v24 = vld [vmem:[%s1 + $0x58] sm:$0xff]
  %v25 = vld [vmem:[%s1 + $0x60] sm:$0xff]
  %v26 = vld [vmem:[%s1 + $0x68] sm:$0xff]
  %v27 = vld [vmem:[%s1 + $0x70] sm:$0xff]
  %v28 = vld [vmem:[%s1 + $0x78] sm:$0xff]
  %v29 = vld [vmem:[%s1 + $0x80] sm:$0xff]
  %v30 = vld [vmem:[%s1 + $0x88] sm:$0xff]
  %v31 = vld [vmem:[%s1 + $0x90] sm:$0xff]
  %v32 = vld [vmem:[%s1 + $0x98] sm:$0xff]
  %v33 = vld [vmem:[%s1 + $0xa0] sm:$0xff]
  %v34 = vld [vmem:[%s1 + $0xa8] sm:$0xff]
  %v35 = vld [vmem:[%s1 + $0xb0] sm:$0xff]
  %v36 = vld [vmem:[%s1 + $0xb8] sm:$0xff]
  %v37 = vld [vmem:[%s1 + $0xc0] sm:$0xff]
  %v38 = vld [vmem:[%s1 + $0xc8] sm:$0xff]
  %v39 = vld [vmem:[%s1 + $0xd0] sm:$0xff]
  %v40 = vld [vmem:[%s1 + $0xd8] sm:$0xff]
  %v41 = vld [vmem:[%s1 + $0xe0] sm:$0xff]
  %v42 = vld [vmem:[%s1 + $0xe8] sm:$0xff]
  %v43 = vld [vmem:[%s1 + $0xf0] sm:$0xff]
  %v44 = vld [vmem:[%s1 + $0xf8] sm:$0xff]
  %45 = vmatprep.subr.mxu0 0.0
  %46 = vmatpush1.msra.mxu0 %v28
  %47 = vmatprep.subr.mxu0 0.0
  %48 = vmatpush1.msra.mxu0 %v27
  %49 = vmatprep.subr.mxu0 0.0
  %50 = vmatpush1.msra.mxu0 %v26
  %51 = vmatprep.subr.mxu0 0.0
  %52 = vmatpush1.msra.mxu0 %v25
  %53 = vmatprep.subr.mxu0 0.0
  %54 = vmatpush1.msra.mxu0 %v24
  %55 = vmatprep.subr.mxu0 0.0
  %56 = vmatpush1.msra.mxu0 %v23
  %57 = vmatprep.subr.mxu0 0.0
  %58 = vmatpush1.msra.mxu0 %v22
  %59 = vmatprep.subr.mxu0 0.0
  %60 = vmatpush1.msra.mxu0 %v21
  %61 = vmatprep.subr.mxu0 0.0
  %62 = vmatpush1.msra.mxu0 %v20
  %63 = vmatprep.subr.mxu0 0.0
  %64 = vmatpush1.msra.mxu0 %v19
  %65 = vmatprep.subr.mxu0 0.0
  %66 = vmatpush1.msra.mxu0 %v18
  %67 = vmatprep.subr.mxu0 0.0
  %68 = vmatpush1.msra.mxu0 %v17
  %69 = vmatprep.subr.mxu0 0.0
  %70 = vmatpush1.msra.mxu0 %v16
  %71 = vmatprep.subr.mxu0 0.0
  %72 = vmatpush1.msra.mxu0 %v15
  %73 = vmatprep.subr.mxu0 0.0
  %74 = vmatpush1.msra.mxu0 %v14
  %75 = vmatprep.subr.mxu0 0.0
  %76 = vmatpush1.msra.mxu0 %v13
  %77 = vmatprep.subr.mxu0 0.0
  %78 = vmatpush2.msra.mxu0 %v44
  %79 = vmatprep.subr.mxu0 0.0
  %80 = vmatpush2.msra.mxu0 %v43
  %81 = vmatprep.subr.mxu0 0.0
  %82 = vmatpush2.msra.mxu0 %v42
  %83 = vmatprep.subr.mxu0 0.0
  %84 = vmatpush2.msra.mxu0 %v41
  %85 = vmatprep.subr.mxu0 0.0
  %86 = vmatpush2.msra.mxu0 %v40
  %87 = vmatprep.subr.mxu0 0.0
  %88 = vmatpush2.msra.mxu0 %v39
  %89 = vmatprep.subr.mxu0 0.0
  %90 = vmatpush2.msra.mxu0 %v38
  %91 = vmatprep.subr.mxu0 0.0
  %92 = vmatpush2.msra.mxu0 %v37
  %93 = vmatprep.subr.mxu0 0.0
  %94 = vmatpush2.msra.mxu0 %v36
  %95 = vmatprep.subr.mxu0 0.0
  %96 = vmatpush2.msra.mxu0 %v35
  %97 = vmatprep.subr.mxu0 0.0
  %98 = vmatpush2.msra.mxu0 %v34
  %99 = vmatprep.subr.mxu0 0.0
  %100 = vmatpush2.msra.mxu0 %v33
  %101 = vmatprep.subr.mxu0 0.0
  %102 = vmatpush2.msra.mxu0 %v32
  %103 = vmatprep.subr.mxu0 0.0
  %104 = vmatpush2.msra.mxu0 %v31
  %105 = vmatprep.subr.mxu0 0.0
  %106 = vmatpush2.msra.mxu0 %v30
  %107 = vmatprep.subr.mxu0 0.0
  %108 = vmatpush2.msra.mxu0 %v29
  %109 = vmatprep.mubr.f32.mxu0 %v12
  %110 = vmatmul.mubr.f32.gmra.mxu0 %v11
  %v111 = vpop.f32.mrf.mxu0
  %v112 = vadd.f32 0.0, %v111
  %v113 = vpop.f32.mrf.mxu0
  %114 = vdwg.mxu0
  %115 = vst [vmem:[%s2] sm:$0xff] %v112
  // Predicated region
  $region10: #{_lambda_.3} parent=0 // pred_check
    _
  $region11: #{_lambda_.3} parent=0 // pred_check_branch
    %117 = sbr.rel (0) target = $region13
  $region12: #{_lambda_.3} parent=0 // pred_region
    _
  $region13: #{_lambda_.3} parent=0 // pred_fallthru
    _
  // Predicated region
  $region14: #{_lambda_.3} parent=0 // pred_check
    _
  $region15: #{_lambda_.3} parent=0 // pred_check_branch
    %119 = sbr.rel (0) target = $region17
  $region16: #{_lambda_.3} parent=0 // pred_region
    _
  $region17: #{_lambda_.3} parent=0 // pred_fallthru
    _

</llo_original>
